<compile_context>
chip_gen: v7x
topology: tpu7x:2x2x1
jax: 0.10.0
libtpu: 0.0.40
codegen_flags: <defaults>
</compile_context>

<pallas_src>
import functools

import jax
import jax.numpy as jnp
from jax.experimental import pallas as pl
from jax.experimental.pallas import tpu as pltpu

# ---------------- model hyper-parameters (small, consistent with the module) ---
D = 128           # emb_dim (lane-dense)
NUM_LAYER = 4
NUM_TASKS = 1
BN_EPS = 1e-5
NODE_VOCAB = 10
EDGE_VOCAB = 5


# ---------------------------- fused Pallas kernel -------------------------------
def _fused_ggnn_kernel(h0_ref, adj_ref, pool_ref, ggnn_w_ref,
                       w_r_ref, w_z_ref, w_in_ref, w_hn_ref,
                       b_r_ref, b_z_ref, b_in_ref, b_hn_ref,
                       w0_ref, b0_ref, w1_ref, b1_ref, w2_ref, b2_ref,
                       out_ref):
    f32 = jnp.float32

    h = h0_ref[...]            # [N, D] f32 (recurrent state kept in f32)
    adj = adj_ref[...]         # [N, N] f32, resident in VMEM for all layers

    # ---- GatedGraphConv: per-layer linear, add-aggregation, shared GRUCell ----
    for layer in range(NUM_LAYER):
        w_l = ggnn_w_ref[layer]                                   # [D, D] f32
        m = jnp.dot(h, w_l, preferred_element_type=f32)           # [N, D]
        agg = jnp.dot(adj, m, preferred_element_type=f32)         # [N, D]

        # GRUCell (PyTorch gate order r, z, n).  r/z use merged [agg|h] dots.
        ah = jnp.concatenate([agg, h], axis=1)                    # [N, 2D]
        r = jax.nn.sigmoid(
            jnp.dot(ah, w_r_ref[...], preferred_element_type=f32) + b_r_ref[...])
        z = jax.nn.sigmoid(
            jnp.dot(ah, w_z_ref[...], preferred_element_type=f32) + b_z_ref[...])
        i_n = jnp.dot(agg, w_in_ref[...],
                      preferred_element_type=f32) + b_in_ref[...]
        h_n = jnp.dot(h, w_hn_ref[...],
                      preferred_element_type=f32) + b_hn_ref[...]
        n = jnp.tanh(i_n + r * h_n)
        h = (1.0 - z) * n + z * h

    # ---- global_add_pool, fused (tiny P @ h with pool matrix already in VMEM) --
    hg = jnp.dot(pool_ref[...], h, preferred_element_type=f32)    # [G, D]

    # ---- prediction head: Linear+folded-BN+ReLU, Linear+folded-BN+ReLU, Linear
    hg = jnp.maximum(
        jnp.dot(hg, w0_ref[...], preferred_element_type=f32) + b0_ref[...],
        0.0)                                                      # [G, 2D]
    hg = jnp.maximum(
        jnp.dot(hg, w1_ref[...], preferred_element_type=f32) + b1_ref[...],
        0.0)                                                      # [G, D]
    out_ref[...] = jnp.dot(hg, w2_ref[...],
                           preferred_element_type=f32) + b2_ref[...]   # [G, T]


def fused_forward(prep, h0, adj, pool):
    n_graphs = pool.shape[0]
    full = lambda s: pl.BlockSpec(s, lambda i: (0,) * len(s))

    inputs = [h0, adj, pool, prep["ggnn_w"],
              prep["gru_w_r"], prep["gru_w_z"], prep["gru_w_in"], prep["gru_w_hn"],
              prep["gru_b_r"], prep["gru_b_z"], prep["gru_b_in"], prep["gru_b_hn"],
              prep["lin0_w"], prep["lin0_b"], prep["lin1_w"], prep["lin1_b"],
              prep["lin2_w"], prep["lin2_b"]]

    return pl.pallas_call(
        _fused_ggnn_kernel,
        out_shape=jax.ShapeDtypeStruct((n_graphs, NUM_TASKS), jnp.float32),
        grid=(1,),
        in_specs=[full(a.shape) for a in inputs],
        out_specs=full((n_graphs, NUM_TASKS)),
        compiler_params=pltpu.CompilerParams(dimension_semantics=("arbitrary",)),
    )(*inputs)


# ---------------------------- parameter init ------------------------------------
def init_raw_params(key):
    keys = jax.random.split(key, 16)
    rnd = lambda k, shape, s=0.1: (s * jax.random.normal(k, shape)).astype(jnp.float32)
    return {
        "node_emb": rnd(keys[0], (NODE_VOCAB, D)),
        "edge_emb": rnd(keys[1], (EDGE_VOCAB, D)),
        # GatedGraphConv weights: [num_layers, D, D] (stored as x @ W layout)
        "ggnn_w":   rnd(keys[2], (NUM_LAYER, D, D)),
        # shared GRUCell (stored [in, 3*out], i.e. transposed vs torch; gates r,z,n)
        "gru_wih":  rnd(keys[3], (D, 3 * D)),
        "gru_whh":  rnd(keys[4], (D, 3 * D)),
        "gru_bih":  rnd(keys[5], (1, 3 * D)),
        "gru_bhh":  rnd(keys[6], (1, 3 * D)),
        # prediction head
        "lin0_w":   rnd(keys[7], (D, 2 * D)),
        "lin0_b":   rnd(keys[8], (1, 2 * D)),
        "bn0_gamma": jnp.ones((1, 2 * D), jnp.float32),
        "bn0_beta":  rnd(keys[9], (1, 2 * D)),
        "bn0_mean":  jnp.zeros((1, 2 * D), jnp.float32),
        "bn0_var":   jnp.ones((1, 2 * D), jnp.float32),
        "lin1_w":   rnd(keys[10], (2 * D, D)),
        "lin1_b":   rnd(keys[11], (1, D)),
        "bn1_gamma": jnp.ones((1, D), jnp.float32),
        "bn1_beta":  rnd(keys[12], (1, D)),
        "bn1_mean":  jnp.zeros((1, D), jnp.float32),
        "bn1_var":   jnp.ones((1, D), jnp.float32),
        "lin2_w":   rnd(keys[13], (D, NUM_TASKS)),
        "lin2_b":   rnd(keys[14], (1, NUM_TASKS)),
    }


def prepare_params(raw):
    """Fold inference BN into the preceding Linear and merge GRU r/z weights.
    Pure precompute (numerically identical to the unfused form); all matmul
    operands stay float32 (f32 MXU path; also supported in interpret mode)."""
    f32 = jnp.float32

    def fold_bn(w, b, gamma, beta, mean, var):
        scale = gamma * jax.lax.rsqrt(var + BN_EPS)            # (1, n)
        return (w * scale).astype(f32), (b - mean) * scale + beta

    wih, whh = raw["gru_wih"], raw["gru_whh"]
    bih, bhh = raw["gru_bih"], raw["gru_bhh"]

    w0f, b0f = fold_bn(raw["lin0_w"], raw["lin0_b"], raw["bn0_gamma"],
                       raw["bn0_beta"], raw["bn0_mean"], raw["bn0_var"])
    w1f, b1f = fold_bn(raw["lin1_w"], raw["lin1_b"], raw["bn1_gamma"],
                       raw["bn1_beta"], raw["bn1_mean"], raw["bn1_var"])

    return {
        "ggnn_w": raw["ggnn_w"].astype(f32),
        # r / z gates: stacked [W_ih; W_hh] so one K=2D dot per gate, and the
        # per-gate (N, D) results are lane-aligned tiles.
        "gru_w_r": jnp.concatenate([wih[:, 0:D], whh[:, 0:D]], axis=0).astype(f32),
        "gru_w_z": jnp.concatenate([wih[:, D:2 * D], whh[:, D:2 * D]], axis=0).astype(f32),
        "gru_b_r": bih[:, 0:D] + bhh[:, 0:D],
        "gru_b_z": bih[:, D:2 * D] + bhh[:, D:2 * D],
        # n gate keeps input / hidden parts separate (r multiplies only h_n).
        "gru_w_in": wih[:, 2 * D:3 * D].astype(f32),
        "gru_w_hn": whh[:, 2 * D:3 * D].astype(f32),
        "gru_b_in": bih[:, 2 * D:3 * D],
        "gru_b_hn": bhh[:, 2 * D:3 * D],
        "lin0_w": w0f, "lin0_b": b0f,
        "lin1_w": w1f, "lin1_b": b1f,
        "lin2_w": raw["lin2_w"],   # tiny (D, 1) final matmul kept in f32
        "lin2_b": raw["lin2_b"],
    }


# ------------------------------- forward -----------------------------------------
@functools.partial(jax.jit, static_argnames="num_graphs")
def net_forward(raw, prep, x_nodes, edge_index, edge_attr, batch, num_graphs):
    n_nodes = x_nodes.shape[0]

    # embeddings (gather = glue)
    h0 = raw["node_emb"][x_nodes]                          # [N, D] f32
    _edge_embedding = raw["edge_emb"][edge_attr]           # computed, then discarded
    # (dropout_adj discards edge features and, with training=False, keeps all
    #  edges; F.dropout with training=False is identity.)

    # dense aggregation matrix for aggr='add': A[i, j] = #edges j -> i  (glue)
    src, dst = edge_index[0], edge_index[1]
    adj = jnp.zeros((n_nodes, n_nodes), jnp.float32).at[dst, src].add(1.0)

    # global_add_pool assignment matrix P[g, n] = 1 iff batch[n] == g
    pool = jax.nn.one_hot(batch, num_graphs, dtype=jnp.float32).T   # [G, N]

    # single fused VMEM-resident kernel: GGNN layers + pool + prediction head
    return fused_forward(prep, h0, adj, pool)


# --------------------------------- main -------------------------------------------
if __name__ == "__main__":
    key = jax.random.PRNGKey(0)
    k_param, k_x, k_e, k_ea = jax.random.split(key, 4)

    N_NODES, N_EDGES, N_GRAPHS = 16, 40, 2

    raw = init_raw_params(k_param)
    prep = prepare_params(raw)

    x_nodes = jax.random.randint(k_x, (N_NODES,), 0, NODE_VOCAB)          # node type ids
    edge_index = jax.random.randint(k_e, (2, N_EDGES), 0, N_NODES)        # [2, E]
    edge_attr = jax.random.randint(k_ea, (N_EDGES,), 0, EDGE_VOCAB)       # edge type ids
    batch = jnp.concatenate([jnp.zeros(N_NODES // 2, jnp.int32),
                             jnp.ones(N_NODES - N_NODES // 2, jnp.int32)])

    out = net_forward(raw, prep, x_nodes, edge_index, edge_attr, batch, N_GRAPHS)
    out = jax.block_until_ready(out)
    assert out.shape == (N_GRAPHS, NUM_TASKS)
    print("KERNEL_OK")
</pallas_src>

<mosaic_0001>
module attributes {stable_mosaic.version = 11 : i64} {
  func.func @_fused_ggnn_kernel(%arg0: i32, %arg1: memref<16x128xf32, #tpu.memory_space<vmem>>, %arg2: memref<16x16xf32, #tpu.memory_space<vmem>>, %arg3: memref<2x16xf32, #tpu.memory_space<vmem>>, %arg4: memref<4x128x128xf32, #tpu.memory_space<vmem>>, %arg5: memref<256x128xf32, #tpu.memory_space<vmem>>, %arg6: memref<256x128xf32, #tpu.memory_space<vmem>>, %arg7: memref<128x128xf32, #tpu.memory_space<vmem>>, %arg8: memref<128x128xf32, #tpu.memory_space<vmem>>, %arg9: memref<1x128xf32, #tpu.memory_space<vmem>>, %arg10: memref<1x128xf32, #tpu.memory_space<vmem>>, %arg11: memref<1x128xf32, #tpu.memory_space<vmem>>, %arg12: memref<1x128xf32, #tpu.memory_space<vmem>>, %arg13: memref<128x256xf32, #tpu.memory_space<vmem>>, %arg14: memref<1x256xf32, #tpu.memory_space<vmem>>, %arg15: memref<256x128xf32, #tpu.memory_space<vmem>>, %arg16: memref<1x128xf32, #tpu.memory_space<vmem>>, %arg17: memref<128x1xf32, #tpu.memory_space<vmem>>, %arg18: memref<1x1xf32, #tpu.memory_space<vmem>>, %arg19: memref<2x1xf32, #tpu.memory_space<vmem>>) attributes {dimension_semantics = [#tpu.dimension_semantics<arbitrary>], iteration_bounds = array<i64: 1>, scalar_prefetch = 0 : i64, scratch_operands = 0 : i64, tpu.core_type = #tpu.core_type<tc>, window_params = [{pipeline_mode = #tpu.pipeline_mode<synchronous>, transform_indices = @transform_0, window_bounds = array<i64: 16, 128>}, {pipeline_mode = #tpu.pipeline_mode<synchronous>, transform_indices = @transform_1, window_bounds = array<i64: 16, 16>}, {pipeline_mode = #tpu.pipeline_mode<synchronous>, transform_indices = @transform_2, window_bounds = array<i64: 2, 16>}, {pipeline_mode = #tpu.pipeline_mode<synchronous>, transform_indices = @transform_3, window_bounds = array<i64: 4, 128, 128>}, {pipeline_mode = #tpu.pipeline_mode<synchronous>, transform_indices = @transform_4, window_bounds = array<i64: 256, 128>}, {pipeline_mode = #tpu.pipeline_mode<synchronous>, transform_indices = @transform_5, window_bounds = array<i64: 256, 128>}, {pipeline_mode = #tpu.pipeline_mode<synchronous>, transform_indices = @transform_6, window_bounds = array<i64: 128, 128>}, {pipeline_mode = #tpu.pipeline_mode<synchronous>, transform_indices = @transform_7, window_bounds = array<i64: 128, 128>}, {pipeline_mode = #tpu.pipeline_mode<synchronous>, transform_indices = @transform_8, window_bounds = array<i64: 1, 128>}, {pipeline_mode = #tpu.pipeline_mode<synchronous>, transform_indices = @transform_9, window_bounds = array<i64: 1, 128>}, {pipeline_mode = #tpu.pipeline_mode<synchronous>, transform_indices = @transform_10, window_bounds = array<i64: 1, 128>}, {pipeline_mode = #tpu.pipeline_mode<synchronous>, transform_indices = @transform_11, window_bounds = array<i64: 1, 128>}, {pipeline_mode = #tpu.pipeline_mode<synchronous>, transform_indices = @transform_12, window_bounds = array<i64: 128, 256>}, {pipeline_mode = #tpu.pipeline_mode<synchronous>, transform_indices = @transform_13, window_bounds = array<i64: 1, 256>}, {pipeline_mode = #tpu.pipeline_mode<synchronous>, transform_indices = @transform_14, window_bounds = array<i64: 256, 128>}, {pipeline_mode = #tpu.pipeline_mode<synchronous>, transform_indices = @transform_15, window_bounds = array<i64: 1, 128>}, {pipeline_mode = #tpu.pipeline_mode<synchronous>, transform_indices = @transform_16, window_bounds = array<i64: 128, 1>}, {pipeline_mode = #tpu.pipeline_mode<synchronous>, transform_indices = @transform_17, window_bounds = array<i64: 1, 1>}, {pipeline_mode = #tpu.pipeline_mode<synchronous>, transform_indices = @transform_18, window_bounds = array<i64: 2, 1>}]} {
    %c0 = arith.constant 0 : index
    %c0_0 = arith.constant 0 : index
    %0 = vector.load %arg1[%c0, %c0_0] : memref<16x128xf32, #tpu.memory_space<vmem>>, vector<16x128xf32>
    %c0_1 = arith.constant 0 : index
    %c0_2 = arith.constant 0 : index
    %1 = vector.load %arg2[%c0_1, %c0_2] : memref<16x16xf32, #tpu.memory_space<vmem>>, vector<16x16xf32>
    %c0_3 = arith.constant 0 : index
    %c0_4 = arith.constant 0 : index
    %c0_5 = arith.constant 0 : index
    %2 = vector.load %arg4[%c0_3, %c0_4, %c0_5] : memref<4x128x128xf32, #tpu.memory_space<vmem>>, vector<1x128x128xf32>
    %3 = vector.shape_cast %2 : vector<1x128x128xf32> to vector<128x128xf32>
    %cst = arith.constant dense<0.000000e+00> : vector<16x128xf32>
    %4 = tpu.matmul %0, %3, %cst {dimension_numbers = #tpu.dot_dimension_numbers<[1], [0], [0], [1], [0, 0, 1, 1], [], []>} : vector<16x128xf32>, vector<128x128xf32>, vector<16x128xf32> -> vector<16x128xf32>
    %cst_6 = arith.constant dense<0.000000e+00> : vector<16x128xf32>
    %5 = tpu.matmul %1, %4, %cst_6 {dimension_numbers = #tpu.dot_dimension_numbers<[1], [0], [0], [1], [0, 0, 1, 1], [], []>} : vector<16x16xf32>, vector<16x128xf32>, vector<16x128xf32> -> vector<16x128xf32>
    %6 = tpu.concatenate %5, %0 in 1 : vector<16x128xf32>, vector<16x128xf32> -> vector<16x256xf32>
    %c0_7 = arith.constant 0 : index
    %c0_8 = arith.constant 0 : index
    %7 = vector.load %arg5[%c0_7, %c0_8] : memref<256x128xf32, #tpu.memory_space<vmem>>, vector<256x128xf32>
    %cst_9 = arith.constant dense<0.000000e+00> : vector<16x128xf32>
    %8 = tpu.matmul %6, %7, %cst_9 {dimension_numbers = #tpu.dot_dimension_numbers<[1], [0], [0], [1], [0, 0, 1, 1], [], []>} : vector<16x256xf32>, vector<256x128xf32>, vector<16x128xf32> -> vector<16x128xf32>
    %c0_10 = arith.constant 0 : index
    %c0_11 = arith.constant 0 : index
    %9 = vector.load %arg9[%c0_10, %c0_11] : memref<1x128xf32, #tpu.memory_space<vmem>>, vector<1x128xf32>
    %10 = vector.broadcast %9 : vector<1x128xf32> to vector<16x128xf32>
    %11 = arith.addf %8, %10 : vector<16x128xf32>
    %12 = arith.negf %11 : vector<16x128xf32>
    %13 = math.exp %12 : vector<16x128xf32>
    %cst_12 = arith.constant 1.000000e+00 : f32
    %14 = vector.broadcast %cst_12 : f32 to vector<16x128xf32>
    %15 = arith.addf %14, %13 : vector<16x128xf32>
    %16 = arith.divf %14, %15 : vector<16x128xf32>
    %c0_13 = arith.constant 0 : index
    %c0_14 = arith.constant 0 : index
    %17 = vector.load %arg6[%c0_13, %c0_14] : memref<256x128xf32, #tpu.memory_space<vmem>>, vector<256x128xf32>
    %cst_15 = arith.constant dense<0.000000e+00> : vector<16x128xf32>
    %18 = tpu.matmul %6, %17, %cst_15 {dimension_numbers = #tpu.dot_dimension_numbers<[1], [0], [0], [1], [0, 0, 1, 1], [], []>} : vector<16x256xf32>, vector<256x128xf32>, vector<16x128xf32> -> vector<16x128xf32>
    %c0_16 = arith.constant 0 : index
    %c0_17 = arith.constant 0 : index
    %19 = vector.load %arg10[%c0_16, %c0_17] : memref<1x128xf32, #tpu.memory_space<vmem>>, vector<1x128xf32>
    %20 = vector.broadcast %19 : vector<1x128xf32> to vector<16x128xf32>
    %21 = arith.addf %18, %20 : vector<16x128xf32>
    %22 = arith.negf %21 : vector<16x128xf32>
    %23 = math.exp %22 : vector<16x128xf32>
    %cst_18 = arith.constant 1.000000e+00 : f32
    %24 = vector.broadcast %cst_18 : f32 to vector<16x128xf32>
    %25 = arith.addf %24, %23 : vector<16x128xf32>
    %26 = arith.divf %24, %25 : vector<16x128xf32>
    %c0_19 = arith.constant 0 : index
    %c0_20 = arith.constant 0 : index
    %27 = vector.load %arg7[%c0_19, %c0_20] : memref<128x128xf32, #tpu.memory_space<vmem>>, vector<128x128xf32>
    %cst_21 = arith.constant dense<0.000000e+00> : vector<16x128xf32>
    %28 = tpu.matmul %5, %27, %cst_21 {dimension_numbers = #tpu.dot_dimension_numbers<[1], [0], [0], [1], [0, 0, 1, 1], [], []>} : vector<16x128xf32>, vector<128x128xf32>, vector<16x128xf32> -> vector<16x128xf32>
    %c0_22 = arith.constant 0 : index
    %c0_23 = arith.constant 0 : index
    %29 = vector.load %arg11[%c0_22, %c0_23] : memref<1x128xf32, #tpu.memory_space<vmem>>, vector<1x128xf32>
    %30 = vector.broadcast %29 : vector<1x128xf32> to vector<16x128xf32>
    %31 = arith.addf %28, %30 : vector<16x128xf32>
    %c0_24 = arith.constant 0 : index
    %c0_25 = arith.constant 0 : index
    %32 = vector.load %arg8[%c0_24, %c0_25] : memref<128x128xf32, #tpu.memory_space<vmem>>, vector<128x128xf32>
    %cst_26 = arith.constant dense<0.000000e+00> : vector<16x128xf32>
    %33 = tpu.matmul %0, %32, %cst_26 {dimension_numbers = #tpu.dot_dimension_numbers<[1], [0], [0], [1], [0, 0, 1, 1], [], []>} : vector<16x128xf32>, vector<128x128xf32>, vector<16x128xf32> -> vector<16x128xf32>
    %c0_27 = arith.constant 0 : index
    %c0_28 = arith.constant 0 : index
    %34 = vector.load %arg12[%c0_27, %c0_28] : memref<1x128xf32, #tpu.memory_space<vmem>>, vector<1x128xf32>
    %35 = vector.broadcast %34 : vector<1x128xf32> to vector<16x128xf32>
    %36 = arith.addf %33, %35 : vector<16x128xf32>
    %37 = arith.mulf %16, %36 : vector<16x128xf32>
    %38 = arith.addf %31, %37 : vector<16x128xf32>
    %39 = math.tanh %38 : vector<16x128xf32>
    %cst_29 = arith.constant 1.000000e+00 : f32
    %40 = vector.broadcast %cst_29 : f32 to vector<16x128xf32>
    %41 = arith.subf %40, %26 : vector<16x128xf32>
    %42 = arith.mulf %41, %39 : vector<16x128xf32>
    %43 = arith.mulf %26, %0 : vector<16x128xf32>
    %44 = arith.addf %42, %43 : vector<16x128xf32>
    %c1 = arith.constant 1 : index
    %c0_30 = arith.constant 0 : index
    %c0_31 = arith.constant 0 : index
    %45 = vector.load %arg4[%c1, %c0_30, %c0_31] : memref<4x128x128xf32, #tpu.memory_space<vmem>>, vector<1x128x128xf32>
    %46 = vector.shape_cast %45 : vector<1x128x128xf32> to vector<128x128xf32>
    %cst_32 = arith.constant dense<0.000000e+00> : vector<16x128xf32>
    %47 = tpu.matmul %44, %46, %cst_32 {dimension_numbers = #tpu.dot_dimension_numbers<[1], [0], [0], [1], [0, 0, 1, 1], [], []>} : vector<16x128xf32>, vector<128x128xf32>, vector<16x128xf32> -> vector<16x128xf32>
    %cst_33 = arith.constant dense<0.000000e+00> : vector<16x128xf32>
    %48 = tpu.matmul %1, %47, %cst_33 {dimension_numbers = #tpu.dot_dimension_numbers<[1], [0], [0], [1], [0, 0, 1, 1], [], []>} : vector<16x16xf32>, vector<16x128xf32>, vector<16x128xf32> -> vector<16x128xf32>
    %49 = tpu.concatenate %48, %44 in 1 : vector<16x128xf32>, vector<16x128xf32> -> vector<16x256xf32>
    %c0_34 = arith.constant 0 : index
    %c0_35 = arith.constant 0 : index
    %50 = vector.load %arg5[%c0_34, %c0_35] : memref<256x128xf32, #tpu.memory_space<vmem>>, vector<256x128xf32>
    %cst_36 = arith.constant dense<0.000000e+00> : vector<16x128xf32>
    %51 = tpu.matmul %49, %50, %cst_36 {dimension_numbers = #tpu.dot_dimension_numbers<[1], [0], [0], [1], [0, 0, 1, 1], [], []>} : vector<16x256xf32>, vector<256x128xf32>, vector<16x128xf32> -> vector<16x128xf32>
    %c0_37 = arith.constant 0 : index
    %c0_38 = arith.constant 0 : index
    %52 = vector.load %arg9[%c0_37, %c0_38] : memref<1x128xf32, #tpu.memory_space<vmem>>, vector<1x128xf32>
    %53 = vector.broadcast %52 : vector<1x128xf32> to vector<16x128xf32>
    %54 = arith.addf %51, %53 : vector<16x128xf32>
    %55 = arith.negf %54 : vector<16x128xf32>
    %56 = math.exp %55 : vector<16x128xf32>
    %cst_39 = arith.constant 1.000000e+00 : f32
    %57 = vector.broadcast %cst_39 : f32 to vector<16x128xf32>
    %58 = arith.addf %57, %56 : vector<16x128xf32>
    %59 = arith.divf %57, %58 : vector<16x128xf32>
    %c0_40 = arith.constant 0 : index
    %c0_41 = arith.constant 0 : index
    %60 = vector.load %arg6[%c0_40, %c0_41] : memref<256x128xf32, #tpu.memory_space<vmem>>, vector<256x128xf32>
    %cst_42 = arith.constant dense<0.000000e+00> : vector<16x128xf32>
    %61 = tpu.matmul %49, %60, %cst_42 {dimension_numbers = #tpu.dot_dimension_numbers<[1], [0], [0], [1], [0, 0, 1, 1], [], []>} : vector<16x256xf32>, vector<256x128xf32>, vector<16x128xf32> -> vector<16x128xf32>
    %c0_43 = arith.constant 0 : index
    %c0_44 = arith.constant 0 : index
    %62 = vector.load %arg10[%c0_43, %c0_44] : memref<1x128xf32, #tpu.memory_space<vmem>>, vector<1x128xf32>
    %63 = vector.broadcast %62 : vector<1x128xf32> to vector<16x128xf32>
    %64 = arith.addf %61, %63 : vector<16x128xf32>
    %65 = arith.negf %64 : vector<16x128xf32>
    %66 = math.exp %65 : vector<16x128xf32>
    %cst_45 = arith.constant 1.000000e+00 : f32
    %67 = vector.broadcast %cst_45 : f32 to vector<16x128xf32>
    %68 = arith.addf %67, %66 : vector<16x128xf32>
    %69 = arith.divf %67, %68 : vector<16x128xf32>
    %c0_46 = arith.constant 0 : index
    %c0_47 = arith.constant 0 : index
    %70 = vector.load %arg7[%c0_46, %c0_47] : memref<128x128xf32, #tpu.memory_space<vmem>>, vector<128x128xf32>
    %cst_48 = arith.constant dense<0.000000e+00> : vector<16x128xf32>
    %71 = tpu.matmul %48, %70, %cst_48 {dimension_numbers = #tpu.dot_dimension_numbers<[1], [0], [0], [1], [0, 0, 1, 1], [], []>} : vector<16x128xf32>, vector<128x128xf32>, vector<16x128xf32> -> vector<16x128xf32>
    %c0_49 = arith.constant 0 : index
    %c0_50 = arith.constant 0 : index
    %72 = vector.load %arg11[%c0_49, %c0_50] : memref<1x128xf32, #tpu.memory_space<vmem>>, vector<1x128xf32>
    %73 = vector.broadcast %72 : vector<1x128xf32> to vector<16x128xf32>
    %74 = arith.addf %71, %73 : vector<16x128xf32>
    %c0_51 = arith.constant 0 : index
    %c0_52 = arith.constant 0 : index
    %75 = vector.load %arg8[%c0_51, %c0_52] : memref<128x128xf32, #tpu.memory_space<vmem>>, vector<128x128xf32>
    %cst_53 = arith.constant dense<0.000000e+00> : vector<16x128xf32>
    %76 = tpu.matmul %44, %75, %cst_53 {dimension_numbers = #tpu.dot_dimension_numbers<[1], [0], [0], [1], [0, 0, 1, 1], [], []>} : vector<16x128xf32>, vector<128x128xf32>, vector<16x128xf32> -> vector<16x128xf32>
    %c0_54 = arith.constant 0 : index
    %c0_55 = arith.constant 0 : index
    %77 = vector.load %arg12[%c0_54, %c0_55] : memref<1x128xf32, #tpu.memory_space<vmem>>, vector<1x128xf32>
    %78 = vector.broadcast %77 : vector<1x128xf32> to vector<16x128xf32>
    %79 = arith.addf %76, %78 : vector<16x128xf32>
    %80 = arith.mulf %59, %79 : vector<16x128xf32>
    %81 = arith.addf %74, %80 : vector<16x128xf32>
    %82 = math.tanh %81 : vector<16x128xf32>
    %cst_56 = arith.constant 1.000000e+00 : f32
    %83 = vector.broadcast %cst_56 : f32 to vector<16x128xf32>
    %84 = arith.subf %83, %69 : vector<16x128xf32>
    %85 = arith.mulf %84, %82 : vector<16x128xf32>
    %86 = arith.mulf %69, %44 : vector<16x128xf32>
    %87 = arith.addf %85, %86 : vector<16x128xf32>
    %c2 = arith.constant 2 : index
    %c0_57 = arith.constant 0 : index
    %c0_58 = arith.constant 0 : index
    %88 = vector.load %arg4[%c2, %c0_57, %c0_58] : memref<4x128x128xf32, #tpu.memory_space<vmem>>, vector<1x128x128xf32>
    %89 = vector.shape_cast %88 : vector<1x128x128xf32> to vector<128x128xf32>
    %cst_59 = arith.constant dense<0.000000e+00> : vector<16x128xf32>
    %90 = tpu.matmul %87, %89, %cst_59 {dimension_numbers = #tpu.dot_dimension_numbers<[1], [0], [0], [1], [0, 0, 1, 1], [], []>} : vector<16x128xf32>, vector<128x128xf32>, vector<16x128xf32> -> vector<16x128xf32>
    %cst_60 = arith.constant dense<0.000000e+00> : vector<16x128xf32>
    %91 = tpu.matmul %1, %90, %cst_60 {dimension_numbers = #tpu.dot_dimension_numbers<[1], [0], [0], [1], [0, 0, 1, 1], [], []>} : vector<16x16xf32>, vector<16x128xf32>, vector<16x128xf32> -> vector<16x128xf32>
    %92 = tpu.concatenate %91, %87 in 1 : vector<16x128xf32>, vector<16x128xf32> -> vector<16x256xf32>
    %c0_61 = arith.constant 0 : index
    %c0_62 = arith.constant 0 : index
    %93 = vector.load %arg5[%c0_61, %c0_62] : memref<256x128xf32, #tpu.memory_space<vmem>>, vector<256x128xf32>
    %cst_63 = arith.constant dense<0.000000e+00> : vector<16x128xf32>
    %94 = tpu.matmul %92, %93, %cst_63 {dimension_numbers = #tpu.dot_dimension_numbers<[1], [0], [0], [1], [0, 0, 1, 1], [], []>} : vector<16x256xf32>, vector<256x128xf32>, vector<16x128xf32> -> vector<16x128xf32>
    %c0_64 = arith.constant 0 : index
    %c0_65 = arith.constant 0 : index
    %95 = vector.load %arg9[%c0_64, %c0_65] : memref<1x128xf32, #tpu.memory_space<vmem>>, vector<1x128xf32>
    %96 = vector.broadcast %95 : vector<1x128xf32> to vector<16x128xf32>
    %97 = arith.addf %94, %96 : vector<16x128xf32>
    %98 = arith.negf %97 : vector<16x128xf32>
    %99 = math.exp %98 : vector<16x128xf32>
    %cst_66 = arith.constant 1.000000e+00 : f32
    %100 = vector.broadcast %cst_66 : f32 to vector<16x128xf32>
    %101 = arith.addf %100, %99 : vector<16x128xf32>
    %102 = arith.divf %100, %101 : vector<16x128xf32>
    %c0_67 = arith.constant 0 : index
    %c0_68 = arith.constant 0 : index
    %103 = vector.load %arg6[%c0_67, %c0_68] : memref<256x128xf32, #tpu.memory_space<vmem>>, vector<256x128xf32>
    %cst_69 = arith.constant dense<0.000000e+00> : vector<16x128xf32>
    %104 = tpu.matmul %92, %103, %cst_69 {dimension_numbers = #tpu.dot_dimension_numbers<[1], [0], [0], [1], [0, 0, 1, 1], [], []>} : vector<16x256xf32>, vector<256x128xf32>, vector<16x128xf32> -> vector<16x128xf32>
    %c0_70 = arith.constant 0 : index
    %c0_71 = arith.constant 0 : index
    %105 = vector.load %arg10[%c0_70, %c0_71] : memref<1x128xf32, #tpu.memory_space<vmem>>, vector<1x128xf32>
    %106 = vector.broadcast %105 : vector<1x128xf32> to vector<16x128xf32>
    %107 = arith.addf %104, %106 : vector<16x128xf32>
    %108 = arith.negf %107 : vector<16x128xf32>
    %109 = math.exp %108 : vector<16x128xf32>
    %cst_72 = arith.constant 1.000000e+00 : f32
    %110 = vector.broadcast %cst_72 : f32 to vector<16x128xf32>
    %111 = arith.addf %110, %109 : vector<16x128xf32>
    %112 = arith.divf %110, %111 : vector<16x128xf32>
    %c0_73 = arith.constant 0 : index
    %c0_74 = arith.constant 0 : index
    %113 = vector.load %arg7[%c0_73, %c0_74] : memref<128x128xf32, #tpu.memory_space<vmem>>, vector<128x128xf32>
    %cst_75 = arith.constant dense<0.000000e+00> : vector<16x128xf32>
    %114 = tpu.matmul %91, %113, %cst_75 {dimension_numbers = #tpu.dot_dimension_numbers<[1], [0], [0], [1], [0, 0, 1, 1], [], []>} : vector<16x128xf32>, vector<128x128xf32>, vector<16x128xf32> -> vector<16x128xf32>
    %c0_76 = arith.constant 0 : index
    %c0_77 = arith.constant 0 : index
    %115 = vector.load %arg11[%c0_76, %c0_77] : memref<1x128xf32, #tpu.memory_space<vmem>>, vector<1x128xf32>
    %116 = vector.broadcast %115 : vector<1x128xf32> to vector<16x128xf32>
    %117 = arith.addf %114, %116 : vector<16x128xf32>
    %c0_78 = arith.constant 0 : index
    %c0_79 = arith.constant 0 : index
    %118 = vector.load %arg8[%c0_78, %c0_79] : memref<128x128xf32, #tpu.memory_space<vmem>>, vector<128x128xf32>
    %cst_80 = arith.constant dense<0.000000e+00> : vector<16x128xf32>
    %119 = tpu.matmul %87, %118, %cst_80 {dimension_numbers = #tpu.dot_dimension_numbers<[1], [0], [0], [1], [0, 0, 1, 1], [], []>} : vector<16x128xf32>, vector<128x128xf32>, vector<16x128xf32> -> vector<16x128xf32>
    %c0_81 = arith.constant 0 : index
    %c0_82 = arith.constant 0 : index
    %120 = vector.load %arg12[%c0_81, %c0_82] : memref<1x128xf32, #tpu.memory_space<vmem>>, vector<1x128xf32>
    %121 = vector.broadcast %120 : vector<1x128xf32> to vector<16x128xf32>
    %122 = arith.addf %119, %121 : vector<16x128xf32>
    %123 = arith.mulf %102, %122 : vector<16x128xf32>
    %124 = arith.addf %117, %123 : vector<16x128xf32>
    %125 = math.tanh %124 : vector<16x128xf32>
    %cst_83 = arith.constant 1.000000e+00 : f32
    %126 = vector.broadcast %cst_83 : f32 to vector<16x128xf32>
    %127 = arith.subf %126, %112 : vector<16x128xf32>
    %128 = arith.mulf %127, %125 : vector<16x128xf32>
    %129 = arith.mulf %112, %87 : vector<16x128xf32>
    %130 = arith.addf %128, %129 : vector<16x128xf32>
    %c3 = arith.constant 3 : index
    %c0_84 = arith.constant 0 : index
    %c0_85 = arith.constant 0 : index
    %131 = vector.load %arg4[%c3, %c0_84, %c0_85] : memref<4x128x128xf32, #tpu.memory_space<vmem>>, vector<1x128x128xf32>
    %132 = vector.shape_cast %131 : vector<1x128x128xf32> to vector<128x128xf32>
    %cst_86 = arith.constant dense<0.000000e+00> : vector<16x128xf32>
    %133 = tpu.matmul %130, %132, %cst_86 {dimension_numbers = #tpu.dot_dimension_numbers<[1], [0], [0], [1], [0, 0, 1, 1], [], []>} : vector<16x128xf32>, vector<128x128xf32>, vector<16x128xf32> -> vector<16x128xf32>
    %cst_87 = arith.constant dense<0.000000e+00> : vector<16x128xf32>
    %134 = tpu.matmul %1, %133, %cst_87 {dimension_numbers = #tpu.dot_dimension_numbers<[1], [0], [0], [1], [0, 0, 1, 1], [], []>} : vector<16x16xf32>, vector<16x128xf32>, vector<16x128xf32> -> vector<16x128xf32>
    %135 = tpu.concatenate %134, %130 in 1 : vector<16x128xf32>, vector<16x128xf32> -> vector<16x256xf32>
    %c0_88 = arith.constant 0 : index
    %c0_89 = arith.constant 0 : index
    %136 = vector.load %arg5[%c0_88, %c0_89] : memref<256x128xf32, #tpu.memory_space<vmem>>, vector<256x128xf32>
    %cst_90 = arith.constant dense<0.000000e+00> : vector<16x128xf32>
    %137 = tpu.matmul %135, %136, %cst_90 {dimension_numbers = #tpu.dot_dimension_numbers<[1], [0], [0], [1], [0, 0, 1, 1], [], []>} : vector<16x256xf32>, vector<256x128xf32>, vector<16x128xf32> -> vector<16x128xf32>
    %c0_91 = arith.constant 0 : index
    %c0_92 = arith.constant 0 : index
    %138 = vector.load %arg9[%c0_91, %c0_92] : memref<1x128xf32, #tpu.memory_space<vmem>>, vector<1x128xf32>
    %139 = vector.broadcast %138 : vector<1x128xf32> to vector<16x128xf32>
    %140 = arith.addf %137, %139 : vector<16x128xf32>
    %141 = arith.negf %140 : vector<16x128xf32>
    %142 = math.exp %141 : vector<16x128xf32>
    %cst_93 = arith.constant 1.000000e+00 : f32
    %143 = vector.broadcast %cst_93 : f32 to vector<16x128xf32>
    %144 = arith.addf %143, %142 : vector<16x128xf32>
    %145 = arith.divf %143, %144 : vector<16x128xf32>
    %c0_94 = arith.constant 0 : index
    %c0_95 = arith.constant 0 : index
    %146 = vector.load %arg6[%c0_94, %c0_95] : memref<256x128xf32, #tpu.memory_space<vmem>>, vector<256x128xf32>
    %cst_96 = arith.constant dense<0.000000e+00> : vector<16x128xf32>
    %147 = tpu.matmul %135, %146, %cst_96 {dimension_numbers = #tpu.dot_dimension_numbers<[1], [0], [0], [1], [0, 0, 1, 1], [], []>} : vector<16x256xf32>, vector<256x128xf32>, vector<16x128xf32> -> vector<16x128xf32>
    %c0_97 = arith.constant 0 : index
    %c0_98 = arith.constant 0 : index
    %148 = vector.load %arg10[%c0_97, %c0_98] : memref<1x128xf32, #tpu.memory_space<vmem>>, vector<1x128xf32>
    %149 = vector.broadcast %148 : vector<1x128xf32> to vector<16x128xf32>
    %150 = arith.addf %147, %149 : vector<16x128xf32>
    %151 = arith.negf %150 : vector<16x128xf32>
    %152 = math.exp %151 : vector<16x128xf32>
    %cst_99 = arith.constant 1.000000e+00 : f32
    %153 = vector.broadcast %cst_99 : f32 to vector<16x128xf32>
    %154 = arith.addf %153, %152 : vector<16x128xf32>
    %155 = arith.divf %153, %154 : vector<16x128xf32>
    %c0_100 = arith.constant 0 : index
    %c0_101 = arith.constant 0 : index
    %156 = vector.load %arg7[%c0_100, %c0_101] : memref<128x128xf32, #tpu.memory_space<vmem>>, vector<128x128xf32>
    %cst_102 = arith.constant dense<0.000000e+00> : vector<16x128xf32>
    %157 = tpu.matmul %134, %156, %cst_102 {dimension_numbers = #tpu.dot_dimension_numbers<[1], [0], [0], [1], [0, 0, 1, 1], [], []>} : vector<16x128xf32>, vector<128x128xf32>, vector<16x128xf32> -> vector<16x128xf32>
    %c0_103 = arith.constant 0 : index
    %c0_104 = arith.constant 0 : index
    %158 = vector.load %arg11[%c0_103, %c0_104] : memref<1x128xf32, #tpu.memory_space<vmem>>, vector<1x128xf32>
    %159 = vector.broadcast %158 : vector<1x128xf32> to vector<16x128xf32>
    %160 = arith.addf %157, %159 : vector<16x128xf32>
    %c0_105 = arith.constant 0 : index
    %c0_106 = arith.constant 0 : index
    %161 = vector.load %arg8[%c0_105, %c0_106] : memref<128x128xf32, #tpu.memory_space<vmem>>, vector<128x128xf32>
    %cst_107 = arith.constant dense<0.000000e+00> : vector<16x128xf32>
    %162 = tpu.matmul %130, %161, %cst_107 {dimension_numbers = #tpu.dot_dimension_numbers<[1], [0], [0], [1], [0, 0, 1, 1], [], []>} : vector<16x128xf32>, vector<128x128xf32>, vector<16x128xf32> -> vector<16x128xf32>
    %c0_108 = arith.constant 0 : index
    %c0_109 = arith.constant 0 : index
    %163 = vector.load %arg12[%c0_108, %c0_109] : memref<1x128xf32, #tpu.memory_space<vmem>>, vector<1x128xf32>
    %164 = vector.broadcast %163 : vector<1x128xf32> to vector<16x128xf32>
    %165 = arith.addf %162, %164 : vector<16x128xf32>
    %166 = arith.mulf %145, %165 : vector<16x128xf32>
    %167 = arith.addf %160, %166 : vector<16x128xf32>
    %168 = math.tanh %167 : vector<16x128xf32>
    %cst_110 = arith.constant 1.000000e+00 : f32
    %169 = vector.broadcast %cst_110 : f32 to vector<16x128xf32>
    %170 = arith.subf %169, %155 : vector<16x128xf32>
    %171 = arith.mulf %170, %168 : vector<16x128xf32>
    %172 = arith.mulf %155, %130 : vector<16x128xf32>
    %173 = arith.addf %171, %172 : vector<16x128xf32>
    %c0_111 = arith.constant 0 : index
    %c0_112 = arith.constant 0 : index
    %174 = vector.load %arg3[%c0_111, %c0_112] : memref<2x16xf32, #tpu.memory_space<vmem>>, vector<2x16xf32>
    %cst_113 = arith.constant dense<0.000000e+00> : vector<2x128xf32>
    %175 = tpu.matmul %174, %173, %cst_113 {dimension_numbers = #tpu.dot_dimension_numbers<[1], [0], [0], [1], [0, 0, 1, 1], [], []>} : vector<2x16xf32>, vector<16x128xf32>, vector<2x128xf32> -> vector<2x128xf32>
    %c0_114 = arith.constant 0 : index
    %c0_115 = arith.constant 0 : index
    %176 = vector.load %arg13[%c0_114, %c0_115] : memref<128x256xf32, #tpu.memory_space<vmem>>, vector<128x256xf32>
    %cst_116 = arith.constant dense<0.000000e+00> : vector<2x256xf32>
    %177 = tpu.matmul %175, %176, %cst_116 {dimension_numbers = #tpu.dot_dimension_numbers<[1], [0], [0], [1], [0, 0, 1, 1], [], []>} : vector<2x128xf32>, vector<128x256xf32>, vector<2x256xf32> -> vector<2x256xf32>
    %c0_117 = arith.constant 0 : index
    %c0_118 = arith.constant 0 : index
    %178 = vector.load %arg14[%c0_117, %c0_118] : memref<1x256xf32, #tpu.memory_space<vmem>>, vector<1x256xf32>
    %179 = vector.broadcast %178 : vector<1x256xf32> to vector<2x256xf32>
    %180 = arith.addf %177, %179 : vector<2x256xf32>
    %cst_119 = arith.constant 0.000000e+00 : f32
    %181 = vector.broadcast %cst_119 : f32 to vector<2x256xf32>
    %182 = arith.maximumf %180, %181 : vector<2x256xf32>
    %c0_120 = arith.constant 0 : index
    %c0_121 = arith.constant 0 : index
    %183 = vector.load %arg15[%c0_120, %c0_121] : memref<256x128xf32, #tpu.memory_space<vmem>>, vector<256x128xf32>
    %cst_122 = arith.constant dense<0.000000e+00> : vector<2x128xf32>
    %184 = tpu.matmul %182, %183, %cst_122 {dimension_numbers = #tpu.dot_dimension_numbers<[1], [0], [0], [1], [0, 0, 1, 1], [], []>} : vector<2x256xf32>, vector<256x128xf32>, vector<2x128xf32> -> vector<2x128xf32>
    %c0_123 = arith.constant 0 : index
    %c0_124 = arith.constant 0 : index
    %185 = vector.load %arg16[%c0_123, %c0_124] : memref<1x128xf32, #tpu.memory_space<vmem>>, vector<1x128xf32>
    %186 = vector.broadcast %185 : vector<1x128xf32> to vector<2x128xf32>
    %187 = arith.addf %184, %186 : vector<2x128xf32>
    %cst_125 = arith.constant 0.000000e+00 : f32
    %188 = vector.broadcast %cst_125 : f32 to vector<2x128xf32>
    %189 = arith.maximumf %187, %188 : vector<2x128xf32>
    %c0_126 = arith.constant 0 : index
    %c0_127 = arith.constant 0 : index
    %190 = vector.load %arg17[%c0_126, %c0_127] : memref<128x1xf32, #tpu.memory_space<vmem>>, vector<128x1xf32>
    %cst_128 = arith.constant dense<0.000000e+00> : vector<2x1xf32>
    %191 = tpu.matmul %189, %190, %cst_128 {dimension_numbers = #tpu.dot_dimension_numbers<[1], [0], [0], [1], [0, 0, 1, 1], [], []>} : vector<2x128xf32>, vector<128x1xf32>, vector<2x1xf32> -> vector<2x1xf32>
    %c0_129 = arith.constant 0 : index
    %c0_130 = arith.constant 0 : index
    %192 = vector.load %arg18[%c0_129, %c0_130] : memref<1x1xf32, #tpu.memory_space<vmem>>, vector<1x1xf32>
    %193 = vector.broadcast %192 : vector<1x1xf32> to vector<2x1xf32>
    %194 = arith.addf %191, %193 : vector<2x1xf32>
    %c0_131 = arith.constant 0 : index
    %c0_132 = arith.constant 0 : index
    %195 = vector.load %arg19[%c0_131, %c0_132] : memref<2x1xf32, #tpu.memory_space<vmem>>, vector<2x1xf32>
    tpu.vector_store %arg19[%c0_131, %c0_132], %194 {strides = array<i32>} : memref<2x1xf32, #tpu.memory_space<vmem>>, vector<2x1xf32>,
    return
  }
  func.func @transform_0(%arg0: i32) -> (i32, i32) {
    %c0_i32 = arith.constant 0 : i32
    %c0_i32_0 = arith.constant 0 : i32
    %c0_i32_1 = arith.constant 0 : i32
    return %c0_i32, %c0_i32_0 : i32, i32
  }
  func.func @transform_1(%arg0: i32) -> (i32, i32) {
    %c0_i32 = arith.constant 0 : i32
    %c0_i32_0 = arith.constant 0 : i32
    %c0_i32_1 = arith.constant 0 : i32
    return %c0_i32, %c0_i32_0 : i32, i32
  }
  func.func @transform_2(%arg0: i32) -> (i32, i32) {
    %c0_i32 = arith.constant 0 : i32
    %c0_i32_0 = arith.constant 0 : i32
    %c0_i32_1 = arith.constant 0 : i32
    return %c0_i32, %c0_i32_0 : i32, i32
  }
  func.func @transform_3(%arg0: i32) -> (i32, i32, i32) {
    %c0_i32 = arith.constant 0 : i32
    %c0_i32_0 = arith.constant 0 : i32
    %c0_i32_1 = arith.constant 0 : i32
    %c0_i32_2 = arith.constant 0 : i32
    return %c0_i32, %c0_i32_0, %c0_i32_1 : i32, i32, i32
  }
  func.func @transform_4(%arg0: i32) -> (i32, i32) {
    %c0_i32 = arith.constant 0 : i32
    %c0_i32_0 = arith.constant 0 : i32
    %c0_i32_1 = arith.constant 0 : i32
    return %c0_i32, %c0_i32_0 : i32, i32
  }
  func.func @transform_5(%arg0: i32) -> (i32, i32) {
    %c0_i32 = arith.constant 0 : i32
    %c0_i32_0 = arith.constant 0 : i32
    %c0_i32_1 = arith.constant 0 : i32
    return %c0_i32, %c0_i32_0 : i32, i32
  }
  func.func @transform_6(%arg0: i32) -> (i32, i32) {
    %c0_i32 = arith.constant 0 : i32
    %c0_i32_0 = arith.constant 0 : i32
    %c0_i32_1 = arith.constant 0 : i32
    return %c0_i32, %c0_i32_0 : i32, i32
  }
  func.func @transform_7(%arg0: i32) -> (i32, i32) {
    %c0_i32 = arith.constant 0 : i32
    %c0_i32_0 = arith.constant 0 : i32
    %c0_i32_1 = arith.constant 0 : i32
    return %c0_i32, %c0_i32_0 : i32, i32
  }
  func.func @transform_8(%arg0: i32) -> (i32, i32) {
    %c0_i32 = arith.constant 0 : i32
    %c0_i32_0 = arith.constant 0 : i32
    %c0_i32_1 = arith.constant 0 : i32
    return %c0_i32, %c0_i32_0 : i32, i32
  }
  func.func @transform_9(%arg0: i32) -> (i32, i32) {
    %c0_i32 = arith.constant 0 : i32
    %c0_i32_0 = arith.constant 0 : i32
    %c0_i32_1 = arith.constant 0 : i32
    return %c0_i32, %c0_i32_0 : i32, i32
  }
  func.func @transform_10(%arg0: i32) -> (i32, i32) {
    %c0_i32 = arith.constant 0 : i32
    %c0_i32_0 = arith.constant 0 : i32
    %c0_i32_1 = arith.constant 0 : i32
    return %c0_i32, %c0_i32_0 : i32, i32
  }
  func.func @transform_11(%arg0: i32) -> (i32, i32) {
    %c0_i32 = arith.constant 0 : i32
    %c0_i32_0 = arith.constant 0 : i32
    %c0_i32_1 = arith.constant 0 : i32
    return %c0_i32, %c0_i32_0 : i32, i32
  }
  func.func @transform_12(%arg0: i32) -> (i32, i32) {
    %c0_i32 = arith.constant 0 : i32
    %c0_i32_0 = arith.constant 0 : i32
    %c0_i32_1 = arith.constant 0 : i32
    return %c0_i32, %c0_i32_0 : i32, i32
  }
  func.func @transform_13(%arg0: i32) -> (i32, i32) {
    %c0_i32 = arith.constant 0 : i32
    %c0_i32_0 = arith.constant 0 : i32
    %c0_i32_1 = arith.constant 0 : i32
    return %c0_i32, %c0_i32_0 : i32, i32
  }
  func.func @transform_14(%arg0: i32) -> (i32, i32) {
    %c0_i32 = arith.constant 0 : i32
    %c0_i32_0 = arith.constant 0 : i32
    %c0_i32_1 = arith.constant 0 : i32
    return %c0_i32, %c0_i32_0 : i32, i32
  }
  func.func @transform_15(%arg0: i32) -> (i32, i32) {
    %c0_i32 = arith.constant 0 : i32
    %c0_i32_0 = arith.constant 0 : i32
    %c0_i32_1 = arith.constant 0 : i32
    return %c0_i32, %c0_i32_0 : i32, i32
  }
  func.func @transform_16(%arg0: i32) -> (i32, i32) {
    %c0_i32 = arith.constant 0 : i32
    %c0_i32_0 = arith.constant 0 : i32
    %c0_i32_1 = arith.constant 0 : i32
    return %c0_i32, %c0_i32_0 : i32, i32
  }
  func.func @transform_17(%arg0: i32) -> (i32, i32) {
    %c0_i32 = arith.constant 0 : i32
    %c0_i32_0 = arith.constant 0 : i32
    %c0_i32_1 = arith.constant 0 : i32
    return %c0_i32, %c0_i32_0 : i32, i32
  }
  func.func @transform_18(%arg0: i32) -> (i32, i32) {
    %c0_i32 = arith.constant 0 : i32
    %c0_i32_0 = arith.constant 0 : i32
    %c0_i32_1 = arith.constant 0 : i32
    return %c0_i32, %c0_i32_0 : i32, i32
  }
}

</mosaic_0001>

<llo_original>
// kernel: net_forward.1
$region0: #{net_forward.1}
  #allocation0 [shape = 'u32[]', space=smem, size = 0x4, offset = 0x4, fixed_abs, tag = 'smem constant byte address 0x4 - core index']
  #allocation1 [shape = 'u32[144,128]{1,0:T(1,128)}', space=vmem, size = 0x12000, scoped, tag = 'internal scratch']
  #allocation2 [shape = 'f32[1,1]{1,0:T(1,128)S(1)}', space=vmem, size = 0x200, scoped, tag = 'scoped memory for net_forward.1']
  %s0 = inlined_call_operand.vmem [shape: f32[16,128], index: 0, kind: input, shape index: {}]
  %s1 = inlined_call_operand.vmem [shape: f32[16,16], index: 1, kind: input, shape index: {}]
  %s2 = inlined_call_operand.vmem [shape: f32[2,16], index: 2, kind: input, shape index: {}]
  %s3 = inlined_call_operand.vmem [shape: f32[4,128,128], index: 3, kind: input, shape index: {}]
  %s4 = inlined_call_operand.vmem [shape: f32[256,128], index: 4, kind: input, shape index: {}]
  %s5 = inlined_call_operand.vmem [shape: f32[256,128], index: 5, kind: input, shape index: {}]
  %s6 = inlined_call_operand.vmem [shape: f32[128,128], index: 6, kind: input, shape index: {}]
  %s7 = inlined_call_operand.vmem [shape: f32[128,128], index: 7, kind: input, shape index: {}]
  %s8 = inlined_call_operand.vmem [shape: f32[1,128], index: 8, kind: input, shape index: {}]
  %s9 = inlined_call_operand.vmem [shape: f32[1,128], index: 9, kind: input, shape index: {}]
  %s10 = inlined_call_operand.vmem [shape: f32[1,128], index: 10, kind: input, shape index: {}]
  %s11 = inlined_call_operand.vmem [shape: f32[1,128], index: 11, kind: input, shape index: {}]
  %s12 = inlined_call_operand.vmem [shape: f32[128,256], index: 12, kind: input, shape index: {}]
  %s13 = inlined_call_operand.vmem [shape: f32[1,256], index: 13, kind: input, shape index: {}]
  %s14 = inlined_call_operand.vmem [shape: f32[256,128], index: 14, kind: input, shape index: {}]
  %s15 = inlined_call_operand.vmem [shape: f32[1,128], index: 15, kind: input, shape index: {}]
  %s16 = inlined_call_operand.vmem [shape: f32[128,1], index: 16, kind: input, shape index: {}]
  %s17 = inlined_call_operand.<no memory space> [shape: f32[1,1], index: 17, kind: input, shape index: {}]
  %s18 = inlined_call_operand.vmem [shape: f32[2,1], index: 18, kind: output, shape index: {}]
  %s19 = sld [smem:[#allocation0]]
  $region82: #{net_forward.1} parent=0
    _
  %s21 = ssub.s32 1, %s19
  %s22 = scalar_select 0, %s21, %s19
  %v23 = vstv %s17
  %24 = vst [vmem:[#allocation2] sm:$0x1] %v23
  // Predicated region
  $region2: #{net_forward.1} parent=0 // pred_check
    _
  $region3: #{net_forward.1} parent=0 // pred_check_branch
    %26 = sbr.rel (0) target = $region5
  $region4: #{net_forward.1} parent=0 // pred_region
    _
  $region5: #{net_forward.1} parent=0 // pred_fallthru
    _
  // Predicated region
  $region6: #{net_forward.1} parent=0 // pred_check
    _
  $region7: #{net_forward.1} parent=0 // pred_check_branch
    %28 = sbr.rel (0) target = $region9
  $region8: #{net_forward.1} parent=0 // pred_region
    _
  $region9: #{net_forward.1} parent=0 // pred_fallthru
    _
  // Predicated region
  $region10: #{net_forward.1} parent=0 // pred_check
    _
  $region11: #{net_forward.1} parent=0 // pred_check_branch
    %30 = sbr.rel (0) target = $region13
  $region12: #{net_forward.1} parent=0 // pred_region
    _
  $region13: #{net_forward.1} parent=0 // pred_fallthru
    _
  // Predicated region
  $region14: #{net_forward.1} parent=0 // pred_check
    _
  $region15: #{net_forward.1} parent=0 // pred_check_branch
    %32 = sbr.rel (0) target = $region17
  $region16: #{net_forward.1} parent=0 // pred_region
    _
  $region17: #{net_forward.1} parent=0 // pred_fallthru
    _
  // Predicated region
  $region18: #{net_forward.1} parent=0 // pred_check
    _
  $region19: #{net_forward.1} parent=0 // pred_check_branch
    %34 = sbr.rel (0) target = $region21
  $region20: #{net_forward.1} parent=0 // pred_region
    _
  $region21: #{net_forward.1} parent=0 // pred_fallthru
    _
  // Predicated region
  $region22: #{net_forward.1} parent=0 // pred_check
    _
  $region23: #{net_forward.1} parent=0 // pred_check_branch
    %36 = sbr.rel (0) target = $region25
  $region24: #{net_forward.1} parent=0 // pred_region
    _
  $region25: #{net_forward.1} parent=0 // pred_fallthru
    _
  // Predicated region
  $region26: #{net_forward.1} parent=0 // pred_check
    _
  $region27: #{net_forward.1} parent=0 // pred_check_branch
    %38 = sbr.rel (0) target = $region29
  $region28: #{net_forward.1} parent=0 // pred_region
    _
  $region29: #{net_forward.1} parent=0 // pred_fallthru
    _
  // Predicated region
  $region30: #{net_forward.1} parent=0 // pred_check
    _
  $region31: #{net_forward.1} parent=0 // pred_check_branch
    %40 = sbr.rel (0) target = $region33
  $region32: #{net_forward.1} parent=0 // pred_region
    _
  $region33: #{net_forward.1} parent=0 // pred_fallthru
    _
  // Predicated region
  $region34: #{net_forward.1} parent=0 // pred_check
    _
  $region35: #{net_forward.1} parent=0 // pred_check_branch
    %42 = sbr.rel (0) target = $region37
  $region36: #{net_forward.1} parent=0 // pred_region
    _
  $region37: #{net_forward.1} parent=0 // pred_fallthru
    _
  // Predicated region
  $region38: #{net_forward.1} parent=0 // pred_check
    _
  $region39: #{net_forward.1} parent=0 // pred_check_branch
    %44 = sbr.rel (0) target = $region41
  $region40: #{net_forward.1} parent=0 // pred_region
    _
  $region41: #{net_forward.1} parent=0 // pred_fallthru
    _
  // Predicated region
  $region42: #{net_forward.1} parent=0 // pred_check
    _
  $region43: #{net_forward.1} parent=0 // pred_check_branch
    %46 = sbr.rel (0) target = $region45
  $region44: #{net_forward.1} parent=0 // pred_region
    _
  $region45: #{net_forward.1} parent=0 // pred_fallthru
    _
  // Predicated region
  $region46: #{net_forward.1} parent=0 // pred_check
    _
  $region47: #{net_forward.1} parent=0 // pred_check_branch
    %48 = sbr.rel (0) target = $region49
  $region48: #{net_forward.1} parent=0 // pred_region
    _
  $region49: #{net_forward.1} parent=0 // pred_fallthru
    _
  // Predicated region
  $region50: #{net_forward.1} parent=0 // pred_check
    _
  $region51: #{net_forward.1} parent=0 // pred_check_branch
    %50 = sbr.rel (0) target = $region53
  $region52: #{net_forward.1} parent=0 // pred_region
    _
  $region53: #{net_forward.1} parent=0 // pred_fallthru
    _
  // Predicated region
  $region54: #{net_forward.1} parent=0 // pred_check
    _
  $region55: #{net_forward.1} parent=0 // pred_check_branch
    %52 = sbr.rel (0) target = $region57
  $region56: #{net_forward.1} parent=0 // pred_region
    _
  $region57: #{net_forward.1} parent=0 // pred_fallthru
    _
  // Predicated region
  $region58: #{net_forward.1} parent=0 // pred_check
    _
  $region59: #{net_forward.1} parent=0 // pred_check_branch
    %54 = sbr.rel (0) target = $region61
  $region60: #{net_forward.1} parent=0 // pred_region
    _
  $region61: #{net_forward.1} parent=0 // pred_fallthru
    _
  // Predicated region
  $region62: #{net_forward.1} parent=0 // pred_check
    _
  $region63: #{net_forward.1} parent=0 // pred_check_branch
    %56 = sbr.rel (0) target = $region65
  $region64: #{net_forward.1} parent=0 // pred_region
    _
  $region65: #{net_forward.1} parent=0 // pred_fallthru
    _
  // Predicated region
  $region66: #{net_forward.1} parent=0 // pred_check
    _
  $region67: #{net_forward.1} parent=0 // pred_check_branch
    %58 = sbr.rel (0) target = $region69
  $region68: #{net_forward.1} parent=0 // pred_region
    _
  $region69: #{net_forward.1} parent=0 // pred_fallthru
    _
  // Predicated region
  $region70: #{net_forward.1} parent=0 // pred_check
    _
  $region71: #{net_forward.1} parent=0 // pred_check_branch
    %60 = sbr.rel (0) target = $region73
  $region72: #{net_forward.1} parent=0 // pred_region
    _
  $region73: #{net_forward.1} parent=0 // pred_fallthru
    _
  %v61 = vld [vmem:[%s0] sm:$0xff]
  %v62 = vld [vmem:[%s0 + $0x8] sm:$0xff]
  %v63 = vld [vmem:[%s1] sm:$0xff]
  %v64 = vld [vmem:[%s1 + $0x8] sm:$0xff]
  %v65 = vld [vmem:[%s3] sm:$0xff]
  %v66 = vld [vmem:[%s3 + $0x8] sm:$0xff]
  %v67 = vld [vmem:[%s3 + $0x10] sm:$0xff]
  %v68 = vld [vmem:[%s3 + $0x18] sm:$0xff]
  %v69 = vld [vmem:[%s3 + $0x20] sm:$0xff]
  %v70 = vld [vmem:[%s3 + $0x28] sm:$0xff]
  %v71 = vld [vmem:[%s3 + $0x30] sm:$0xff]
  %v72 = vld [vmem:[%s3 + $0x38] sm:$0xff]
  %v73 = vld [vmem:[%s3 + $0x40] sm:$0xff]
  %v74 = vld [vmem:[%s3 + $0x48] sm:$0xff]
  %v75 = vld [vmem:[%s3 + $0x50] sm:$0xff]
  %v76 = vld [vmem:[%s3 + $0x58] sm:$0xff]
  %v77 = vld [vmem:[%s3 + $0x60] sm:$0xff]
  %v78 = vld [vmem:[%s3 + $0x68] sm:$0xff]
  %v79 = vld [vmem:[%s3 + $0x70] sm:$0xff]
  %v80 = vld [vmem:[%s3 + $0x78] sm:$0xff]
  %81 = vmatprep.subr.mxu0 0.0
  %82 = vmatpush1.msra.mxu0 %v65
  %83 = vmatprep.subr.mxu0 0.0
  %84 = vmatpush1.msra.mxu0 %v66
  %85 = vmatprep.subr.mxu0 0.0
  %86 = vmatpush1.msra.mxu0 %v67
  %87 = vmatprep.subr.mxu0 0.0
  %88 = vmatpush1.msra.mxu0 %v68
  %89 = vmatprep.subr.mxu0 0.0
  %90 = vmatpush1.msra.mxu0 %v69
  %91 = vmatprep.subr.mxu0 0.0
  %92 = vmatpush1.msra.mxu0 %v70
  %93 = vmatprep.subr.mxu0 0.0
  %94 = vmatpush1.msra.mxu0 %v71
  %95 = vmatprep.subr.mxu0 0.0
  %96 = vmatpush1.msra.mxu0 %v72
  %97 = vmatprep.subr.mxu0 0.0
  %98 = vmatpush1.msra.mxu0 %v73
  %99 = vmatprep.subr.mxu0 0.0
  %100 = vmatpush1.msra.mxu0 %v74
  %101 = vmatprep.subr.mxu0 0.0
  %102 = vmatpush1.msra.mxu0 %v75
  %103 = vmatprep.subr.mxu0 0.0
  %104 = vmatpush1.msra.mxu0 %v76
  %105 = vmatprep.subr.mxu0 0.0
  %106 = vmatpush1.msra.mxu0 %v77
  %107 = vmatprep.subr.mxu0 0.0
  %108 = vmatpush1.msra.mxu0 %v78
  %109 = vmatprep.subr.mxu0 0.0
  %110 = vmatpush1.msra.mxu0 %v79
  %111 = vmatprep.subr.mxu0 0.0
  %112 = vmatpush1.msra.mxu0 %v80
  %113 = vmatprep.subr.mxu0 0.0
  %114 = vmatpush1.msra.mxu0 0.0
  %115 = vmatprep.subr.mxu0 0.0
  %116 = vmatpush1.msra.mxu0 0.0
  %117 = vmatprep.subr.mxu0 0.0
  %118 = vmatpush1.msra.mxu0 0.0
  %119 = vmatprep.subr.mxu0 0.0
  %120 = vmatpush1.msra.mxu0 0.0
  %121 = vmatprep.subr.mxu0 0.0
  %122 = vmatpush1.msra.mxu0 0.0
  %123 = vmatprep.subr.mxu0 0.0
  %124 = vmatpush1.msra.mxu0 0.0
  %125 = vmatprep.subr.mxu0 0.0
  %126 = vmatpush1.msra.mxu0 0.0
  %127 = vmatprep.subr.mxu0 0.0
  %128 = vmatpush1.msra.mxu0 0.0
  %129 = vmatprep.subr.mxu0 0.0
  %130 = vmatpush1.msra.mxu0 0.0
  %131 = vmatprep.subr.mxu0 0.0
  %132 = vmatpush1.msra.mxu0 0.0
  %133 = vmatprep.subr.mxu0 0.0
  %134 = vmatpush1.msra.mxu0 0.0
  %135 = vmatprep.subr.mxu0 0.0
  %136 = vmatpush1.msra.mxu0 0.0
  %137 = vmatprep.subr.mxu0 0.0
  %138 = vmatpush1.msra.mxu0 0.0
  %139 = vmatprep.subr.mxu0 0.0
  %140 = vmatpush1.msra.mxu0 0.0
  %141 = vmatprep.subr.mxu0 0.0
  %142 = vmatpush1.msra.mxu0 0.0
  %143 = vmatprep.subr.mxu0 0.0
  %144 = vmatpush1.msra.mxu0 0.0
  %145 = vmatprep.mubr.f32.mxu0 0.0
  %146 = vmatmul.mubr.f32.gmra.mrb[0].mxu0 %v61
  %v147 = vpop.f32.mrb[0].mxu0
  %v148 = vadd.f32 0.0, %v147
  %v149 = vpop.f32.mrb[0].mxu0
  %150 = vmatprep.mubr.f32.mxu0 0.0
  %151 = vmatmul.mubr.f32.gmra.mrb[0].mxu0 %v62
  %v152 = vpop.f32.mrb[0].mxu0
  %v153 = vadd.f32 0.0, %v152
  %v154 = vpop.f32.mrb[0].mxu0
  %155 = vdwg.mxu0
  %vm156 = vcmask 130048
  %v158 = vsel %vm156, %v63, 0
  %v161 = vsel %vm156, %v64, 0
  %163 = vmatprep.subr.mxu0 0.0
  %164 = vmatpush1.msra.mxu0 %v148
  %165 = vmatprep.subr.mxu0 0.0
  %166 = vmatpush1.msra.mxu0 %v153
  %167 = vmatprep.subr.mxu0 0.0
  %168 = vmatpush1.msra.mxu0 0.0
  %169 = vmatprep.subr.mxu0 0.0
  %170 = vmatpush1.msra.mxu0 0.0
  %171 = vmatprep.subr.mxu0 0.0
  %172 = vmatpush1.msra.mxu0 0.0
  %173 = vmatprep.subr.mxu0 0.0
  %174 = vmatpush1.msra.mxu0 0.0
  %175 = vmatprep.subr.mxu0 0.0
  %176 = vmatpush1.msra.mxu0 0.0
  %177 = vmatprep.subr.mxu0 0.0
  %178 = vmatpush1.msra.mxu0 0.0
  %179 = vmatprep.subr.mxu0 0.0
  %180 = vmatpush1.msra.mxu0 0.0
  %181 = vmatprep.subr.mxu0 0.0
  %182 = vmatpush1.msra.mxu0 0.0
  %183 = vmatprep.subr.mxu0 0.0
  %184 = vmatpush1.msra.mxu0 0.0
  %185 = vmatprep.subr.mxu0 0.0
  %186 = vmatpush1.msra.mxu0 0.0
  %187 = vmatprep.subr.mxu0 0.0
  %188 = vmatpush1.msra.mxu0 0.0
  %189 = vmatprep.subr.mxu0 0.0
  %190 = vmatpush1.msra.mxu0 0.0
  %191 = vmatprep.subr.mxu0 0.0
  %192 = vmatpush1.msra.mxu0 0.0
  %193 = vmatprep.subr.mxu0 0.0
  %194 = vmatpush1.msra.mxu0 0.0
  %195 = vmatprep.subr.mxu0 0.0
  %196 = vmatpush1.msra.mxu0 0.0
  %197 = vmatprep.subr.mxu0 0.0
  %198 = vmatpush1.msra.mxu0 0.0
  %199 = vmatprep.subr.mxu0 0.0
  %200 = vmatpush1.msra.mxu0 0.0
  %201 = vmatprep.subr.mxu0 0.0
  %202 = vmatpush1.msra.mxu0 0.0
  %203 = vmatprep.subr.mxu0 0.0
  %204 = vmatpush1.msra.mxu0 0.0
  %205 = vmatprep.subr.mxu0 0.0
  %206 = vmatpush1.msra.mxu0 0.0
  %207 = vmatprep.subr.mxu0 0.0
  %208 = vmatpush1.msra.mxu0 0.0
  %209 = vmatprep.subr.mxu0 0.0
  %210 = vmatpush1.msra.mxu0 0.0
  %211 = vmatprep.subr.mxu0 0.0
  %212 = vmatpush1.msra.mxu0 0.0
  %213 = vmatprep.subr.mxu0 0.0
  %214 = vmatpush1.msra.mxu0 0.0
  %215 = vmatprep.subr.mxu0 0.0
  %216 = vmatpush1.msra.mxu0 0.0
  %217 = vmatprep.subr.mxu0 0.0
  %218 = vmatpush1.msra.mxu0 0.0
  %219 = vmatprep.subr.mxu0 0.0
  %220 = vmatpush1.msra.mxu0 0.0
  %221 = vmatprep.subr.mxu0 0.0
  %222 = vmatpush1.msra.mxu0 0.0
  %223 = vmatprep.subr.mxu0 0.0
  %224 = vmatpush1.msra.mxu0 0.0
  %225 = vmatprep.subr.mxu0 0.0
  %226 = vmatpush1.msra.mxu0 0.0
  %227 = vmatprep.mubr.f32.mxu0 0.0
  %228 = vmatmul.mubr.f32.gmra.mrb[0].mxu0 %v158
  %v229 = vpop.f32.mrb[0].mxu0
  %v230 = vadd.f32 0.0, %v229
  %v231 = vpop.f32.mrb[0].mxu0
  %232 = vmatprep.mubr.f32.mxu0 0.0
  %233 = vmatmul.mubr.f32.gmra.mrb[0].mxu0 %v161
  %v234 = vpop.f32.mrb[0].mxu0
  %v235 = vadd.f32 0.0, %v234
  %v236 = vpop.f32.mrb[0].mxu0
  %237 = vdwg.mxu0
  %v238 = vld [vmem:[%s4] sm:$0xff]
  %v239 = vld [vmem:[%s4 + $0x8] sm:$0xff]
  %v240 = vld [vmem:[%s4 + $0x10] sm:$0xff]
  %v241 = vld [vmem:[%s4 + $0x18] sm:$0xff]
  %v242 = vld [vmem:[%s4 + $0x20] sm:$0xff]
  %v243 = vld [vmem:[%s4 + $0x28] sm:$0xff]
  %v244 = vld [vmem:[%s4 + $0x30] sm:$0xff]
  %v245 = vld [vmem:[%s4 + $0x38] sm:$0xff]
  %v246 = vld [vmem:[%s4 + $0x40] sm:$0xff]
  %v247 = vld [vmem:[%s4 + $0x48] sm:$0xff]
  %v248 = vld [vmem:[%s4 + $0x50] sm:$0xff]
  %v249 = vld [vmem:[%s4 + $0x58] sm:$0xff]
  %v250 = vld [vmem:[%s4 + $0x60] sm:$0xff]
  %v251 = vld [vmem:[%s4 + $0x68] sm:$0xff]
  %v252 = vld [vmem:[%s4 + $0x70] sm:$0xff]
  %v253 = vld [vmem:[%s4 + $0x78] sm:$0xff]
  %v254 = vld [vmem:[%s4 + $0x80] sm:$0xff]
  %v255 = vld [vmem:[%s4 + $0x88] sm:$0xff]
  %v256 = vld [vmem:[%s4 + $0x90] sm:$0xff]
  %v257 = vld [vmem:[%s4 + $0x98] sm:$0xff]
  %v258 = vld [vmem:[%s4 + $0xa0] sm:$0xff]
  %v259 = vld [vmem:[%s4 + $0xa8] sm:$0xff]
  %v260 = vld [vmem:[%s4 + $0xb0] sm:$0xff]
  %v261 = vld [vmem:[%s4 + $0xb8] sm:$0xff]
  %v262 = vld [vmem:[%s4 + $0xc0] sm:$0xff]
  %v263 = vld [vmem:[%s4 + $0xc8] sm:$0xff]
  %v264 = vld [vmem:[%s4 + $0xd0] sm:$0xff]
  %v265 = vld [vmem:[%s4 + $0xd8] sm:$0xff]
  %v266 = vld [vmem:[%s4 + $0xe0] sm:$0xff]
  %v267 = vld [vmem:[%s4 + $0xe8] sm:$0xff]
  %v268 = vld [vmem:[%s4 + $0xf0] sm:$0xff]
  %v269 = vld [vmem:[%s4 + $0xf8] sm:$0xff]
  %v270 = vld [vmem:[%s8] sm:$0x1]
  %v272 = vlaneseq
  %v273 = vshrl.u32 %v272, 7
  %v274 = vsub.s32 0, %v273
  %v275 = vrot.slane %v270, %v274
  %277 = vmatprep.subr.mxu0 0.0
  %278 = vmatpush1.msra.mxu0 %v238
  %279 = vmatprep.subr.mxu0 0.0
  %280 = vmatpush1.msra.mxu0 %v239
  %281 = vmatprep.subr.mxu0 0.0
  %282 = vmatpush1.msra.mxu0 %v240
  %283 = vmatprep.subr.mxu0 0.0
  %284 = vmatpush1.msra.mxu0 %v241
  %285 = vmatprep.subr.mxu0 0.0
  %286 = vmatpush1.msra.mxu0 %v242
  %287 = vmatprep.subr.mxu0 0.0
  %288 = vmatpush1.msra.mxu0 %v243
  %289 = vmatprep.subr.mxu0 0.0
  %290 = vmatpush1.msra.mxu0 %v244
  %291 = vmatprep.subr.mxu0 0.0
  %292 = vmatpush1.msra.mxu0 %v245
  %293 = vmatprep.subr.mxu0 0.0
  %294 = vmatpush1.msra.mxu0 %v246
  %295 = vmatprep.subr.mxu0 0.0
  %296 = vmatpush1.msra.mxu0 %v247
  %297 = vmatprep.subr.mxu0 0.0
  %298 = vmatpush1.msra.mxu0 %v248
  %299 = vmatprep.subr.mxu0 0.0
  %300 = vmatpush1.msra.mxu0 %v249
  %301 = vmatprep.subr.mxu0 0.0
  %302 = vmatpush1.msra.mxu0 %v250
  %303 = vmatprep.subr.mxu0 0.0
  %304 = vmatpush1.msra.mxu0 %v251
  %305 = vmatprep.subr.mxu0 0.0
  %306 = vmatpush1.msra.mxu0 %v252
  %307 = vmatprep.subr.mxu0 0.0
  %308 = vmatpush1.msra.mxu0 %v253
  %309 = vmatprep.subr.mxu0 0.0
  %310 = vmatpush1.msra.mxu0 %v254
  %311 = vmatprep.subr.mxu0 0.0
  %312 = vmatpush1.msra.mxu0 %v255
  %313 = vmatprep.subr.mxu0 0.0
  %314 = vmatpush1.msra.mxu0 %v256
  %315 = vmatprep.subr.mxu0 0.0
  %316 = vmatpush1.msra.mxu0 %v257
  %317 = vmatprep.subr.mxu0 0.0
  %318 = vmatpush1.msra.mxu0 %v258
  %319 = vmatprep.subr.mxu0 0.0
  %320 = vmatpush1.msra.mxu0 %v259
  %321 = vmatprep.subr.mxu0 0.0
  %322 = vmatpush1.msra.mxu0 %v260
  %323 = vmatprep.subr.mxu0 0.0
  %324 = vmatpush1.msra.mxu0 %v261
  %325 = vmatprep.subr.mxu0 0.0
  %326 = vmatpush1.msra.mxu0 %v262
  %327 = vmatprep.subr.mxu0 0.0
  %328 = vmatpush1.msra.mxu0 %v263
  %329 = vmatprep.subr.mxu0 0.0
  %330 = vmatpush1.msra.mxu0 %v264
  %331 = vmatprep.subr.mxu0 0.0
  %332 = vmatpush1.msra.mxu0 %v265
  %333 = vmatprep.subr.mxu0 0.0
  %334 = vmatpush1.msra.mxu0 %v266
  %335 = vmatprep.subr.mxu0 0.0
  %336 = vmatpush1.msra.mxu0 %v267
  %337 = vmatprep.subr.mxu0 0.0
  %338 = vmatpush1.msra.mxu0 %v268
  %339 = vmatprep.subr.mxu0 0.0
  %340 = vmatpush1.msra.mxu0 %v269
  %341 = vmatprep.mubr.f32.mxu0 %v61
  %342 = vmatmul.mubr.f32.gmra.mrb[0].mxu0 %v230
  %v343 = vpop.f32.mrb[0].mxu0
  %v344 = vadd.f32 %v275, %v343
  %v345 = vpop.f32.mrb[0].mxu0
  %346 = vmatprep.mubr.f32.mxu0 %v62
  %347 = vmatmul.mubr.f32.gmra.mrb[0].mxu0 %v235
  %v348 = vpop.f32.mrb[0].mxu0
  %v349 = vadd.f32 %v275, %v348
  %v350 = vpop.f32.mrb[0].mxu0
  %351 = vdwg.mxu0
  %v352 = vxor.u32 %v344, 2147483648
  %v353 = vxor.u32 %v349, 2147483648
  %v354 = vmul.f32 %v352, 1.442695
  %v355 = vpow.pop %v354
  %v356 = vmul.f32 %v353, 1.442695
  %v357 = vpow.pop %v356
  %v358 = vadd.f32 %v355, 1.0
  %v359 = vadd.f32 %v357, 1.0
  %v360 = vrcp.pop %v358
  %v361 = vmul.f32 1.0, %v360
  %v362 = vrcp.pop %v359
  %v363 = vmul.f32 1.0, %v362
  %v364 = vld [vmem:[%s5] sm:$0xff]
  %v365 = vld [vmem:[%s5 + $0x8] sm:$0xff]
  %v366 = vld [vmem:[%s5 + $0x10] sm:$0xff]
  %v367 = vld [vmem:[%s5 + $0x18] sm:$0xff]
  %v368 = vld [vmem:[%s5 + $0x20] sm:$0xff]
  %v369 = vld [vmem:[%s5 + $0x28] sm:$0xff]
  %v370 = vld [vmem:[%s5 + $0x30] sm:$0xff]
  %v371 = vld [vmem:[%s5 + $0x38] sm:$0xff]
  %v372 = vld [vmem:[%s5 + $0x40] sm:$0xff]
  %v373 = vld [vmem:[%s5 + $0x48] sm:$0xff]
  %v374 = vld [vmem:[%s5 + $0x50] sm:$0xff]
  %v375 = vld [vmem:[%s5 + $0x58] sm:$0xff]
  %v376 = vld [vmem:[%s5 + $0x60] sm:$0xff]
  %v377 = vld [vmem:[%s5 + $0x68] sm:$0xff]
  %v378 = vld [vmem:[%s5 + $0x70] sm:$0xff]
  %v379 = vld [vmem:[%s5 + $0x78] sm:$0xff]
  %v380 = vld [vmem:[%s5 + $0x80] sm:$0xff]
  %v381 = vld [vmem:[%s5 + $0x88] sm:$0xff]
  %v382 = vld [vmem:[%s5 + $0x90] sm:$0xff]
  %v383 = vld [vmem:[%s5 + $0x98] sm:$0xff]
  %v384 = vld [vmem:[%s5 + $0xa0] sm:$0xff]
  %v385 = vld [vmem:[%s5 + $0xa8] sm:$0xff]
  %v386 = vld [vmem:[%s5 + $0xb0] sm:$0xff]
  %v387 = vld [vmem:[%s5 + $0xb8] sm:$0xff]
  %v388 = vld [vmem:[%s5 + $0xc0] sm:$0xff]
  %v389 = vld [vmem:[%s5 + $0xc8] sm:$0xff]
  %v390 = vld [vmem:[%s5 + $0xd0] sm:$0xff]
  %v391 = vld [vmem:[%s5 + $0xd8] sm:$0xff]
  %v392 = vld [vmem:[%s5 + $0xe0] sm:$0xff]
  %v393 = vld [vmem:[%s5 + $0xe8] sm:$0xff]
  %v394 = vld [vmem:[%s5 + $0xf0] sm:$0xff]
  %v395 = vld [vmem:[%s5 + $0xf8] sm:$0xff]
  %v396 = vld [vmem:[%s9] sm:$0x1]
  %v398 = vlaneseq
  %v399 = vshrl.u32 %v398, 7
  %v400 = vsub.s32 0, %v399
  %v401 = vrot.slane %v396, %v400
  %403 = vmatprep.subr.mxu0 0.0
  %404 = vmatpush1.msra.mxu0 %v364
  %405 = vmatprep.subr.mxu0 0.0
  %406 = vmatpush1.msra.mxu0 %v365
  %407 = vmatprep.subr.mxu0 0.0
  %408 = vmatpush1.msra.mxu0 %v366
  %409 = vmatprep.subr.mxu0 0.0
  %410 = vmatpush1.msra.mxu0 %v367
  %411 = vmatprep.subr.mxu0 0.0
  %412 = vmatpush1.msra.mxu0 %v368
  %413 = vmatprep.subr.mxu0 0.0
  %414 = vmatpush1.msra.mxu0 %v369
  %415 = vmatprep.subr.mxu0 0.0
  %416 = vmatpush1.msra.mxu0 %v370
  %417 = vmatprep.subr.mxu0 0.0
  %418 = vmatpush1.msra.mxu0 %v371
  %419 = vmatprep.subr.mxu0 0.0
  %420 = vmatpush1.msra.mxu0 %v372
  %421 = vmatprep.subr.mxu0 0.0
  %422 = vmatpush1.msra.mxu0 %v373
  %423 = vmatprep.subr.mxu0 0.0
  %424 = vmatpush1.msra.mxu0 %v374
  %425 = vmatprep.subr.mxu0 0.0
  %426 = vmatpush1.msra.mxu0 %v375
  %427 = vmatprep.subr.mxu0 0.0
  %428 = vmatpush1.msra.mxu0 %v376
  %429 = vmatprep.subr.mxu0 0.0
  %430 = vmatpush1.msra.mxu0 %v377
  %431 = vmatprep.subr.mxu0 0.0
  %432 = vmatpush1.msra.mxu0 %v378
  %433 = vmatprep.subr.mxu0 0.0
  %434 = vmatpush1.msra.mxu0 %v379
  %435 = vmatprep.subr.mxu0 0.0
  %436 = vmatpush1.msra.mxu0 %v380
  %437 = vmatprep.subr.mxu0 0.0
  %438 = vmatpush1.msra.mxu0 %v381
  %439 = vmatprep.subr.mxu0 0.0
  %440 = vmatpush1.msra.mxu0 %v382
  %441 = vmatprep.subr.mxu0 0.0
  %442 = vmatpush1.msra.mxu0 %v383
  %443 = vmatprep.subr.mxu0 0.0
  %444 = vmatpush1.msra.mxu0 %v384
  %445 = vmatprep.subr.mxu0 0.0
  %446 = vmatpush1.msra.mxu0 %v385
  %447 = vmatprep.subr.mxu0 0.0
  %448 = vmatpush1.msra.mxu0 %v386
  %449 = vmatprep.subr.mxu0 0.0
  %450 = vmatpush1.msra.mxu0 %v387
  %451 = vmatprep.subr.mxu0 0.0
  %452 = vmatpush1.msra.mxu0 %v388
  %453 = vmatprep.subr.mxu0 0.0
  %454 = vmatpush1.msra.mxu0 %v389
  %455 = vmatprep.subr.mxu0 0.0
  %456 = vmatpush1.msra.mxu0 %v390
  %457 = vmatprep.subr.mxu0 0.0
  %458 = vmatpush1.msra.mxu0 %v391
  %459 = vmatprep.subr.mxu0 0.0
  %460 = vmatpush1.msra.mxu0 %v392
  %461 = vmatprep.subr.mxu0 0.0
  %462 = vmatpush1.msra.mxu0 %v393
  %463 = vmatprep.subr.mxu0 0.0
  %464 = vmatpush1.msra.mxu0 %v394
  %465 = vmatprep.subr.mxu0 0.0
  %466 = vmatpush1.msra.mxu0 %v395
  %467 = vmatprep.mubr.f32.mxu0 %v61
  %468 = vmatmul.mubr.f32.gmra.mrb[0].mxu0 %v230
  %v469 = vpop.f32.mrb[0].mxu0
  %v470 = vadd.f32 %v401, %v469
  %v471 = vpop.f32.mrb[0].mxu0
  %472 = vmatprep.mubr.f32.mxu0 %v62
  %473 = vmatmul.mubr.f32.gmra.mrb[0].mxu0 %v235
  %v474 = vpop.f32.mrb[0].mxu0
  %v475 = vadd.f32 %v401, %v474
  %v476 = vpop.f32.mrb[0].mxu0
  %477 = vdwg.mxu0
  %v478 = vxor.u32 %v470, 2147483648
  %v479 = vxor.u32 %v475, 2147483648
  %v480 = vmul.f32 %v478, 1.442695
  %v481 = vpow.pop %v480
  %v482 = vmul.f32 %v479, 1.442695
  %v483 = vpow.pop %v482
  %v484 = vadd.f32 %v481, 1.0
  %v485 = vadd.f32 %v483, 1.0
  %v486 = vrcp.pop %v484
  %v487 = vmul.f32 1.0, %v486
  %v488 = vrcp.pop %v485
  %v489 = vmul.f32 1.0, %v488
  %v490 = vld [vmem:[%s6] sm:$0xff]
  %v491 = vld [vmem:[%s6 + $0x8] sm:$0xff]
  %v492 = vld [vmem:[%s6 + $0x10] sm:$0xff]
  %v493 = vld [vmem:[%s6 + $0x18] sm:$0xff]
  %v494 = vld [vmem:[%s6 + $0x20] sm:$0xff]
  %v495 = vld [vmem:[%s6 + $0x28] sm:$0xff]
  %v496 = vld [vmem:[%s6 + $0x30] sm:$0xff]
  %v497 = vld [vmem:[%s6 + $0x38] sm:$0xff]
  %v498 = vld [vmem:[%s6 + $0x40] sm:$0xff]
  %v499 = vld [vmem:[%s6 + $0x48] sm:$0xff]
  %v500 = vld [vmem:[%s6 + $0x50] sm:$0xff]
  %v501 = vld [vmem:[%s6 + $0x58] sm:$0xff]
  %v502 = vld [vmem:[%s6 + $0x60] sm:$0xff]
  %v503 = vld [vmem:[%s6 + $0x68] sm:$0xff]
  %v504 = vld [vmem:[%s6 + $0x70] sm:$0xff]
  %v505 = vld [vmem:[%s6 + $0x78] sm:$0xff]
  %v506 = vld [vmem:[%s10] sm:$0x1]
  %v508 = vlaneseq
  %v509 = vshrl.u32 %v508, 7
  %v510 = vsub.s32 0, %v509
  %v511 = vrot.slane %v506, %v510
  %513 = vmatprep.subr.mxu0 0.0
  %514 = vmatpush1.msra.mxu0 %v490
  %515 = vmatprep.subr.mxu0 0.0
  %516 = vmatpush1.msra.mxu0 %v491
  %517 = vmatprep.subr.mxu0 0.0
  %518 = vmatpush1.msra.mxu0 %v492
  %519 = vmatprep.subr.mxu0 0.0
  %520 = vmatpush1.msra.mxu0 %v493
  %521 = vmatprep.subr.mxu0 0.0
  %522 = vmatpush1.msra.mxu0 %v494
  %523 = vmatprep.subr.mxu0 0.0
  %524 = vmatpush1.msra.mxu0 %v495
  %525 = vmatprep.subr.mxu0 0.0
  %526 = vmatpush1.msra.mxu0 %v496
  %527 = vmatprep.subr.mxu0 0.0
  %528 = vmatpush1.msra.mxu0 %v497
  %529 = vmatprep.subr.mxu0 0.0
  %530 = vmatpush1.msra.mxu0 %v498
  %531 = vmatprep.subr.mxu0 0.0
  %532 = vmatpush1.msra.mxu0 %v499
  %533 = vmatprep.subr.mxu0 0.0
  %534 = vmatpush1.msra.mxu0 %v500
  %535 = vmatprep.subr.mxu0 0.0
  %536 = vmatpush1.msra.mxu0 %v501
  %537 = vmatprep.subr.mxu0 0.0
  %538 = vmatpush1.msra.mxu0 %v502
  %539 = vmatprep.subr.mxu0 0.0
  %540 = vmatpush1.msra.mxu0 %v503
  %541 = vmatprep.subr.mxu0 0.0
  %542 = vmatpush1.msra.mxu0 %v504
  %543 = vmatprep.subr.mxu0 0.0
  %544 = vmatpush1.msra.mxu0 %v505
  %545 = vmatprep.subr.mxu0 0.0
  %546 = vmatpush1.msra.mxu0 0.0
  %547 = vmatprep.subr.mxu0 0.0
  %548 = vmatpush1.msra.mxu0 0.0
  %549 = vmatprep.subr.mxu0 0.0
  %550 = vmatpush1.msra.mxu0 0.0
  %551 = vmatprep.subr.mxu0 0.0
  %552 = vmatpush1.msra.mxu0 0.0
  %553 = vmatprep.subr.mxu0 0.0
  %554 = vmatpush1.msra.mxu0 0.0
  %555 = vmatprep.subr.mxu0 0.0
  %556 = vmatpush1.msra.mxu0 0.0
  %557 = vmatprep.subr.mxu0 0.0
  %558 = vmatpush1.msra.mxu0 0.0
  %559 = vmatprep.subr.mxu0 0.0
  %560 = vmatpush1.msra.mxu0 0.0
  %561 = vmatprep.subr.mxu0 0.0
  %562 = vmatpush1.msra.mxu0 0.0
  %563 = vmatprep.subr.mxu0 0.0
  %564 = vmatpush1.msra.mxu0 0.0
  %565 = vmatprep.subr.mxu0 0.0
  %566 = vmatpush1.msra.mxu0 0.0
  %567 = vmatprep.subr.mxu0 0.0
  %568 = vmatpush1.msra.mxu0 0.0
  %569 = vmatprep.subr.mxu0 0.0
  %570 = vmatpush1.msra.mxu0 0.0
  %571 = vmatprep.subr.mxu0 0.0
  %572 = vmatpush1.msra.mxu0 0.0
  %573 = vmatprep.subr.mxu0 0.0
  %574 = vmatpush1.msra.mxu0 0.0
  %575 = vmatprep.subr.mxu0 0.0
  %576 = vmatpush1.msra.mxu0 0.0
  %577 = vmatprep.mubr.f32.mxu0 0.0
  %578 = vmatmul.mubr.f32.gmra.mrb[0].mxu0 %v230
  %v579 = vpop.f32.mrb[0].mxu0
  %v580 = vadd.f32 %v511, %v579
  %v581 = vpop.f32.mrb[0].mxu0
  %582 = vmatprep.mubr.f32.mxu0 0.0
  %583 = vmatmul.mubr.f32.gmra.mrb[0].mxu0 %v235
  %v584 = vpop.f32.mrb[0].mxu0
  %v585 = vadd.f32 %v511, %v584
  %v586 = vpop.f32.mrb[0].mxu0
  %587 = vdwg.mxu0
  %v588 = vld [vmem:[%s7] sm:$0xff]
  %v589 = vld [vmem:[%s7 + $0x8] sm:$0xff]
  %v590 = vld [vmem:[%s7 + $0x10] sm:$0xff]
  %v591 = vld [vmem:[%s7 + $0x18] sm:$0xff]
  %v592 = vld [vmem:[%s7 + $0x20] sm:$0xff]
  %v593 = vld [vmem:[%s7 + $0x28] sm:$0xff]
  %v594 = vld [vmem:[%s7 + $0x30] sm:$0xff]
  %v595 = vld [vmem:[%s7 + $0x38] sm:$0xff]
  %v596 = vld [vmem:[%s7 + $0x40] sm:$0xff]
  %v597 = vld [vmem:[%s7 + $0x48] sm:$0xff]
  %v598 = vld [vmem:[%s7 + $0x50] sm:$0xff]
  %v599 = vld [vmem:[%s7 + $0x58] sm:$0xff]
  %v600 = vld [vmem:[%s7 + $0x60] sm:$0xff]
  %v601 = vld [vmem:[%s7 + $0x68] sm:$0xff]
  %v602 = vld [vmem:[%s7 + $0x70] sm:$0xff]
  %v603 = vld [vmem:[%s7 + $0x78] sm:$0xff]
  %v604 = vld [vmem:[%s11] sm:$0x1]
  %v606 = vlaneseq
  %v607 = vshrl.u32 %v606, 7
  %v608 = vsub.s32 0, %v607
  %v609 = vrot.slane %v604, %v608
  %611 = vmatprep.subr.mxu0 0.0
  %612 = vmatpush1.msra.mxu0 %v588
  %613 = vmatprep.subr.mxu0 0.0
  %614 = vmatpush1.msra.mxu0 %v589
  %615 = vmatprep.subr.mxu0 0.0
  %616 = vmatpush1.msra.mxu0 %v590
  %617 = vmatprep.subr.mxu0 0.0
  %618 = vmatpush1.msra.mxu0 %v591
  %619 = vmatprep.subr.mxu0 0.0
  %620 = vmatpush1.msra.mxu0 %v592
  %621 = vmatprep.subr.mxu0 0.0
  %622 = vmatpush1.msra.mxu0 %v593
  %623 = vmatprep.subr.mxu0 0.0
  %624 = vmatpush1.msra.mxu0 %v594
  %625 = vmatprep.subr.mxu0 0.0
  %626 = vmatpush1.msra.mxu0 %v595
  %627 = vmatprep.subr.mxu0 0.0
  %628 = vmatpush1.msra.mxu0 %v596
  %629 = vmatprep.subr.mxu0 0.0
  %630 = vmatpush1.msra.mxu0 %v597
  %631 = vmatprep.subr.mxu0 0.0
  %632 = vmatpush1.msra.mxu0 %v598
  %633 = vmatprep.subr.mxu0 0.0
  %634 = vmatpush1.msra.mxu0 %v599
  %635 = vmatprep.subr.mxu0 0.0
  %636 = vmatpush1.msra.mxu0 %v600
  %637 = vmatprep.subr.mxu0 0.0
  %638 = vmatpush1.msra.mxu0 %v601
  %639 = vmatprep.subr.mxu0 0.0
  %640 = vmatpush1.msra.mxu0 %v602
  %641 = vmatprep.subr.mxu0 0.0
  %642 = vmatpush1.msra.mxu0 %v603
  %643 = vmatprep.subr.mxu0 0.0
  %644 = vmatpush1.msra.mxu0 0.0
  %645 = vmatprep.subr.mxu0 0.0
  %646 = vmatpush1.msra.mxu0 0.0
  %647 = vmatprep.subr.mxu0 0.0
  %648 = vmatpush1.msra.mxu0 0.0
  %649 = vmatprep.subr.mxu0 0.0
  %650 = vmatpush1.msra.mxu0 0.0
  %651 = vmatprep.subr.mxu0 0.0
  %652 = vmatpush1.msra.mxu0 0.0
  %653 = vmatprep.subr.mxu0 0.0
  %654 = vmatpush1.msra.mxu0 0.0
  %655 = vmatprep.subr.mxu0 0.0
  %656 = vmatpush1.msra.mxu0 0.0
  %657 = vmatprep.subr.mxu0 0.0
  %658 = vmatpush1.msra.mxu0 0.0
  %659 = vmatprep.subr.mxu0 0.0
  %660 = vmatpush1.msra.mxu0 0.0
  %661 = vmatprep.subr.mxu0 0.0
  %662 = vmatpush1.msra.mxu0 0.0
  %663 = vmatprep.subr.mxu0 0.0
  %664 = vmatpush1.msra.mxu0 0.0
  %665 = vmatprep.subr.mxu0 0.0
  %666 = vmatpush1.msra.mxu0 0.0
  %667 = vmatprep.subr.mxu0 0.0
  %668 = vmatpush1.msra.mxu0 0.0
  %669 = vmatprep.subr.mxu0 0.0
  %670 = vmatpush1.msra.mxu0 0.0
  %671 = vmatprep.subr.mxu0 0.0
  %672 = vmatpush1.msra.mxu0 0.0
  %673 = vmatprep.subr.mxu0 0.0
  %674 = vmatpush1.msra.mxu0 0.0
  %675 = vmatprep.mubr.f32.mxu0 0.0
  %676 = vmatmul.mubr.f32.gmra.mrb[0].mxu0 %v61
  %v677 = vpop.f32.mrb[0].mxu0
  %v678 = vadd.f32 %v609, %v677
  %v679 = vpop.f32.mrb[0].mxu0
  %680 = vmatprep.mubr.f32.mxu0 0.0
  %681 = vmatmul.mubr.f32.gmra.mrb[0].mxu0 %v62
  %v682 = vpop.f32.mrb[0].mxu0
  %v683 = vadd.f32 %v609, %v682
  %v684 = vpop.f32.mrb[0].mxu0
  %685 = vdwg.mxu0
  %v686 = vmul.f32 %v361, %v678
  %v687 = vmul.f32 %v363, %v683
  %v688 = vadd.f32 %v580, %v686
  %v689 = vadd.f32 %v585, %v687
  %v690 = vtanh.pop %v688
  %v691 = vtanh.pop %v689
  %v692 = vsub.f32 1.0, %v487
  %v693 = vsub.f32 1.0, %v489
  %v694 = vmul.f32 %v692, %v690
  %v695 = vmul.f32 %v693, %v691
  %v696 = vmul.f32 %v487, %v61
  %v697 = vmul.f32 %v489, %v62
  %v698 = vadd.f32 %v694, %v696
  %v699 = vadd.f32 %v695, %v697
  %s700 = scalar_lea.vmem %s3, 128
  %v701 = vld [vmem:[%s700] sm:$0xff]
  %v702 = vld [vmem:[%s700 + $0x8] sm:$0xff]
  %v703 = vld [vmem:[%s700 + $0x10] sm:$0xff]
  %v704 = vld [vmem:[%s700 + $0x18] sm:$0xff]
  %v705 = vld [vmem:[%s700 + $0x20] sm:$0xff]
  %v706 = vld [vmem:[%s700 + $0x28] sm:$0xff]
  %v707 = vld [vmem:[%s700 + $0x30] sm:$0xff]
  %v708 = vld [vmem:[%s700 + $0x38] sm:$0xff]
  %v709 = vld [vmem:[%s700 + $0x40] sm:$0xff]
  %v710 = vld [vmem:[%s700 + $0x48] sm:$0xff]
  %v711 = vld [vmem:[%s700 + $0x50] sm:$0xff]
  %v712 = vld [vmem:[%s700 + $0x58] sm:$0xff]
  %v713 = vld [vmem:[%s700 + $0x60] sm:$0xff]
  %v714 = vld [vmem:[%s700 + $0x68] sm:$0xff]
  %v715 = vld [vmem:[%s700 + $0x70] sm:$0xff]
  %v716 = vld [vmem:[%s700 + $0x78] sm:$0xff]
  %717 = vmatprep.subr.mxu0 0.0
  %718 = vmatpush1.msra.mxu0 %v701
  %719 = vmatprep.subr.mxu0 0.0
  %720 = vmatpush1.msra.mxu0 %v702
  %721 = vmatprep.subr.mxu0 0.0
  %722 = vmatpush1.msra.mxu0 %v703
  %723 = vmatprep.subr.mxu0 0.0
  %724 = vmatpush1.msra.mxu0 %v704
  %725 = vmatprep.subr.mxu0 0.0
  %726 = vmatpush1.msra.mxu0 %v705
  %727 = vmatprep.subr.mxu0 0.0
  %728 = vmatpush1.msra.mxu0 %v706
  %729 = vmatprep.subr.mxu0 0.0
  %730 = vmatpush1.msra.mxu0 %v707
  %731 = vmatprep.subr.mxu0 0.0
  %732 = vmatpush1.msra.mxu0 %v708
  %733 = vmatprep.subr.mxu0 0.0
  %734 = vmatpush1.msra.mxu0 %v709
  %735 = vmatprep.subr.mxu0 0.0
  %736 = vmatpush1.msra.mxu0 %v710
  %737 = vmatprep.subr.mxu0 0.0
  %738 = vmatpush1.msra.mxu0 %v711
  %739 = vmatprep.subr.mxu0 0.0
  %740 = vmatpush1.msra.mxu0 %v712
  %741 = vmatprep.subr.mxu0 0.0
  %742 = vmatpush1.msra.mxu0 %v713
  %743 = vmatprep.subr.mxu0 0.0
  %744 = vmatpush1.msra.mxu0 %v714
  %745 = vmatprep.subr.mxu0 0.0
  %746 = vmatpush1.msra.mxu0 %v715
  %747 = vmatprep.subr.mxu0 0.0
  %748 = vmatpush1.msra.mxu0 %v716
  %749 = vmatprep.subr.mxu0 0.0
  %750 = vmatpush1.msra.mxu0 0.0
  %751 = vmatprep.subr.mxu0 0.0
  %752 = vmatpush1.msra.mxu0 0.0
  %753 = vmatprep.subr.mxu0 0.0
  %754 = vmatpush1.msra.mxu0 0.0
  %755 = vmatprep.subr.mxu0 0.0
  %756 = vmatpush1.msra.mxu0 0.0
  %757 = vmatprep.subr.mxu0 0.0
  %758 = vmatpush1.msra.mxu0 0.0
  %759 = vmatprep.subr.mxu0 0.0
  %760 = vmatpush1.msra.mxu0 0.0
  %761 = vmatprep.subr.mxu0 0.0
  %762 = vmatpush1.msra.mxu0 0.0
  %763 = vmatprep.subr.mxu0 0.0
  %764 = vmatpush1.msra.mxu0 0.0
  %765 = vmatprep.subr.mxu0 0.0
  %766 = vmatpush1.msra.mxu0 0.0
  %767 = vmatprep.subr.mxu0 0.0
  %768 = vmatpush1.msra.mxu0 0.0
  %769 = vmatprep.subr.mxu0 0.0
  %770 = vmatpush1.msra.mxu0 0.0
  %771 = vmatprep.subr.mxu0 0.0
  %772 = vmatpush1.msra.mxu0 0.0
  %773 = vmatprep.subr.mxu0 0.0
  %774 = vmatpush1.msra.mxu0 0.0
  %775 = vmatprep.subr.mxu0 0.0
  %776 = vmatpush1.msra.mxu0 0.0
  %777 = vmatprep.subr.mxu0 0.0
  %778 = vmatpush1.msra.mxu0 0.0
  %779 = vmatprep.subr.mxu0 0.0
  %780 = vmatpush1.msra.mxu0 0.0
  %781 = vmatprep.mubr.f32.mxu0 0.0
  %782 = vmatmul.mubr.f32.gmra.mrb[0].mxu0 %v698
  %v783 = vpop.f32.mrb[0].mxu0
  %v784 = vadd.f32 0.0, %v783
  %v785 = vpop.f32.mrb[0].mxu0
  %786 = vmatprep.mubr.f32.mxu0 0.0
  %787 = vmatmul.mubr.f32.gmra.mrb[0].mxu0 %v699
  %v788 = vpop.f32.mrb[0].mxu0
  %v789 = vadd.f32 0.0, %v788
  %v790 = vpop.f32.mrb[0].mxu0
  %791 = vdwg.mxu0
  %792 = vmatprep.subr.mxu0 0.0
  %793 = vmatpush1.msra.mxu0 %v784
  %794 = vmatprep.subr.mxu0 0.0
  %795 = vmatpush1.msra.mxu0 %v789
  %796 = vmatprep.subr.mxu0 0.0
  %797 = vmatpush1.msra.mxu0 0.0
  %798 = vmatprep.subr.mxu0 0.0
  %799 = vmatpush1.msra.mxu0 0.0
  %800 = vmatprep.subr.mxu0 0.0
  %801 = vmatpush1.msra.mxu0 0.0
  %802 = vmatprep.subr.mxu0 0.0
  %803 = vmatpush1.msra.mxu0 0.0
  %804 = vmatprep.subr.mxu0 0.0
  %805 = vmatpush1.msra.mxu0 0.0
  %806 = vmatprep.subr.mxu0 0.0
  %807 = vmatpush1.msra.mxu0 0.0
  %808 = vmatprep.subr.mxu0 0.0
  %809 = vmatpush1.msra.mxu0 0.0
  %810 = vmatprep.subr.mxu0 0.0
  %811 = vmatpush1.msra.mxu0 0.0
  %812 = vmatprep.subr.mxu0 0.0
  %813 = vmatpush1.msra.mxu0 0.0
  %814 = vmatprep.subr.mxu0 0.0
  %815 = vmatpush1.msra.mxu0 0.0
  %816 = vmatprep.subr.mxu0 0.0
  %817 = vmatpush1.msra.mxu0 0.0
  %818 = vmatprep.subr.mxu0 0.0
  %819 = vmatpush1.msra.mxu0 0.0
  %820 = vmatprep.subr.mxu0 0.0
  %821 = vmatpush1.msra.mxu0 0.0
  %822 = vmatprep.subr.mxu0 0.0
  %823 = vmatpush1.msra.mxu0 0.0
  %824 = vmatprep.subr.mxu0 0.0
  %825 = vmatpush1.msra.mxu0 0.0
  %826 = vmatprep.subr.mxu0 0.0
  %827 = vmatpush1.msra.mxu0 0.0
  %828 = vmatprep.subr.mxu0 0.0
  %829 = vmatpush1.msra.mxu0 0.0
  %830 = vmatprep.subr.mxu0 0.0
  %831 = vmatpush1.msra.mxu0 0.0
  %832 = vmatprep.subr.mxu0 0.0
  %833 = vmatpush1.msra.mxu0 0.0
  %834 = vmatprep.subr.mxu0 0.0
  %835 = vmatpush1.msra.mxu0 0.0
  %836 = vmatprep.subr.mxu0 0.0
  %837 = vmatpush1.msra.mxu0 0.0
  %838 = vmatprep.subr.mxu0 0.0
  %839 = vmatpush1.msra.mxu0 0.0
  %840 = vmatprep.subr.mxu0 0.0
  %841 = vmatpush1.msra.mxu0 0.0
  %842 = vmatprep.subr.mxu0 0.0
  %843 = vmatpush1.msra.mxu0 0.0
  %844 = vmatprep.subr.mxu0 0.0
  %845 = vmatpush1.msra.mxu0 0.0
  %846 = vmatprep.subr.mxu0 0.0
  %847 = vmatpush1.msra.mxu0 0.0
  %848 = vmatprep.subr.mxu0 0.0
  %849 = vmatpush1.msra.mxu0 0.0
  %850 = vmatprep.subr.mxu0 0.0
  %851 = vmatpush1.msra.mxu0 0.0
  %852 = vmatprep.subr.mxu0 0.0
  %853 = vmatpush1.msra.mxu0 0.0
  %854 = vmatprep.subr.mxu0 0.0
  %855 = vmatpush1.msra.mxu0 0.0
  %856 = vmatprep.mubr.f32.mxu0 0.0
  %857 = vmatmul.mubr.f32.gmra.mrb[0].mxu0 %v158
  %v858 = vpop.f32.mrb[0].mxu0
  %v859 = vadd.f32 0.0, %v858
  %v860 = vpop.f32.mrb[0].mxu0
  %861 = vmatprep.mubr.f32.mxu0 0.0
  %862 = vmatmul.mubr.f32.gmra.mrb[0].mxu0 %v161
  %v863 = vpop.f32.mrb[0].mxu0
  %v864 = vadd.f32 0.0, %v863
  %v865 = vpop.f32.mrb[0].mxu0
  %866 = vdwg.mxu0
  %867 = vmatprep.subr.mxu0 0.0
  %868 = vmatpush1.msra.mxu0 %v238
  %869 = vmatprep.subr.mxu0 0.0
  %870 = vmatpush1.msra.mxu0 %v239
  %871 = vmatprep.subr.mxu0 0.0
  %872 = vmatpush1.msra.mxu0 %v240
  %873 = vmatprep.subr.mxu0 0.0
  %874 = vmatpush1.msra.mxu0 %v241
  %875 = vmatprep.subr.mxu0 0.0
  %876 = vmatpush1.msra.mxu0 %v242
  %877 = vmatprep.subr.mxu0 0.0
  %878 = vmatpush1.msra.mxu0 %v243
  %879 = vmatprep.subr.mxu0 0.0
  %880 = vmatpush1.msra.mxu0 %v244
  %881 = vmatprep.subr.mxu0 0.0
  %882 = vmatpush1.msra.mxu0 %v245
  %883 = vmatprep.subr.mxu0 0.0
  %884 = vmatpush1.msra.mxu0 %v246
  %885 = vmatprep.subr.mxu0 0.0
  %886 = vmatpush1.msra.mxu0 %v247
  %887 = vmatprep.subr.mxu0 0.0
  %888 = vmatpush1.msra.mxu0 %v248
  %889 = vmatprep.subr.mxu0 0.0
  %890 = vmatpush1.msra.mxu0 %v249
  %891 = vmatprep.subr.mxu0 0.0
  %892 = vmatpush1.msra.mxu0 %v250
  %893 = vmatprep.subr.mxu0 0.0
  %894 = vmatpush1.msra.mxu0 %v251
  %895 = vmatprep.subr.mxu0 0.0
  %896 = vmatpush1.msra.mxu0 %v252
  %897 = vmatprep.subr.mxu0 0.0
  %898 = vmatpush1.msra.mxu0 %v253
  %899 = vmatprep.subr.mxu0 0.0
  %900 = vmatpush1.msra.mxu0 %v254
  %901 = vmatprep.subr.mxu0 0.0
  %902 = vmatpush1.msra.mxu0 %v255
  %903 = vmatprep.subr.mxu0 0.0
  %904 = vmatpush1.msra.mxu0 %v256
  %905 = vmatprep.subr.mxu0 0.0
  %906 = vmatpush1.msra.mxu0 %v257
  %907 = vmatprep.subr.mxu0 0.0
  %908 = vmatpush1.msra.mxu0 %v258
  %909 = vmatprep.subr.mxu0 0.0
  %910 = vmatpush1.msra.mxu0 %v259
  %911 = vmatprep.subr.mxu0 0.0
  %912 = vmatpush1.msra.mxu0 %v260
  %913 = vmatprep.subr.mxu0 0.0
  %914 = vmatpush1.msra.mxu0 %v261
  %915 = vmatprep.subr.mxu0 0.0
  %916 = vmatpush1.msra.mxu0 %v262
  %917 = vmatprep.subr.mxu0 0.0
  %918 = vmatpush1.msra.mxu0 %v263
  %919 = vmatprep.subr.mxu0 0.0
  %920 = vmatpush1.msra.mxu0 %v264
  %921 = vmatprep.subr.mxu0 0.0
  %922 = vmatpush1.msra.mxu0 %v265
  %923 = vmatprep.subr.mxu0 0.0
  %924 = vmatpush1.msra.mxu0 %v266
  %925 = vmatprep.subr.mxu0 0.0
  %926 = vmatpush1.msra.mxu0 %v267
  %927 = vmatprep.subr.mxu0 0.0
  %928 = vmatpush1.msra.mxu0 %v268
  %929 = vmatprep.subr.mxu0 0.0
  %930 = vmatpush1.msra.mxu0 %v269
  %931 = vmatprep.mubr.f32.mxu0 %v698
  %932 = vmatmul.mubr.f32.gmra.mrb[0].mxu0 %v859
  %v933 = vpop.f32.mrb[0].mxu0
  %v934 = vadd.f32 %v275, %v933
  %v935 = vpop.f32.mrb[0].mxu0
  %936 = vmatprep.mubr.f32.mxu0 %v699
  %937 = vmatmul.mubr.f32.gmra.mrb[0].mxu0 %v864
  %v938 = vpop.f32.mrb[0].mxu0
  %v939 = vadd.f32 %v275, %v938
  %v940 = vpop.f32.mrb[0].mxu0
  %941 = vdwg.mxu0
  %v942 = vxor.u32 %v934, 2147483648
  %v943 = vxor.u32 %v939, 2147483648
  %v944 = vmul.f32 %v942, 1.442695
  %v945 = vpow.pop %v944
  %v946 = vmul.f32 %v943, 1.442695
  %v947 = vpow.pop %v946
  %v948 = vadd.f32 %v945, 1.0
  %v949 = vadd.f32 %v947, 1.0
  %v950 = vrcp.pop %v948
  %v951 = vmul.f32 1.0, %v950
  %v952 = vrcp.pop %v949
  %v953 = vmul.f32 1.0, %v952
  %954 = vmatprep.subr.mxu0 0.0
  %955 = vmatpush1.msra.mxu0 %v364
  %956 = vmatprep.subr.mxu0 0.0
  %957 = vmatpush1.msra.mxu0 %v365
  %958 = vmatprep.subr.mxu0 0.0
  %959 = vmatpush1.msra.mxu0 %v366
  %960 = vmatprep.subr.mxu0 0.0
  %961 = vmatpush1.msra.mxu0 %v367
  %962 = vmatprep.subr.mxu0 0.0
  %963 = vmatpush1.msra.mxu0 %v368
  %964 = vmatprep.subr.mxu0 0.0
  %965 = vmatpush1.msra.mxu0 %v369
  %966 = vmatprep.subr.mxu0 0.0
  %967 = vmatpush1.msra.mxu0 %v370
  %968 = vmatprep.subr.mxu0 0.0
  %969 = vmatpush1.msra.mxu0 %v371
  %970 = vmatprep.subr.mxu0 0.0
  %971 = vmatpush1.msra.mxu0 %v372
  %972 = vmatprep.subr.mxu0 0.0
  %973 = vmatpush1.msra.mxu0 %v373
  %974 = vmatprep.subr.mxu0 0.0
  %975 = vmatpush1.msra.mxu0 %v374
  %976 = vmatprep.subr.mxu0 0.0
  %977 = vmatpush1.msra.mxu0 %v375
  %978 = vmatprep.subr.mxu0 0.0
  %979 = vmatpush1.msra.mxu0 %v376
  %980 = vmatprep.subr.mxu0 0.0
  %981 = vmatpush1.msra.mxu0 %v377
  %982 = vmatprep.subr.mxu0 0.0
  %983 = vmatpush1.msra.mxu0 %v378
  %984 = vmatprep.subr.mxu0 0.0
  %985 = vmatpush1.msra.mxu0 %v379
  %986 = vmatprep.subr.mxu0 0.0
  %987 = vmatpush1.msra.mxu0 %v380
  %988 = vmatprep.subr.mxu0 0.0
  %989 = vmatpush1.msra.mxu0 %v381
  %990 = vmatprep.subr.mxu0 0.0
  %991 = vmatpush1.msra.mxu0 %v382
  %992 = vmatprep.subr.mxu0 0.0
  %993 = vmatpush1.msra.mxu0 %v383
  %994 = vmatprep.subr.mxu0 0.0
  %995 = vmatpush1.msra.mxu0 %v384
  %996 = vmatprep.subr.mxu0 0.0
  %997 = vmatpush1.msra.mxu0 %v385
  %998 = vmatprep.subr.mxu0 0.0
  %999 = vmatpush1.msra.mxu0 %v386
  %1000 = vmatprep.subr.mxu0 0.0
  %1001 = vmatpush1.msra.mxu0 %v387
  %1002 = vmatprep.subr.mxu0 0.0
  %1003 = vmatpush1.msra.mxu0 %v388
  %1004 = vmatprep.subr.mxu0 0.0
  %1005 = vmatpush1.msra.mxu0 %v389
  %1006 = vmatprep.subr.mxu0 0.0
  %1007 = vmatpush1.msra.mxu0 %v390
  %1008 = vmatprep.subr.mxu0 0.0
  %1009 = vmatpush1.msra.mxu0 %v391
  %1010 = vmatprep.subr.mxu0 0.0
  %1011 = vmatpush1.msra.mxu0 %v392
  %1012 = vmatprep.subr.mxu0 0.0
  %1013 = vmatpush1.msra.mxu0 %v393
  %1014 = vmatprep.subr.mxu0 0.0
  %1015 = vmatpush1.msra.mxu0 %v394
  %1016 = vmatprep.subr.mxu0 0.0
  %1017 = vmatpush1.msra.mxu0 %v395
  %1018 = vmatprep.mubr.f32.mxu0 %v698
  %1019 = vmatmul.mubr.f32.gmra.mrb[0].mxu0 %v859
  %v1020 = vpop.f32.mrb[0].mxu0
  %v1021 = vadd.f32 %v401, %v1020
  %v1022 = vpop.f32.mrb[0].mxu0
  %1023 = vmatprep.mubr.f32.mxu0 %v699
  %1024 = vmatmul.mubr.f32.gmra.mrb[0].mxu0 %v864
  %v1025 = vpop.f32.mrb[0].mxu0
  %v1026 = vadd.f32 %v401, %v1025
  %v1027 = vpop.f32.mrb[0].mxu0
  %1028 = vdwg.mxu0
  %v1029 = vxor.u32 %v1021, 2147483648
  %v1030 = vxor.u32 %v1026, 2147483648
  %v1031 = vmul.f32 %v1029, 1.442695
  %v1032 = vpow.pop %v1031
  %v1033 = vmul.f32 %v1030, 1.442695
  %v1034 = vpow.pop %v1033
  %v1035 = vadd.f32 %v1032, 1.0
  %v1036 = vadd.f32 %v1034, 1.0
  %v1037 = vrcp.pop %v1035
  %v1038 = vmul.f32 1.0, %v1037
  %v1039 = vrcp.pop %v1036
  %v1040 = vmul.f32 1.0, %v1039
  %1041 = vmatprep.subr.mxu0 0.0
  %1042 = vmatpush1.msra.mxu0 %v490
  %1043 = vmatprep.subr.mxu0 0.0
  %1044 = vmatpush1.msra.mxu0 %v491
  %1045 = vmatprep.subr.mxu0 0.0
  %1046 = vmatpush1.msra.mxu0 %v492
  %1047 = vmatprep.subr.mxu0 0.0
  %1048 = vmatpush1.msra.mxu0 %v493
  %1049 = vmatprep.subr.mxu0 0.0
  %1050 = vmatpush1.msra.mxu0 %v494
  %1051 = vmatprep.subr.mxu0 0.0
  %1052 = vmatpush1.msra.mxu0 %v495
  %1053 = vmatprep.subr.mxu0 0.0
  %1054 = vmatpush1.msra.mxu0 %v496
  %1055 = vmatprep.subr.mxu0 0.0
  %1056 = vmatpush1.msra.mxu0 %v497
  %1057 = vmatprep.subr.mxu0 0.0
  %1058 = vmatpush1.msra.mxu0 %v498
  %1059 = vmatprep.subr.mxu0 0.0
  %1060 = vmatpush1.msra.mxu0 %v499
  %1061 = vmatprep.subr.mxu0 0.0
  %1062 = vmatpush1.msra.mxu0 %v500
  %1063 = vmatprep.subr.mxu0 0.0
  %1064 = vmatpush1.msra.mxu0 %v501
  %1065 = vmatprep.subr.mxu0 0.0
  %1066 = vmatpush1.msra.mxu0 %v502
  %1067 = vmatprep.subr.mxu0 0.0
  %1068 = vmatpush1.msra.mxu0 %v503
  %1069 = vmatprep.subr.mxu0 0.0
  %1070 = vmatpush1.msra.mxu0 %v504
  %1071 = vmatprep.subr.mxu0 0.0
  %1072 = vmatpush1.msra.mxu0 %v505
  %1073 = vmatprep.subr.mxu0 0.0
  %1074 = vmatpush1.msra.mxu0 0.0
  %1075 = vmatprep.subr.mxu0 0.0
  %1076 = vmatpush1.msra.mxu0 0.0
  %1077 = vmatprep.subr.mxu0 0.0
  %1078 = vmatpush1.msra.mxu0 0.0
  %1079 = vmatprep.subr.mxu0 0.0
  %1080 = vmatpush1.msra.mxu0 0.0
  %1081 = vmatprep.subr.mxu0 0.0
  %1082 = vmatpush1.msra.mxu0 0.0
  %1083 = vmatprep.subr.mxu0 0.0
  %1084 = vmatpush1.msra.mxu0 0.0
  %1085 = vmatprep.subr.mxu0 0.0
  %1086 = vmatpush1.msra.mxu0 0.0
  %1087 = vmatprep.subr.mxu0 0.0
  %1088 = vmatpush1.msra.mxu0 0.0
  %1089 = vmatprep.subr.mxu0 0.0
  %1090 = vmatpush1.msra.mxu0 0.0
  %1091 = vmatprep.subr.mxu0 0.0
  %1092 = vmatpush1.msra.mxu0 0.0
  %1093 = vmatprep.subr.mxu0 0.0
  %1094 = vmatpush1.msra.mxu0 0.0
  %1095 = vmatprep.subr.mxu0 0.0
  %1096 = vmatpush1.msra.mxu0 0.0
  %1097 = vmatprep.subr.mxu0 0.0
  %1098 = vmatpush1.msra.mxu0 0.0
  %1099 = vmatprep.subr.mxu0 0.0
  %1100 = vmatpush1.msra.mxu0 0.0
  %1101 = vmatprep.subr.mxu0 0.0
  %1102 = vmatpush1.msra.mxu0 0.0
  %1103 = vmatprep.subr.mxu0 0.0
  %1104 = vmatpush1.msra.mxu0 0.0
  %1105 = vmatprep.mubr.f32.mxu0 0.0
  %1106 = vmatmul.mubr.f32.gmra.mrb[0].mxu0 %v859
  %v1107 = vpop.f32.mrb[0].mxu0
  %v1108 = vadd.f32 %v511, %v1107
  %v1109 = vpop.f32.mrb[0].mxu0
  %1110 = vmatprep.mubr.f32.mxu0 0.0
  %1111 = vmatmul.mubr.f32.gmra.mrb[0].mxu0 %v864
  %v1112 = vpop.f32.mrb[0].mxu0
  %v1113 = vadd.f32 %v511, %v1112
  %v1114 = vpop.f32.mrb[0].mxu0
  %1115 = vdwg.mxu0
  %1116 = vmatprep.subr.mxu0 0.0
  %1117 = vmatpush1.msra.mxu0 %v588
  %1118 = vmatprep.subr.mxu0 0.0
  %1119 = vmatpush1.msra.mxu0 %v589
  %1120 = vmatprep.subr.mxu0 0.0
  %1121 = vmatpush1.msra.mxu0 %v590
  %1122 = vmatprep.subr.mxu0 0.0
  %1123 = vmatpush1.msra.mxu0 %v591
  %1124 = vmatprep.subr.mxu0 0.0
  %1125 = vmatpush1.msra.mxu0 %v592
  %1126 = vmatprep.subr.mxu0 0.0
  %1127 = vmatpush1.msra.mxu0 %v593
  %1128 = vmatprep.subr.mxu0 0.0
  %1129 = vmatpush1.msra.mxu0 %v594
  %1130 = vmatprep.subr.mxu0 0.0
  %1131 = vmatpush1.msra.mxu0 %v595
  %1132 = vmatprep.subr.mxu0 0.0
  %1133 = vmatpush1.msra.mxu0 %v596
  %1134 = vmatprep.subr.mxu0 0.0
  %1135 = vmatpush1.msra.mxu0 %v597
  %1136 = vmatprep.subr.mxu0 0.0
  %1137 = vmatpush1.msra.mxu0 %v598
  %1138 = vmatprep.subr.mxu0 0.0
  %1139 = vmatpush1.msra.mxu0 %v599
  %1140 = vmatprep.subr.mxu0 0.0
  %1141 = vmatpush1.msra.mxu0 %v600
  %1142 = vmatprep.subr.mxu0 0.0
  %1143 = vmatpush1.msra.mxu0 %v601
  %1144 = vmatprep.subr.mxu0 0.0
  %1145 = vmatpush1.msra.mxu0 %v602
  %1146 = vmatprep.subr.mxu0 0.0
  %1147 = vmatpush1.msra.mxu0 %v603
  %1148 = vmatprep.subr.mxu0 0.0
  %1149 = vmatpush1.msra.mxu0 0.0
  %1150 = vmatprep.subr.mxu0 0.0
  %1151 = vmatpush1.msra.mxu0 0.0
  %1152 = vmatprep.subr.mxu0 0.0
  %1153 = vmatpush1.msra.mxu0 0.0
  %1154 = vmatprep.subr.mxu0 0.0
  %1155 = vmatpush1.msra.mxu0 0.0
  %1156 = vmatprep.subr.mxu0 0.0
  %1157 = vmatpush1.msra.mxu0 0.0
  %1158 = vmatprep.subr.mxu0 0.0
  %1159 = vmatpush1.msra.mxu0 0.0
  %1160 = vmatprep.subr.mxu0 0.0
  %1161 = vmatpush1.msra.mxu0 0.0
  %1162 = vmatprep.subr.mxu0 0.0
  %1163 = vmatpush1.msra.mxu0 0.0
  %1164 = vmatprep.subr.mxu0 0.0
  %1165 = vmatpush1.msra.mxu0 0.0
  %1166 = vmatprep.subr.mxu0 0.0
  %1167 = vmatpush1.msra.mxu0 0.0
  %1168 = vmatprep.subr.mxu0 0.0
  %1169 = vmatpush1.msra.mxu0 0.0
  %1170 = vmatprep.subr.mxu0 0.0
  %1171 = vmatpush1.msra.mxu0 0.0
  %1172 = vmatprep.subr.mxu0 0.0
  %1173 = vmatpush1.msra.mxu0 0.0
  %1174 = vmatprep.subr.mxu0 0.0
  %1175 = vmatpush1.msra.mxu0 0.0
  %1176 = vmatprep.subr.mxu0 0.0
  %1177 = vmatpush1.msra.mxu0 0.0
  %1178 = vmatprep.subr.mxu0 0.0
  %1179 = vmatpush1.msra.mxu0 0.0
  %1180 = vmatprep.mubr.f32.mxu0 0.0
  %1181 = vmatmul.mubr.f32.gmra.mrb[0].mxu0 %v698
  %v1182 = vpop.f32.mrb[0].mxu0
  %v1183 = vadd.f32 %v609, %v1182
  %v1184 = vpop.f32.mrb[0].mxu0
  %1185 = vmatprep.mubr.f32.mxu0 0.0
  %1186 = vmatmul.mubr.f32.gmra.mrb[0].mxu0 %v699
  %v1187 = vpop.f32.mrb[0].mxu0
  %v1188 = vadd.f32 %v609, %v1187
  %v1189 = vpop.f32.mrb[0].mxu0
  %1190 = vdwg.mxu0
  %v1191 = vmul.f32 %v951, %v1183
  %v1192 = vmul.f32 %v953, %v1188
  %v1193 = vadd.f32 %v1108, %v1191
  %v1194 = vadd.f32 %v1113, %v1192
  %v1195 = vtanh.pop %v1193
  %v1196 = vtanh.pop %v1194
  %v1197 = vsub.f32 1.0, %v1038
  %v1198 = vsub.f32 1.0, %v1040
  %v1199 = vmul.f32 %v1197, %v1195
  %v1200 = vmul.f32 %v1198, %v1196
  %v1201 = vmul.f32 %v1038, %v698
  %v1202 = vmul.f32 %v1040, %v699
  %v1203 = vadd.f32 %v1199, %v1201
  %v1204 = vadd.f32 %v1200, %v1202
  %s1205 = scalar_lea.vmem %s3, 256
  %v1206 = vld [vmem:[%s1205] sm:$0xff]
  %v1207 = vld [vmem:[%s1205 + $0x8] sm:$0xff]
  %v1208 = vld [vmem:[%s1205 + $0x10] sm:$0xff]
  %v1209 = vld [vmem:[%s1205 + $0x18] sm:$0xff]
  %v1210 = vld [vmem:[%s1205 + $0x20] sm:$0xff]
  %v1211 = vld [vmem:[%s1205 + $0x28] sm:$0xff]
  %v1212 = vld [vmem:[%s1205 + $0x30] sm:$0xff]
  %v1213 = vld [vmem:[%s1205 + $0x38] sm:$0xff]
  %v1214 = vld [vmem:[%s1205 + $0x40] sm:$0xff]
  %v1215 = vld [vmem:[%s1205 + $0x48] sm:$0xff]
  %v1216 = vld [vmem:[%s1205 + $0x50] sm:$0xff]
  %v1217 = vld [vmem:[%s1205 + $0x58] sm:$0xff]
  %v1218 = vld [vmem:[%s1205 + $0x60] sm:$0xff]
  %v1219 = vld [vmem:[%s1205 + $0x68] sm:$0xff]
  %v1220 = vld [vmem:[%s1205 + $0x70] sm:$0xff]
  %v1221 = vld [vmem:[%s1205 + $0x78] sm:$0xff]
  %1222 = vmatprep.subr.mxu0 0.0
  %1223 = vmatpush1.msra.mxu0 %v1206
  %1224 = vmatprep.subr.mxu0 0.0
  %1225 = vmatpush1.msra.mxu0 %v1207
  %1226 = vmatprep.subr.mxu0 0.0
  %1227 = vmatpush1.msra.mxu0 %v1208
  %1228 = vmatprep.subr.mxu0 0.0
  %1229 = vmatpush1.msra.mxu0 %v1209
  %1230 = vmatprep.subr.mxu0 0.0
  %1231 = vmatpush1.msra.mxu0 %v1210
  %1232 = vmatprep.subr.mxu0 0.0
  %1233 = vmatpush1.msra.mxu0 %v1211
  %1234 = vmatprep.subr.mxu0 0.0
  %1235 = vmatpush1.msra.mxu0 %v1212
  %1236 = vmatprep.subr.mxu0 0.0
  %1237 = vmatpush1.msra.mxu0 %v1213
  %1238 = vmatprep.subr.mxu0 0.0
  %1239 = vmatpush1.msra.mxu0 %v1214
  %1240 = vmatprep.subr.mxu0 0.0
  %1241 = vmatpush1.msra.mxu0 %v1215
  %1242 = vmatprep.subr.mxu0 0.0
  %1243 = vmatpush1.msra.mxu0 %v1216
  %1244 = vmatprep.subr.mxu0 0.0
  %1245 = vmatpush1.msra.mxu0 %v1217
  %1246 = vmatprep.subr.mxu0 0.0
  %1247 = vmatpush1.msra.mxu0 %v1218
  %1248 = vmatprep.subr.mxu0 0.0
  %1249 = vmatpush1.msra.mxu0 %v1219
  %1250 = vmatprep.subr.mxu0 0.0
  %1251 = vmatpush1.msra.mxu0 %v1220
  %1252 = vmatprep.subr.mxu0 0.0
  %1253 = vmatpush1.msra.mxu0 %v1221
  %1254 = vmatprep.subr.mxu0 0.0
  %1255 = vmatpush1.msra.mxu0 0.0
  %1256 = vmatprep.subr.mxu0 0.0
  %1257 = vmatpush1.msra.mxu0 0.0
  %1258 = vmatprep.subr.mxu0 0.0
  %1259 = vmatpush1.msra.mxu0 0.0
  %1260 = vmatprep.subr.mxu0 0.0
  %1261 = vmatpush1.msra.mxu0 0.0
  %1262 = vmatprep.subr.mxu0 0.0
  %1263 = vmatpush1.msra.mxu0 0.0
  %1264 = vmatprep.subr.mxu0 0.0
  %1265 = vmatpush1.msra.mxu0 0.0
  %1266 = vmatprep.subr.mxu0 0.0
  %1267 = vmatpush1.msra.mxu0 0.0
  %1268 = vmatprep.subr.mxu0 0.0
  %1269 = vmatpush1.msra.mxu0 0.0
  %1270 = vmatprep.subr.mxu0 0.0
  %1271 = vmatpush1.msra.mxu0 0.0
  %1272 = vmatprep.subr.mxu0 0.0
  %1273 = vmatpush1.msra.mxu0 0.0
  %1274 = vmatprep.subr.mxu0 0.0
  %1275 = vmatpush1.msra.mxu0 0.0
  %1276 = vmatprep.subr.mxu0 0.0
  %1277 = vmatpush1.msra.mxu0 0.0
  %1278 = vmatprep.subr.mxu0 0.0
  %1279 = vmatpush1.msra.mxu0 0.0
  %1280 = vmatprep.subr.mxu0 0.0
  %1281 = vmatpush1.msra.mxu0 0.0
  %1282 = vmatprep.subr.mxu0 0.0
  %1283 = vmatpush1.msra.mxu0 0.0
  %1284 = vmatprep.subr.mxu0 0.0
  %1285 = vmatpush1.msra.mxu0 0.0
  %1286 = vmatprep.mubr.f32.mxu0 0.0
  %1287 = vmatmul.mubr.f32.gmra.mrb[0].mxu0 %v1203
  %v1288 = vpop.f32.mrb[0].mxu0
  %v1289 = vadd.f32 0.0, %v1288
  %v1290 = vpop.f32.mrb[0].mxu0
  %1291 = vmatprep.mubr.f32.mxu0 0.0
  %1292 = vmatmul.mubr.f32.gmra.mrb[0].mxu0 %v1204
  %v1293 = vpop.f32.mrb[0].mxu0
  %v1294 = vadd.f32 0.0, %v1293
  %v1295 = vpop.f32.mrb[0].mxu0
  %1296 = vdwg.mxu0
  %1297 = vmatprep.subr.mxu0 0.0
  %1298 = vmatpush1.msra.mxu0 %v1289
  %1299 = vmatprep.subr.mxu0 0.0
  %1300 = vmatpush1.msra.mxu0 %v1294
  %1301 = vmatprep.subr.mxu0 0.0
  %1302 = vmatpush1.msra.mxu0 0.0
  %1303 = vmatprep.subr.mxu0 0.0
  %1304 = vmatpush1.msra.mxu0 0.0
  %1305 = vmatprep.subr.mxu0 0.0
  %1306 = vmatpush1.msra.mxu0 0.0
  %1307 = vmatprep.subr.mxu0 0.0
  %1308 = vmatpush1.msra.mxu0 0.0
  %1309 = vmatprep.subr.mxu0 0.0
  %1310 = vmatpush1.msra.mxu0 0.0
  %1311 = vmatprep.subr.mxu0 0.0
  %1312 = vmatpush1.msra.mxu0 0.0
  %1313 = vmatprep.subr.mxu0 0.0
  %1314 = vmatpush1.msra.mxu0 0.0
  %1315 = vmatprep.subr.mxu0 0.0
  %1316 = vmatpush1.msra.mxu0 0.0
  %1317 = vmatprep.subr.mxu0 0.0
  %1318 = vmatpush1.msra.mxu0 0.0
  %1319 = vmatprep.subr.mxu0 0.0
  %1320 = vmatpush1.msra.mxu0 0.0
  %1321 = vmatprep.subr.mxu0 0.0
  %1322 = vmatpush1.msra.mxu0 0.0
  %1323 = vmatprep.subr.mxu0 0.0
  %1324 = vmatpush1.msra.mxu0 0.0
  %1325 = vmatprep.subr.mxu0 0.0
  %1326 = vmatpush1.msra.mxu0 0.0
  %1327 = vmatprep.subr.mxu0 0.0
  %1328 = vmatpush1.msra.mxu0 0.0
  %1329 = vmatprep.subr.mxu0 0.0
  %1330 = vmatpush1.msra.mxu0 0.0
  %1331 = vmatprep.subr.mxu0 0.0
  %1332 = vmatpush1.msra.mxu0 0.0
  %1333 = vmatprep.subr.mxu0 0.0
  %1334 = vmatpush1.msra.mxu0 0.0
  %1335 = vmatprep.subr.mxu0 0.0
  %1336 = vmatpush1.msra.mxu0 0.0
  %1337 = vmatprep.subr.mxu0 0.0
  %1338 = vmatpush1.msra.mxu0 0.0
  %1339 = vmatprep.subr.mxu0 0.0
  %1340 = vmatpush1.msra.mxu0 0.0
  %1341 = vmatprep.subr.mxu0 0.0
  %1342 = vmatpush1.msra.mxu0 0.0
  %1343 = vmatprep.subr.mxu0 0.0
  %1344 = vmatpush1.msra.mxu0 0.0
  %1345 = vmatprep.subr.mxu0 0.0
  %1346 = vmatpush1.msra.mxu0 0.0
  %1347 = vmatprep.subr.mxu0 0.0
  %1348 = vmatpush1.msra.mxu0 0.0
  %1349 = vmatprep.subr.mxu0 0.0
  %1350 = vmatpush1.msra.mxu0 0.0
  %1351 = vmatprep.subr.mxu0 0.0
  %1352 = vmatpush1.msra.mxu0 0.0
  %1353 = vmatprep.subr.mxu0 0.0
  %1354 = vmatpush1.msra.mxu0 0.0
  %1355 = vmatprep.subr.mxu0 0.0
  %1356 = vmatpush1.msra.mxu0 0.0
  %1357 = vmatprep.subr.mxu0 0.0
  %1358 = vmatpush1.msra.mxu0 0.0
  %1359 = vmatprep.subr.mxu0 0.0
  %1360 = vmatpush1.msra.mxu0 0.0
  %1361 = vmatprep.mubr.f32.mxu0 0.0
  %1362 = vmatmul.mubr.f32.gmra.mrb[0].mxu0 %v158
  %v1363 = vpop.f32.mrb[0].mxu0
  %v1364 = vadd.f32 0.0, %v1363
  %v1365 = vpop.f32.mrb[0].mxu0
  %1366 = vmatprep.mubr.f32.mxu0 0.0
  %1367 = vmatmul.mubr.f32.gmra.mrb[0].mxu0 %v161
  %v1368 = vpop.f32.mrb[0].mxu0
  %v1369 = vadd.f32 0.0, %v1368
  %v1370 = vpop.f32.mrb[0].mxu0
  %1371 = vdwg.mxu0
  %1372 = vmatprep.subr.mxu0 0.0
  %1373 = vmatpush1.msra.mxu0 %v238
  %1374 = vmatprep.subr.mxu0 0.0
  %1375 = vmatpush1.msra.mxu0 %v239
  %1376 = vmatprep.subr.mxu0 0.0
  %1377 = vmatpush1.msra.mxu0 %v240
  %1378 = vmatprep.subr.mxu0 0.0
  %1379 = vmatpush1.msra.mxu0 %v241
  %1380 = vmatprep.subr.mxu0 0.0
  %1381 = vmatpush1.msra.mxu0 %v242
  %1382 = vmatprep.subr.mxu0 0.0
  %1383 = vmatpush1.msra.mxu0 %v243
  %1384 = vmatprep.subr.mxu0 0.0
  %1385 = vmatpush1.msra.mxu0 %v244
  %1386 = vmatprep.subr.mxu0 0.0
  %1387 = vmatpush1.msra.mxu0 %v245
  %1388 = vmatprep.subr.mxu0 0.0
  %1389 = vmatpush1.msra.mxu0 %v246
  %1390 = vmatprep.subr.mxu0 0.0
  %1391 = vmatpush1.msra.mxu0 %v247
  %1392 = vmatprep.subr.mxu0 0.0
  %1393 = vmatpush1.msra.mxu0 %v248
  %1394 = vmatprep.subr.mxu0 0.0
  %1395 = vmatpush1.msra.mxu0 %v249
  %1396 = vmatprep.subr.mxu0 0.0
  %1397 = vmatpush1.msra.mxu0 %v250
  %1398 = vmatprep.subr.mxu0 0.0
  %1399 = vmatpush1.msra.mxu0 %v251
  %1400 = vmatprep.subr.mxu0 0.0
  %1401 = vmatpush1.msra.mxu0 %v252
  %1402 = vmatprep.subr.mxu0 0.0
  %1403 = vmatpush1.msra.mxu0 %v253
  %1404 = vmatprep.subr.mxu0 0.0
  %1405 = vmatpush1.msra.mxu0 %v254
  %1406 = vmatprep.subr.mxu0 0.0
  %1407 = vmatpush1.msra.mxu0 %v255
  %1408 = vmatprep.subr.mxu0 0.0
  %1409 = vmatpush1.msra.mxu0 %v256
  %1410 = vmatprep.subr.mxu0 0.0
  %1411 = vmatpush1.msra.mxu0 %v257
  %1412 = vmatprep.subr.mxu0 0.0
  %1413 = vmatpush1.msra.mxu0 %v258
  %1414 = vmatprep.subr.mxu0 0.0
  %1415 = vmatpush1.msra.mxu0 %v259
  %1416 = vmatprep.subr.mxu0 0.0
  %1417 = vmatpush1.msra.mxu0 %v260
  %1418 = vmatprep.subr.mxu0 0.0
  %1419 = vmatpush1.msra.mxu0 %v261
  %1420 = vmatprep.subr.mxu0 0.0
  %1421 = vmatpush1.msra.mxu0 %v262
  %1422 = vmatprep.subr.mxu0 0.0
  %1423 = vmatpush1.msra.mxu0 %v263
  %1424 = vmatprep.subr.mxu0 0.0
  %1425 = vmatpush1.msra.mxu0 %v264
  %1426 = vmatprep.subr.mxu0 0.0
  %1427 = vmatpush1.msra.mxu0 %v265
  %1428 = vmatprep.subr.mxu0 0.0
  %1429 = vmatpush1.msra.mxu0 %v266
  %1430 = vmatprep.subr.mxu0 0.0
  %1431 = vmatpush1.msra.mxu0 %v267
  %1432 = vmatprep.subr.mxu0 0.0
  %1433 = vmatpush1.msra.mxu0 %v268
  %1434 = vmatprep.subr.mxu0 0.0
  %1435 = vmatpush1.msra.mxu0 %v269
  %1436 = vmatprep.mubr.f32.mxu0 %v1203
  %1437 = vmatmul.mubr.f32.gmra.mrb[0].mxu0 %v1364
  %v1438 = vpop.f32.mrb[0].mxu0
  %v1439 = vadd.f32 %v275, %v1438
  %v1440 = vpop.f32.mrb[0].mxu0
  %1441 = vmatprep.mubr.f32.mxu0 %v1204
  %1442 = vmatmul.mubr.f32.gmra.mrb[0].mxu0 %v1369
  %v1443 = vpop.f32.mrb[0].mxu0
  %v1444 = vadd.f32 %v275, %v1443
  %v1445 = vpop.f32.mrb[0].mxu0
  %1446 = vdwg.mxu0
  %v1447 = vxor.u32 %v1439, 2147483648
  %v1448 = vxor.u32 %v1444, 2147483648
  %v1449 = vmul.f32 %v1447, 1.442695
  %v1450 = vpow.pop %v1449
  %v1451 = vmul.f32 %v1448, 1.442695
  %v1452 = vpow.pop %v1451
  %v1453 = vadd.f32 %v1450, 1.0
  %v1454 = vadd.f32 %v1452, 1.0
  %v1455 = vrcp.pop %v1453
  %v1456 = vmul.f32 1.0, %v1455
  %v1457 = vrcp.pop %v1454
  %v1458 = vmul.f32 1.0, %v1457
  %1459 = vmatprep.subr.mxu0 0.0
  %1460 = vmatpush1.msra.mxu0 %v364
  %1461 = vmatprep.subr.mxu0 0.0
  %1462 = vmatpush1.msra.mxu0 %v365
  %1463 = vmatprep.subr.mxu0 0.0
  %1464 = vmatpush1.msra.mxu0 %v366
  %1465 = vmatprep.subr.mxu0 0.0
  %1466 = vmatpush1.msra.mxu0 %v367
  %1467 = vmatprep.subr.mxu0 0.0
  %1468 = vmatpush1.msra.mxu0 %v368
  %1469 = vmatprep.subr.mxu0 0.0
  %1470 = vmatpush1.msra.mxu0 %v369
  %1471 = vmatprep.subr.mxu0 0.0
  %1472 = vmatpush1.msra.mxu0 %v370
  %1473 = vmatprep.subr.mxu0 0.0
  %1474 = vmatpush1.msra.mxu0 %v371
  %1475 = vmatprep.subr.mxu0 0.0
  %1476 = vmatpush1.msra.mxu0 %v372
  %1477 = vmatprep.subr.mxu0 0.0
  %1478 = vmatpush1.msra.mxu0 %v373
  %1479 = vmatprep.subr.mxu0 0.0
  %1480 = vmatpush1.msra.mxu0 %v374
  %1481 = vmatprep.subr.mxu0 0.0
  %1482 = vmatpush1.msra.mxu0 %v375
  %1483 = vmatprep.subr.mxu0 0.0
  %1484 = vmatpush1.msra.mxu0 %v376
  %1485 = vmatprep.subr.mxu0 0.0
  %1486 = vmatpush1.msra.mxu0 %v377
  %1487 = vmatprep.subr.mxu0 0.0
  %1488 = vmatpush1.msra.mxu0 %v378
  %1489 = vmatprep.subr.mxu0 0.0
  %1490 = vmatpush1.msra.mxu0 %v379
  %1491 = vmatprep.subr.mxu0 0.0
  %1492 = vmatpush1.msra.mxu0 %v380
  %1493 = vmatprep.subr.mxu0 0.0
  %1494 = vmatpush1.msra.mxu0 %v381
  %1495 = vmatprep.subr.mxu0 0.0
  %1496 = vmatpush1.msra.mxu0 %v382
  %1497 = vmatprep.subr.mxu0 0.0
  %1498 = vmatpush1.msra.mxu0 %v383
  %1499 = vmatprep.subr.mxu0 0.0
  %1500 = vmatpush1.msra.mxu0 %v384
  %1501 = vmatprep.subr.mxu0 0.0
  %1502 = vmatpush1.msra.mxu0 %v385
  %1503 = vmatprep.subr.mxu0 0.0
  %1504 = vmatpush1.msra.mxu0 %v386
  %1505 = vmatprep.subr.mxu0 0.0
  %1506 = vmatpush1.msra.mxu0 %v387
  %1507 = vmatprep.subr.mxu0 0.0
  %1508 = vmatpush1.msra.mxu0 %v388
  %1509 = vmatprep.subr.mxu0 0.0
  %1510 = vmatpush1.msra.mxu0 %v389
  %1511 = vmatprep.subr.mxu0 0.0
  %1512 = vmatpush1.msra.mxu0 %v390
  %1513 = vmatprep.subr.mxu0 0.0
  %1514 = vmatpush1.msra.mxu0 %v391
  %1515 = vmatprep.subr.mxu0 0.0
  %1516 = vmatpush1.msra.mxu0 %v392
  %1517 = vmatprep.subr.mxu0 0.0
  %1518 = vmatpush1.msra.mxu0 %v393
  %1519 = vmatprep.subr.mxu0 0.0
  %1520 = vmatpush1.msra.mxu0 %v394
  %1521 = vmatprep.subr.mxu0 0.0
  %1522 = vmatpush1.msra.mxu0 %v395
  %1523 = vmatprep.mubr.f32.mxu0 %v1203
  %1524 = vmatmul.mubr.f32.gmra.mrb[0].mxu0 %v1364
  %v1525 = vpop.f32.mrb[0].mxu0
  %v1526 = vadd.f32 %v401, %v1525
  %v1527 = vpop.f32.mrb[0].mxu0
  %1528 = vmatprep.mubr.f32.mxu0 %v1204
  %1529 = vmatmul.mubr.f32.gmra.mrb[0].mxu0 %v1369
  %v1530 = vpop.f32.mrb[0].mxu0
  %v1531 = vadd.f32 %v401, %v1530
  %v1532 = vpop.f32.mrb[0].mxu0
  %1533 = vdwg.mxu0
  %v1534 = vxor.u32 %v1526, 2147483648
  %v1535 = vxor.u32 %v1531, 2147483648
  %v1536 = vmul.f32 %v1534, 1.442695
  %v1537 = vpow.pop %v1536
  %v1538 = vmul.f32 %v1535, 1.442695
  %v1539 = vpow.pop %v1538
  %v1540 = vadd.f32 %v1537, 1.0
  %v1541 = vadd.f32 %v1539, 1.0
  %v1542 = vrcp.pop %v1540
  %v1543 = vmul.f32 1.0, %v1542
  %v1544 = vrcp.pop %v1541
  %v1545 = vmul.f32 1.0, %v1544
  %1546 = vmatprep.subr.mxu0 0.0
  %1547 = vmatpush1.msra.mxu0 %v490
  %1548 = vmatprep.subr.mxu0 0.0
  %1549 = vmatpush1.msra.mxu0 %v491
  %1550 = vmatprep.subr.mxu0 0.0
  %1551 = vmatpush1.msra.mxu0 %v492
  %1552 = vmatprep.subr.mxu0 0.0
  %1553 = vmatpush1.msra.mxu0 %v493
  %1554 = vmatprep.subr.mxu0 0.0
  %1555 = vmatpush1.msra.mxu0 %v494
  %1556 = vmatprep.subr.mxu0 0.0
  %1557 = vmatpush1.msra.mxu0 %v495
  %1558 = vmatprep.subr.mxu0 0.0
  %1559 = vmatpush1.msra.mxu0 %v496
  %1560 = vmatprep.subr.mxu0 0.0
  %1561 = vmatpush1.msra.mxu0 %v497
  %1562 = vmatprep.subr.mxu0 0.0
  %1563 = vmatpush1.msra.mxu0 %v498
  %1564 = vmatprep.subr.mxu0 0.0
  %1565 = vmatpush1.msra.mxu0 %v499
  %1566 = vmatprep.subr.mxu0 0.0
  %1567 = vmatpush1.msra.mxu0 %v500
  %1568 = vmatprep.subr.mxu0 0.0
  %1569 = vmatpush1.msra.mxu0 %v501
  %1570 = vmatprep.subr.mxu0 0.0
  %1571 = vmatpush1.msra.mxu0 %v502
  %1572 = vmatprep.subr.mxu0 0.0
  %1573 = vmatpush1.msra.mxu0 %v503
  %1574 = vmatprep.subr.mxu0 0.0
  %1575 = vmatpush1.msra.mxu0 %v504
  %1576 = vmatprep.subr.mxu0 0.0
  %1577 = vmatpush1.msra.mxu0 %v505
  %1578 = vmatprep.subr.mxu0 0.0
  %1579 = vmatpush1.msra.mxu0 0.0
  %1580 = vmatprep.subr.mxu0 0.0
  %1581 = vmatpush1.msra.mxu0 0.0
  %1582 = vmatprep.subr.mxu0 0.0
  %1583 = vmatpush1.msra.mxu0 0.0
  %1584 = vmatprep.subr.mxu0 0.0
  %1585 = vmatpush1.msra.mxu0 0.0
  %1586 = vmatprep.subr.mxu0 0.0
  %1587 = vmatpush1.msra.mxu0 0.0
  %1588 = vmatprep.subr.mxu0 0.0
  %1589 = vmatpush1.msra.mxu0 0.0
  %1590 = vmatprep.subr.mxu0 0.0
  %1591 = vmatpush1.msra.mxu0 0.0
  %1592 = vmatprep.subr.mxu0 0.0
  %1593 = vmatpush1.msra.mxu0 0.0
  %1594 = vmatprep.subr.mxu0 0.0
  %1595 = vmatpush1.msra.mxu0 0.0
  %1596 = vmatprep.subr.mxu0 0.0
  %1597 = vmatpush1.msra.mxu0 0.0
  %1598 = vmatprep.subr.mxu0 0.0
  %1599 = vmatpush1.msra.mxu0 0.0
  %1600 = vmatprep.subr.mxu0 0.0
  %1601 = vmatpush1.msra.mxu0 0.0
  %1602 = vmatprep.subr.mxu0 0.0
  %1603 = vmatpush1.msra.mxu0 0.0
  %1604 = vmatprep.subr.mxu0 0.0
  %1605 = vmatpush1.msra.mxu0 0.0
  %1606 = vmatprep.subr.mxu0 0.0
  %1607 = vmatpush1.msra.mxu0 0.0
  %1608 = vmatprep.subr.mxu0 0.0
  %1609 = vmatpush1.msra.mxu0 0.0
  %1610 = vmatprep.mubr.f32.mxu0 0.0
  %1611 = vmatmul.mubr.f32.gmra.mrb[0].mxu0 %v1364
  %v1612 = vpop.f32.mrb[0].mxu0
  %v1613 = vadd.f32 %v511, %v1612
  %v1614 = vpop.f32.mrb[0].mxu0
  %1615 = vmatprep.mubr.f32.mxu0 0.0
  %1616 = vmatmul.mubr.f32.gmra.mrb[0].mxu0 %v1369
  %v1617 = vpop.f32.mrb[0].mxu0
  %v1618 = vadd.f32 %v511, %v1617
  %v1619 = vpop.f32.mrb[0].mxu0
  %1620 = vdwg.mxu0
  %1621 = vmatprep.subr.mxu0 0.0
  %1622 = vmatpush1.msra.mxu0 %v588
  %1623 = vmatprep.subr.mxu0 0.0
  %1624 = vmatpush1.msra.mxu0 %v589
  %1625 = vmatprep.subr.mxu0 0.0
  %1626 = vmatpush1.msra.mxu0 %v590
  %1627 = vmatprep.subr.mxu0 0.0
  %1628 = vmatpush1.msra.mxu0 %v591
  %1629 = vmatprep.subr.mxu0 0.0
  %1630 = vmatpush1.msra.mxu0 %v592
  %1631 = vmatprep.subr.mxu0 0.0
  %1632 = vmatpush1.msra.mxu0 %v593
  %1633 = vmatprep.subr.mxu0 0.0
  %1634 = vmatpush1.msra.mxu0 %v594
  %1635 = vmatprep.subr.mxu0 0.0
  %1636 = vmatpush1.msra.mxu0 %v595
  %1637 = vmatprep.subr.mxu0 0.0
  %1638 = vmatpush1.msra.mxu0 %v596
  %1639 = vmatprep.subr.mxu0 0.0
  %1640 = vmatpush1.msra.mxu0 %v597
  %1641 = vmatprep.subr.mxu0 0.0
  %1642 = vmatpush1.msra.mxu0 %v598
  %1643 = vmatprep.subr.mxu0 0.0
  %1644 = vmatpush1.msra.mxu0 %v599
  %1645 = vmatprep.subr.mxu0 0.0
  %1646 = vmatpush1.msra.mxu0 %v600
  %1647 = vmatprep.subr.mxu0 0.0
  %1648 = vmatpush1.msra.mxu0 %v601
  %1649 = vmatprep.subr.mxu0 0.0
  %1650 = vmatpush1.msra.mxu0 %v602
  %1651 = vmatprep.subr.mxu0 0.0
  %1652 = vmatpush1.msra.mxu0 %v603
  %1653 = vmatprep.subr.mxu0 0.0
  %1654 = vmatpush1.msra.mxu0 0.0
  %1655 = vmatprep.subr.mxu0 0.0
  %1656 = vmatpush1.msra.mxu0 0.0
  %1657 = vmatprep.subr.mxu0 0.0
  %1658 = vmatpush1.msra.mxu0 0.0
  %1659 = vmatprep.subr.mxu0 0.0
  %1660 = vmatpush1.msra.mxu0 0.0
  %1661 = vmatprep.subr.mxu0 0.0
  %1662 = vmatpush1.msra.mxu0 0.0
  %1663 = vmatprep.subr.mxu0 0.0
  %1664 = vmatpush1.msra.mxu0 0.0
  %1665 = vmatprep.subr.mxu0 0.0
  %1666 = vmatpush1.msra.mxu0 0.0
  %1667 = vmatprep.subr.mxu0 0.0
  %1668 = vmatpush1.msra.mxu0 0.0
  %1669 = vmatprep.subr.mxu0 0.0
  %1670 = vmatpush1.msra.mxu0 0.0
  %1671 = vmatprep.subr.mxu0 0.0
  %1672 = vmatpush1.msra.mxu0 0.0
  %1673 = vmatprep.subr.mxu0 0.0
  %1674 = vmatpush1.msra.mxu0 0.0
  %1675 = vmatprep.subr.mxu0 0.0
  %1676 = vmatpush1.msra.mxu0 0.0
  %1677 = vmatprep.subr.mxu0 0.0
  %1678 = vmatpush1.msra.mxu0 0.0
  %1679 = vmatprep.subr.mxu0 0.0
  %1680 = vmatpush1.msra.mxu0 0.0
  %1681 = vmatprep.subr.mxu0 0.0
  %1682 = vmatpush1.msra.mxu0 0.0
  %1683 = vmatprep.subr.mxu0 0.0
  %1684 = vmatpush1.msra.mxu0 0.0
  %1685 = vmatprep.mubr.f32.mxu0 0.0
  %1686 = vmatmul.mubr.f32.gmra.mrb[0].mxu0 %v1203
  %v1687 = vpop.f32.mrb[0].mxu0
  %v1688 = vadd.f32 %v609, %v1687
  %v1689 = vpop.f32.mrb[0].mxu0
  %1690 = vmatprep.mubr.f32.mxu0 0.0
  %1691 = vmatmul.mubr.f32.gmra.mrb[0].mxu0 %v1204
  %v1692 = vpop.f32.mrb[0].mxu0
  %v1693 = vadd.f32 %v609, %v1692
  %v1694 = vpop.f32.mrb[0].mxu0
  %1695 = vdwg.mxu0
  %v1696 = vmul.f32 %v1456, %v1688
  %v1697 = vmul.f32 %v1458, %v1693
  %v1698 = vadd.f32 %v1613, %v1696
  %v1699 = vadd.f32 %v1618, %v1697
  %v1700 = vtanh.pop %v1698
  %v1701 = vtanh.pop %v1699
  %v1702 = vsub.f32 1.0, %v1543
  %v1703 = vsub.f32 1.0, %v1545
  %v1704 = vmul.f32 %v1702, %v1700
  %v1705 = vmul.f32 %v1703, %v1701
  %v1706 = vmul.f32 %v1543, %v1203
  %v1707 = vmul.f32 %v1545, %v1204
  %v1708 = vadd.f32 %v1704, %v1706
  %v1709 = vadd.f32 %v1705, %v1707
  %s1710 = scalar_lea.vmem %s3, 384
  %v1711 = vld [vmem:[%s1710] sm:$0xff]
  %v1712 = vld [vmem:[%s1710 + $0x8] sm:$0xff]
  %v1713 = vld [vmem:[%s1710 + $0x10] sm:$0xff]
  %v1714 = vld [vmem:[%s1710 + $0x18] sm:$0xff]
  %v1715 = vld [vmem:[%s1710 + $0x20] sm:$0xff]
  %v1716 = vld [vmem:[%s1710 + $0x28] sm:$0xff]
  %v1717 = vld [vmem:[%s1710 + $0x30] sm:$0xff]
  %v1718 = vld [vmem:[%s1710 + $0x38] sm:$0xff]
  %v1719 = vld [vmem:[%s1710 + $0x40] sm:$0xff]
  %v1720 = vld [vmem:[%s1710 + $0x48] sm:$0xff]
  %v1721 = vld [vmem:[%s1710 + $0x50] sm:$0xff]
  %v1722 = vld [vmem:[%s1710 + $0x58] sm:$0xff]
  %v1723 = vld [vmem:[%s1710 + $0x60] sm:$0xff]
  %v1724 = vld [vmem:[%s1710 + $0x68] sm:$0xff]
  %v1725 = vld [vmem:[%s1710 + $0x70] sm:$0xff]
  %v1726 = vld [vmem:[%s1710 + $0x78] sm:$0xff]
  %1727 = vmatprep.subr.mxu0 0.0
  %1728 = vmatpush1.msra.mxu0 %v1711
  %1729 = vmatprep.subr.mxu0 0.0
  %1730 = vmatpush1.msra.mxu0 %v1712
  %1731 = vmatprep.subr.mxu0 0.0
  %1732 = vmatpush1.msra.mxu0 %v1713
  %1733 = vmatprep.subr.mxu0 0.0
  %1734 = vmatpush1.msra.mxu0 %v1714
  %1735 = vmatprep.subr.mxu0 0.0
  %1736 = vmatpush1.msra.mxu0 %v1715
  %1737 = vmatprep.subr.mxu0 0.0
  %1738 = vmatpush1.msra.mxu0 %v1716
  %1739 = vmatprep.subr.mxu0 0.0
  %1740 = vmatpush1.msra.mxu0 %v1717
  %1741 = vmatprep.subr.mxu0 0.0
  %1742 = vmatpush1.msra.mxu0 %v1718
  %1743 = vmatprep.subr.mxu0 0.0
  %1744 = vmatpush1.msra.mxu0 %v1719
  %1745 = vmatprep.subr.mxu0 0.0
  %1746 = vmatpush1.msra.mxu0 %v1720
  %1747 = vmatprep.subr.mxu0 0.0
  %1748 = vmatpush1.msra.mxu0 %v1721
  %1749 = vmatprep.subr.mxu0 0.0
  %1750 = vmatpush1.msra.mxu0 %v1722
  %1751 = vmatprep.subr.mxu0 0.0
  %1752 = vmatpush1.msra.mxu0 %v1723
  %1753 = vmatprep.subr.mxu0 0.0
  %1754 = vmatpush1.msra.mxu0 %v1724
  %1755 = vmatprep.subr.mxu0 0.0
  %1756 = vmatpush1.msra.mxu0 %v1725
  %1757 = vmatprep.subr.mxu0 0.0
  %1758 = vmatpush1.msra.mxu0 %v1726
  %1759 = vmatprep.subr.mxu0 0.0
  %1760 = vmatpush1.msra.mxu0 0.0
  %1761 = vmatprep.subr.mxu0 0.0
  %1762 = vmatpush1.msra.mxu0 0.0
  %1763 = vmatprep.subr.mxu0 0.0
  %1764 = vmatpush1.msra.mxu0 0.0
  %1765 = vmatprep.subr.mxu0 0.0
  %1766 = vmatpush1.msra.mxu0 0.0
  %1767 = vmatprep.subr.mxu0 0.0
  %1768 = vmatpush1.msra.mxu0 0.0
  %1769 = vmatprep.subr.mxu0 0.0
  %1770 = vmatpush1.msra.mxu0 0.0
  %1771 = vmatprep.subr.mxu0 0.0
  %1772 = vmatpush1.msra.mxu0 0.0
  %1773 = vmatprep.subr.mxu0 0.0
  %1774 = vmatpush1.msra.mxu0 0.0
  %1775 = vmatprep.subr.mxu0 0.0
  %1776 = vmatpush1.msra.mxu0 0.0
  %1777 = vmatprep.subr.mxu0 0.0
  %1778 = vmatpush1.msra.mxu0 0.0
  %1779 = vmatprep.subr.mxu0 0.0
  %1780 = vmatpush1.msra.mxu0 0.0
  %1781 = vmatprep.subr.mxu0 0.0
  %1782 = vmatpush1.msra.mxu0 0.0
  %1783 = vmatprep.subr.mxu0 0.0
  %1784 = vmatpush1.msra.mxu0 0.0
  %1785 = vmatprep.subr.mxu0 0.0
  %1786 = vmatpush1.msra.mxu0 0.0
  %1787 = vmatprep.subr.mxu0 0.0
  %1788 = vmatpush1.msra.mxu0 0.0
  %1789 = vmatprep.subr.mxu0 0.0
  %1790 = vmatpush1.msra.mxu0 0.0
  %1791 = vmatprep.mubr.f32.mxu0 0.0
  %1792 = vmatmul.mubr.f32.gmra.mrb[0].mxu0 %v1708
  %v1793 = vpop.f32.mrb[0].mxu0
  %v1794 = vadd.f32 0.0, %v1793
  %v1795 = vpop.f32.mrb[0].mxu0
  %1796 = vmatprep.mubr.f32.mxu0 0.0
  %1797 = vmatmul.mubr.f32.gmra.mrb[0].mxu0 %v1709
  %v1798 = vpop.f32.mrb[0].mxu0
  %v1799 = vadd.f32 0.0, %v1798
  %v1800 = vpop.f32.mrb[0].mxu0
  %1801 = vdwg.mxu0
  %1802 = vmatprep.subr.mxu0 0.0
  %1803 = vmatpush1.msra.mxu0 %v1794
  %1804 = vmatprep.subr.mxu0 0.0
  %1805 = vmatpush1.msra.mxu0 %v1799
  %1806 = vmatprep.subr.mxu0 0.0
  %1807 = vmatpush1.msra.mxu0 0.0
  %1808 = vmatprep.subr.mxu0 0.0
  %1809 = vmatpush1.msra.mxu0 0.0
  %1810 = vmatprep.subr.mxu0 0.0
  %1811 = vmatpush1.msra.mxu0 0.0
  %1812 = vmatprep.subr.mxu0 0.0
  %1813 = vmatpush1.msra.mxu0 0.0
  %1814 = vmatprep.subr.mxu0 0.0
  %1815 = vmatpush1.msra.mxu0 0.0
  %1816 = vmatprep.subr.mxu0 0.0
  %1817 = vmatpush1.msra.mxu0 0.0
  %1818 = vmatprep.subr.mxu0 0.0
  %1819 = vmatpush1.msra.mxu0 0.0
  %1820 = vmatprep.subr.mxu0 0.0
  %1821 = vmatpush1.msra.mxu0 0.0
  %1822 = vmatprep.subr.mxu0 0.0
  %1823 = vmatpush1.msra.mxu0 0.0
  %1824 = vmatprep.subr.mxu0 0.0
  %1825 = vmatpush1.msra.mxu0 0.0
  %1826 = vmatprep.subr.mxu0 0.0
  %1827 = vmatpush1.msra.mxu0 0.0
  %1828 = vmatprep.subr.mxu0 0.0
  %1829 = vmatpush1.msra.mxu0 0.0
  %1830 = vmatprep.subr.mxu0 0.0
  %1831 = vmatpush1.msra.mxu0 0.0
  %1832 = vmatprep.subr.mxu0 0.0
  %1833 = vmatpush1.msra.mxu0 0.0
  %1834 = vmatprep.subr.mxu0 0.0
  %1835 = vmatpush1.msra.mxu0 0.0
  %1836 = vmatprep.subr.mxu0 0.0
  %1837 = vmatpush1.msra.mxu0 0.0
  %1838 = vmatprep.subr.mxu0 0.0
  %1839 = vmatpush1.msra.mxu0 0.0
  %1840 = vmatprep.subr.mxu0 0.0
  %1841 = vmatpush1.msra.mxu0 0.0
  %1842 = vmatprep.subr.mxu0 0.0
  %1843 = vmatpush1.msra.mxu0 0.0
  %1844 = vmatprep.subr.mxu0 0.0
  %1845 = vmatpush1.msra.mxu0 0.0
  %1846 = vmatprep.subr.mxu0 0.0
  %1847 = vmatpush1.msra.mxu0 0.0
  %1848 = vmatprep.subr.mxu0 0.0
  %1849 = vmatpush1.msra.mxu0 0.0
  %1850 = vmatprep.subr.mxu0 0.0
  %1851 = vmatpush1.msra.mxu0 0.0
  %1852 = vmatprep.subr.mxu0 0.0
  %1853 = vmatpush1.msra.mxu0 0.0
  %1854 = vmatprep.subr.mxu0 0.0
  %1855 = vmatpush1.msra.mxu0 0.0
  %1856 = vmatprep.subr.mxu0 0.0
  %1857 = vmatpush1.msra.mxu0 0.0
  %1858 = vmatprep.subr.mxu0 0.0
  %1859 = vmatpush1.msra.mxu0 0.0
  %1860 = vmatprep.subr.mxu0 0.0
  %1861 = vmatpush1.msra.mxu0 0.0
  %1862 = vmatprep.subr.mxu0 0.0
  %1863 = vmatpush1.msra.mxu0 0.0
  %1864 = vmatprep.subr.mxu0 0.0
  %1865 = vmatpush1.msra.mxu0 0.0
  %1866 = vmatprep.mubr.f32.mxu0 0.0
  %1867 = vmatmul.mubr.f32.gmra.mrb[0].mxu0 %v158
  %v1868 = vpop.f32.mrb[0].mxu0
  %v1869 = vadd.f32 0.0, %v1868
  %v1870 = vpop.f32.mrb[0].mxu0
  %1871 = vmatprep.mubr.f32.mxu0 0.0
  %1872 = vmatmul.mubr.f32.gmra.mrb[0].mxu0 %v161
  %v1873 = vpop.f32.mrb[0].mxu0
  %v1874 = vadd.f32 0.0, %v1873
  %v1875 = vpop.f32.mrb[0].mxu0
  %1876 = vdwg.mxu0
  %1877 = vmatprep.subr.mxu0 0.0
  %1878 = vmatpush1.msra.mxu0 %v238
  %1879 = vmatprep.subr.mxu0 0.0
  %1880 = vmatpush1.msra.mxu0 %v239
  %1881 = vmatprep.subr.mxu0 0.0
  %1882 = vmatpush1.msra.mxu0 %v240
  %1883 = vmatprep.subr.mxu0 0.0
  %1884 = vmatpush1.msra.mxu0 %v241
  %1885 = vmatprep.subr.mxu0 0.0
  %1886 = vmatpush1.msra.mxu0 %v242
  %1887 = vmatprep.subr.mxu0 0.0
  %1888 = vmatpush1.msra.mxu0 %v243
  %1889 = vmatprep.subr.mxu0 0.0
  %1890 = vmatpush1.msra.mxu0 %v244
  %1891 = vmatprep.subr.mxu0 0.0
  %1892 = vmatpush1.msra.mxu0 %v245
  %1893 = vmatprep.subr.mxu0 0.0
  %1894 = vmatpush1.msra.mxu0 %v246
  %1895 = vmatprep.subr.mxu0 0.0
  %1896 = vmatpush1.msra.mxu0 %v247
  %1897 = vmatprep.subr.mxu0 0.0
  %1898 = vmatpush1.msra.mxu0 %v248
  %1899 = vmatprep.subr.mxu0 0.0
  %1900 = vmatpush1.msra.mxu0 %v249
  %1901 = vmatprep.subr.mxu0 0.0
  %1902 = vmatpush1.msra.mxu0 %v250
  %1903 = vmatprep.subr.mxu0 0.0
  %1904 = vmatpush1.msra.mxu0 %v251
  %1905 = vmatprep.subr.mxu0 0.0
  %1906 = vmatpush1.msra.mxu0 %v252
  %1907 = vmatprep.subr.mxu0 0.0
  %1908 = vmatpush1.msra.mxu0 %v253
  %1909 = vmatprep.subr.mxu0 0.0
  %1910 = vmatpush1.msra.mxu0 %v254
  %1911 = vmatprep.subr.mxu0 0.0
  %1912 = vmatpush1.msra.mxu0 %v255
  %1913 = vmatprep.subr.mxu0 0.0
  %1914 = vmatpush1.msra.mxu0 %v256
  %1915 = vmatprep.subr.mxu0 0.0
  %1916 = vmatpush1.msra.mxu0 %v257
  %1917 = vmatprep.subr.mxu0 0.0
  %1918 = vmatpush1.msra.mxu0 %v258
  %1919 = vmatprep.subr.mxu0 0.0
  %1920 = vmatpush1.msra.mxu0 %v259
  %1921 = vmatprep.subr.mxu0 0.0
  %1922 = vmatpush1.msra.mxu0 %v260
  %1923 = vmatprep.subr.mxu0 0.0
  %1924 = vmatpush1.msra.mxu0 %v261
  %1925 = vmatprep.subr.mxu0 0.0
  %1926 = vmatpush1.msra.mxu0 %v262
  %1927 = vmatprep.subr.mxu0 0.0
  %1928 = vmatpush1.msra.mxu0 %v263
  %1929 = vmatprep.subr.mxu0 0.0
  %1930 = vmatpush1.msra.mxu0 %v264
  %1931 = vmatprep.subr.mxu0 0.0
  %1932 = vmatpush1.msra.mxu0 %v265
  %1933 = vmatprep.subr.mxu0 0.0
  %1934 = vmatpush1.msra.mxu0 %v266
  %1935 = vmatprep.subr.mxu0 0.0
  %1936 = vmatpush1.msra.mxu0 %v267
  %1937 = vmatprep.subr.mxu0 0.0
  %1938 = vmatpush1.msra.mxu0 %v268
  %1939 = vmatprep.subr.mxu0 0.0
  %1940 = vmatpush1.msra.mxu0 %v269
  %1941 = vmatprep.mubr.f32.mxu0 %v1708
  %1942 = vmatmul.mubr.f32.gmra.mrb[0].mxu0 %v1869
  %v1943 = vpop.f32.mrb[0].mxu0
  %v1944 = vadd.f32 %v275, %v1943
  %v1945 = vpop.f32.mrb[0].mxu0
  %1946 = vmatprep.mubr.f32.mxu0 %v1709
  %1947 = vmatmul.mubr.f32.gmra.mrb[0].mxu0 %v1874
  %v1948 = vpop.f32.mrb[0].mxu0
  %v1949 = vadd.f32 %v275, %v1948
  %v1950 = vpop.f32.mrb[0].mxu0
  %1951 = vdwg.mxu0
  %v1952 = vxor.u32 %v1944, 2147483648
  %v1953 = vxor.u32 %v1949, 2147483648
  %v1954 = vmul.f32 %v1952, 1.442695
  %v1955 = vpow.pop %v1954
  %v1956 = vmul.f32 %v1953, 1.442695
  %v1957 = vpow.pop %v1956
  %v1958 = vadd.f32 %v1955, 1.0
  %v1959 = vadd.f32 %v1957, 1.0
  %v1960 = vrcp.pop %v1958
  %v1961 = vmul.f32 1.0, %v1960
  %v1962 = vrcp.pop %v1959
  %v1963 = vmul.f32 1.0, %v1962
  %1964 = vmatprep.subr.mxu0 0.0
  %1965 = vmatpush1.msra.mxu0 %v364
  %1966 = vmatprep.subr.mxu0 0.0
  %1967 = vmatpush1.msra.mxu0 %v365
  %1968 = vmatprep.subr.mxu0 0.0
  %1969 = vmatpush1.msra.mxu0 %v366
  %1970 = vmatprep.subr.mxu0 0.0
  %1971 = vmatpush1.msra.mxu0 %v367
  %1972 = vmatprep.subr.mxu0 0.0
  %1973 = vmatpush1.msra.mxu0 %v368
  %1974 = vmatprep.subr.mxu0 0.0
  %1975 = vmatpush1.msra.mxu0 %v369
  %1976 = vmatprep.subr.mxu0 0.0
  %1977 = vmatpush1.msra.mxu0 %v370
  %1978 = vmatprep.subr.mxu0 0.0
  %1979 = vmatpush1.msra.mxu0 %v371
  %1980 = vmatprep.subr.mxu0 0.0
  %1981 = vmatpush1.msra.mxu0 %v372
  %1982 = vmatprep.subr.mxu0 0.0
  %1983 = vmatpush1.msra.mxu0 %v373
  %1984 = vmatprep.subr.mxu0 0.0
  %1985 = vmatpush1.msra.mxu0 %v374
  %1986 = vmatprep.subr.mxu0 0.0
  %1987 = vmatpush1.msra.mxu0 %v375
  %1988 = vmatprep.subr.mxu0 0.0
  %1989 = vmatpush1.msra.mxu0 %v376
  %1990 = vmatprep.subr.mxu0 0.0
  %1991 = vmatpush1.msra.mxu0 %v377
  %1992 = vmatprep.subr.mxu0 0.0
  %1993 = vmatpush1.msra.mxu0 %v378
  %1994 = vmatprep.subr.mxu0 0.0
  %1995 = vmatpush1.msra.mxu0 %v379
  %1996 = vmatprep.subr.mxu0 0.0
  %1997 = vmatpush1.msra.mxu0 %v380
  %1998 = vmatprep.subr.mxu0 0.0
  %1999 = vmatpush1.msra.mxu0 %v381
  %2000 = vmatprep.subr.mxu0 0.0
  %2001 = vmatpush1.msra.mxu0 %v382
  %2002 = vmatprep.subr.mxu0 0.0
  %2003 = vmatpush1.msra.mxu0 %v383
  %2004 = vmatprep.subr.mxu0 0.0
  %2005 = vmatpush1.msra.mxu0 %v384
  %2006 = vmatprep.subr.mxu0 0.0
  %2007 = vmatpush1.msra.mxu0 %v385
  %2008 = vmatprep.subr.mxu0 0.0
  %2009 = vmatpush1.msra.mxu0 %v386
  %2010 = vmatprep.subr.mxu0 0.0
  %2011 = vmatpush1.msra.mxu0 %v387
  %2012 = vmatprep.subr.mxu0 0.0
  %2013 = vmatpush1.msra.mxu0 %v388
  %2014 = vmatprep.subr.mxu0 0.0
  %2015 = vmatpush1.msra.mxu0 %v389
  %2016 = vmatprep.subr.mxu0 0.0
  %2017 = vmatpush1.msra.mxu0 %v390
  %2018 = vmatprep.subr.mxu0 0.0
  %2019 = vmatpush1.msra.mxu0 %v391
  %2020 = vmatprep.subr.mxu0 0.0
  %2021 = vmatpush1.msra.mxu0 %v392
  %2022 = vmatprep.subr.mxu0 0.0
  %2023 = vmatpush1.msra.mxu0 %v393
  %2024 = vmatprep.subr.mxu0 0.0
  %2025 = vmatpush1.msra.mxu0 %v394
  %2026 = vmatprep.subr.mxu0 0.0
  %2027 = vmatpush1.msra.mxu0 %v395
  %2028 = vmatprep.mubr.f32.mxu0 %v1708
  %2029 = vmatmul.mubr.f32.gmra.mrb[0].mxu0 %v1869
  %v2030 = vpop.f32.mrb[0].mxu0
  %v2031 = vadd.f32 %v401, %v2030
  %v2032 = vpop.f32.mrb[0].mxu0
  %2033 = vmatprep.mubr.f32.mxu0 %v1709
  %2034 = vmatmul.mubr.f32.gmra.mrb[0].mxu0 %v1874
  %v2035 = vpop.f32.mrb[0].mxu0
  %v2036 = vadd.f32 %v401, %v2035
  %v2037 = vpop.f32.mrb[0].mxu0
  %2038 = vdwg.mxu0
  %v2039 = vxor.u32 %v2031, 2147483648
  %v2040 = vxor.u32 %v2036, 2147483648
  %v2041 = vmul.f32 %v2039, 1.442695
  %v2042 = vpow.pop %v2041
  %v2043 = vmul.f32 %v2040, 1.442695
  %v2044 = vpow.pop %v2043
  %v2045 = vadd.f32 %v2042, 1.0
  %v2046 = vadd.f32 %v2044, 1.0
  %v2047 = vrcp.pop %v2045
  %v2048 = vmul.f32 1.0, %v2047
  %v2049 = vrcp.pop %v2046
  %v2050 = vmul.f32 1.0, %v2049
  %2051 = vmatprep.subr.mxu0 0.0
  %2052 = vmatpush1.msra.mxu0 %v490
  %2053 = vmatprep.subr.mxu0 0.0
  %2054 = vmatpush1.msra.mxu0 %v491
  %2055 = vmatprep.subr.mxu0 0.0
  %2056 = vmatpush1.msra.mxu0 %v492
  %2057 = vmatprep.subr.mxu0 0.0
  %2058 = vmatpush1.msra.mxu0 %v493
  %2059 = vmatprep.subr.mxu0 0.0
  %2060 = vmatpush1.msra.mxu0 %v494
  %2061 = vmatprep.subr.mxu0 0.0
  %2062 = vmatpush1.msra.mxu0 %v495
  %2063 = vmatprep.subr.mxu0 0.0
  %2064 = vmatpush1.msra.mxu0 %v496
  %2065 = vmatprep.subr.mxu0 0.0
  %2066 = vmatpush1.msra.mxu0 %v497
  %2067 = vmatprep.subr.mxu0 0.0
  %2068 = vmatpush1.msra.mxu0 %v498
  %2069 = vmatprep.subr.mxu0 0.0
  %2070 = vmatpush1.msra.mxu0 %v499
  %2071 = vmatprep.subr.mxu0 0.0
  %2072 = vmatpush1.msra.mxu0 %v500
  %2073 = vmatprep.subr.mxu0 0.0
  %2074 = vmatpush1.msra.mxu0 %v501
  %2075 = vmatprep.subr.mxu0 0.0
  %2076 = vmatpush1.msra.mxu0 %v502
  %2077 = vmatprep.subr.mxu0 0.0
  %2078 = vmatpush1.msra.mxu0 %v503
  %2079 = vmatprep.subr.mxu0 0.0
  %2080 = vmatpush1.msra.mxu0 %v504
  %2081 = vmatprep.subr.mxu0 0.0
  %2082 = vmatpush1.msra.mxu0 %v505
  %2083 = vmatprep.subr.mxu0 0.0
  %2084 = vmatpush1.msra.mxu0 0.0
  %2085 = vmatprep.subr.mxu0 0.0
  %2086 = vmatpush1.msra.mxu0 0.0
  %2087 = vmatprep.subr.mxu0 0.0
  %2088 = vmatpush1.msra.mxu0 0.0
  %2089 = vmatprep.subr.mxu0 0.0
  %2090 = vmatpush1.msra.mxu0 0.0
  %2091 = vmatprep.subr.mxu0 0.0
  %2092 = vmatpush1.msra.mxu0 0.0
  %2093 = vmatprep.subr.mxu0 0.0
  %2094 = vmatpush1.msra.mxu0 0.0
  %2095 = vmatprep.subr.mxu0 0.0
  %2096 = vmatpush1.msra.mxu0 0.0
  %2097 = vmatprep.subr.mxu0 0.0
  %2098 = vmatpush1.msra.mxu0 0.0
  %2099 = vmatprep.subr.mxu0 0.0
  %2100 = vmatpush1.msra.mxu0 0.0
  %2101 = vmatprep.subr.mxu0 0.0
  %2102 = vmatpush1.msra.mxu0 0.0
  %2103 = vmatprep.subr.mxu0 0.0
  %2104 = vmatpush1.msra.mxu0 0.0
  %2105 = vmatprep.subr.mxu0 0.0
  %2106 = vmatpush1.msra.mxu0 0.0
  %2107 = vmatprep.subr.mxu0 0.0
  %2108 = vmatpush1.msra.mxu0 0.0
  %2109 = vmatprep.subr.mxu0 0.0
  %2110 = vmatpush1.msra.mxu0 0.0
  %2111 = vmatprep.subr.mxu0 0.0
  %2112 = vmatpush1.msra.mxu0 0.0
  %2113 = vmatprep.subr.mxu0 0.0
  %2114 = vmatpush1.msra.mxu0 0.0
  %2115 = vmatprep.mubr.f32.mxu0 0.0
  %2116 = vmatmul.mubr.f32.gmra.mrb[0].mxu0 %v1869
  %v2117 = vpop.f32.mrb[0].mxu0
  %v2118 = vadd.f32 %v511, %v2117
  %v2119 = vpop.f32.mrb[0].mxu0
  %2120 = vmatprep.mubr.f32.mxu0 0.0
  %2121 = vmatmul.mubr.f32.gmra.mrb[0].mxu0 %v1874
  %v2122 = vpop.f32.mrb[0].mxu0
  %v2123 = vadd.f32 %v511, %v2122
  %v2124 = vpop.f32.mrb[0].mxu0
  %2125 = vdwg.mxu0
  %2126 = vmatprep.subr.mxu0 0.0
  %2127 = vmatpush1.msra.mxu0 %v588
  %2128 = vmatprep.subr.mxu0 0.0
  %2129 = vmatpush1.msra.mxu0 %v589
  %2130 = vmatprep.subr.mxu0 0.0
  %2131 = vmatpush1.msra.mxu0 %v590
  %2132 = vmatprep.subr.mxu0 0.0
  %2133 = vmatpush1.msra.mxu0 %v591
  %2134 = vmatprep.subr.mxu0 0.0
  %2135 = vmatpush1.msra.mxu0 %v592
  %2136 = vmatprep.subr.mxu0 0.0
  %2137 = vmatpush1.msra.mxu0 %v593
  %2138 = vmatprep.subr.mxu0 0.0
  %2139 = vmatpush1.msra.mxu0 %v594
  %2140 = vmatprep.subr.mxu0 0.0
  %2141 = vmatpush1.msra.mxu0 %v595
  %2142 = vmatprep.subr.mxu0 0.0
  %2143 = vmatpush1.msra.mxu0 %v596
  %2144 = vmatprep.subr.mxu0 0.0
  %2145 = vmatpush1.msra.mxu0 %v597
  %2146 = vmatprep.subr.mxu0 0.0
  %2147 = vmatpush1.msra.mxu0 %v598
  %2148 = vmatprep.subr.mxu0 0.0
  %2149 = vmatpush1.msra.mxu0 %v599
  %2150 = vmatprep.subr.mxu0 0.0
  %2151 = vmatpush1.msra.mxu0 %v600
  %2152 = vmatprep.subr.mxu0 0.0
  %2153 = vmatpush1.msra.mxu0 %v601
  %2154 = vmatprep.subr.mxu0 0.0
  %2155 = vmatpush1.msra.mxu0 %v602
  %2156 = vmatprep.subr.mxu0 0.0
  %2157 = vmatpush1.msra.mxu0 %v603
  %2158 = vmatprep.subr.mxu0 0.0
  %2159 = vmatpush1.msra.mxu0 0.0
  %2160 = vmatprep.subr.mxu0 0.0
  %2161 = vmatpush1.msra.mxu0 0.0
  %2162 = vmatprep.subr.mxu0 0.0
  %2163 = vmatpush1.msra.mxu0 0.0
  %2164 = vmatprep.subr.mxu0 0.0
  %2165 = vmatpush1.msra.mxu0 0.0
  %2166 = vmatprep.subr.mxu0 0.0
  %2167 = vmatpush1.msra.mxu0 0.0
  %2168 = vmatprep.subr.mxu0 0.0
  %2169 = vmatpush1.msra.mxu0 0.0
  %2170 = vmatprep.subr.mxu0 0.0
  %2171 = vmatpush1.msra.mxu0 0.0
  %2172 = vmatprep.subr.mxu0 0.0
  %2173 = vmatpush1.msra.mxu0 0.0
  %2174 = vmatprep.subr.mxu0 0.0
  %2175 = vmatpush1.msra.mxu0 0.0
  %2176 = vmatprep.subr.mxu0 0.0
  %2177 = vmatpush1.msra.mxu0 0.0
  %2178 = vmatprep.subr.mxu0 0.0
  %2179 = vmatpush1.msra.mxu0 0.0
  %2180 = vmatprep.subr.mxu0 0.0
  %2181 = vmatpush1.msra.mxu0 0.0
  %2182 = vmatprep.subr.mxu0 0.0
  %2183 = vmatpush1.msra.mxu0 0.0
  %2184 = vmatprep.subr.mxu0 0.0
  %2185 = vmatpush1.msra.mxu0 0.0
  %2186 = vmatprep.subr.mxu0 0.0
  %2187 = vmatpush1.msra.mxu0 0.0
  %2188 = vmatprep.subr.mxu0 0.0
  %2189 = vmatpush1.msra.mxu0 0.0
  %2190 = vmatprep.mubr.f32.mxu0 0.0
  %2191 = vmatmul.mubr.f32.gmra.mrb[0].mxu0 %v1708
  %v2192 = vpop.f32.mrb[0].mxu0
  %v2193 = vadd.f32 %v609, %v2192
  %v2194 = vpop.f32.mrb[0].mxu0
  %2195 = vmatprep.mubr.f32.mxu0 0.0
  %2196 = vmatmul.mubr.f32.gmra.mrb[0].mxu0 %v1709
  %v2197 = vpop.f32.mrb[0].mxu0
  %v2198 = vadd.f32 %v609, %v2197
  %v2199 = vpop.f32.mrb[0].mxu0
  %2200 = vdwg.mxu0
  %v2201 = vmul.f32 %v1961, %v2193
  %v2202 = vmul.f32 %v1963, %v2198
  %v2203 = vadd.f32 %v2118, %v2201
  %v2204 = vadd.f32 %v2123, %v2202
  %v2205 = vtanh.pop %v2203
  %v2206 = vtanh.pop %v2204
  %v2207 = vsub.f32 1.0, %v2048
  %v2208 = vsub.f32 1.0, %v2050
  %v2209 = vmul.f32 %v2207, %v2205
  %v2210 = vmul.f32 %v2208, %v2206
  %v2211 = vmul.f32 %v2048, %v1708
  %v2212 = vmul.f32 %v2050, %v1709
  %v2213 = vadd.f32 %v2209, %v2211
  %v2214 = vadd.f32 %v2210, %v2212
  %v2215 = vld [vmem:[%s2] sm:$0x3]
  %v2217 = vsel %vm156, %v2215, 0
  %2219 = vmatprep.subr.mxu0 0.0
  %2220 = vmatpush1.msra.mxu0 %v2213
  %2221 = vmatprep.subr.mxu0 0.0
  %2222 = vmatpush1.msra.mxu0 %v2214
  %2223 = vmatprep.subr.mxu0 0.0
  %2224 = vmatpush1.msra.mxu0 0.0
  %2225 = vmatprep.subr.mxu0 0.0
  %2226 = vmatpush1.msra.mxu0 0.0
  %2227 = vmatprep.subr.mxu0 0.0
  %2228 = vmatpush1.msra.mxu0 0.0
  %2229 = vmatprep.subr.mxu0 0.0
  %2230 = vmatpush1.msra.mxu0 0.0
  %2231 = vmatprep.subr.mxu0 0.0
  %2232 = vmatpush1.msra.mxu0 0.0
  %2233 = vmatprep.subr.mxu0 0.0
  %2234 = vmatpush1.msra.mxu0 0.0
  %2235 = vmatprep.subr.mxu0 0.0
  %2236 = vmatpush1.msra.mxu0 0.0
  %2237 = vmatprep.subr.mxu0 0.0
  %2238 = vmatpush1.msra.mxu0 0.0
  %2239 = vmatprep.subr.mxu0 0.0
  %2240 = vmatpush1.msra.mxu0 0.0
  %2241 = vmatprep.subr.mxu0 0.0
  %2242 = vmatpush1.msra.mxu0 0.0
  %2243 = vmatprep.subr.mxu0 0.0
  %2244 = vmatpush1.msra.mxu0 0.0
  %2245 = vmatprep.subr.mxu0 0.0
  %2246 = vmatpush1.msra.mxu0 0.0
  %2247 = vmatprep.subr.mxu0 0.0
  %2248 = vmatpush1.msra.mxu0 0.0
  %2249 = vmatprep.subr.mxu0 0.0
  %2250 = vmatpush1.msra.mxu0 0.0
  %2251 = vmatprep.subr.mxu0 0.0
  %2252 = vmatpush1.msra.mxu0 0.0
  %2253 = vmatprep.subr.mxu0 0.0
  %2254 = vmatpush1.msra.mxu0 0.0
  %2255 = vmatprep.subr.mxu0 0.0
  %2256 = vmatpush1.msra.mxu0 0.0
  %2257 = vmatprep.subr.mxu0 0.0
  %2258 = vmatpush1.msra.mxu0 0.0
  %2259 = vmatprep.subr.mxu0 0.0
  %2260 = vmatpush1.msra.mxu0 0.0
  %2261 = vmatprep.subr.mxu0 0.0
  %2262 = vmatpush1.msra.mxu0 0.0
  %2263 = vmatprep.subr.mxu0 0.0
  %2264 = vmatpush1.msra.mxu0 0.0
  %2265 = vmatprep.subr.mxu0 0.0
  %2266 = vmatpush1.msra.mxu0 0.0
  %2267 = vmatprep.subr.mxu0 0.0
  %2268 = vmatpush1.msra.mxu0 0.0
  %2269 = vmatprep.subr.mxu0 0.0
  %2270 = vmatpush1.msra.mxu0 0.0
  %2271 = vmatprep.subr.mxu0 0.0
  %2272 = vmatpush1.msra.mxu0 0.0
  %2273 = vmatprep.subr.mxu0 0.0
  %2274 = vmatpush1.msra.mxu0 0.0
  %2275 = vmatprep.subr.mxu0 0.0
  %2276 = vmatpush1.msra.mxu0 0.0
  %2277 = vmatprep.subr.mxu0 0.0
  %2278 = vmatpush1.msra.mxu0 0.0
  %2279 = vmatprep.subr.mxu0 0.0
  %2280 = vmatpush1.msra.mxu0 0.0
  %2281 = vmatprep.subr.mxu0 0.0
  %2282 = vmatpush1.msra.mxu0 0.0
  %2283 = vmatprep.mubr.f32.mxu0 0.0
  %2284 = vmatmul.mubr.f32.gmra.mrb[0].mxu0 %v2217
  %v2285 = vpop.f32.mrb[0].mxu0
  %v2286 = vadd.f32 0.0, %v2285
  %v2287 = vpop.f32.mrb[0].mxu0
  %2288 = vdwg.mxu0
  %v2289 = vld [vmem:[%s12] sm:$0xff]
  %v2290 = vld [vmem:[%s12 + $0x8] sm:$0xff]
  %v2291 = vld [vmem:[%s12 + $0x10] sm:$0xff]
  %v2292 = vld [vmem:[%s12 + $0x18] sm:$0xff]
  %v2293 = vld [vmem:[%s12 + $0x20] sm:$0xff]
  %v2294 = vld [vmem:[%s12 + $0x28] sm:$0xff]
  %v2295 = vld [vmem:[%s12 + $0x30] sm:$0xff]
  %v2296 = vld [vmem:[%s12 + $0x38] sm:$0xff]
  %v2297 = vld [vmem:[%s12 + $0x40] sm:$0xff]
  %v2298 = vld [vmem:[%s12 + $0x48] sm:$0xff]
  %v2299 = vld [vmem:[%s12 + $0x50] sm:$0xff]
  %v2300 = vld [vmem:[%s12 + $0x58] sm:$0xff]
  %v2301 = vld [vmem:[%s12 + $0x60] sm:$0xff]
  %v2302 = vld [vmem:[%s12 + $0x68] sm:$0xff]
  %v2303 = vld [vmem:[%s12 + $0x70] sm:$0xff]
  %v2304 = vld [vmem:[%s12 + $0x78] sm:$0xff]
  %v2305 = vld [vmem:[%s12 + $0x80] sm:$0xff]
  %v2306 = vld [vmem:[%s12 + $0x88] sm:$0xff]
  %v2307 = vld [vmem:[%s12 + $0x90] sm:$0xff]
  %v2308 = vld [vmem:[%s12 + $0x98] sm:$0xff]
  %v2309 = vld [vmem:[%s12 + $0xa0] sm:$0xff]
  %v2310 = vld [vmem:[%s12 + $0xa8] sm:$0xff]
  %v2311 = vld [vmem:[%s12 + $0xb0] sm:$0xff]
  %v2312 = vld [vmem:[%s12 + $0xb8] sm:$0xff]
  %v2313 = vld [vmem:[%s12 + $0xc0] sm:$0xff]
  %v2314 = vld [vmem:[%s12 + $0xc8] sm:$0xff]
  %v2315 = vld [vmem:[%s12 + $0xd0] sm:$0xff]
  %v2316 = vld [vmem:[%s12 + $0xd8] sm:$0xff]
  %v2317 = vld [vmem:[%s12 + $0xe0] sm:$0xff]
  %v2318 = vld [vmem:[%s12 + $0xe8] sm:$0xff]
  %v2319 = vld [vmem:[%s12 + $0xf0] sm:$0xff]
  %v2320 = vld [vmem:[%s12 + $0xf8] sm:$0xff]
  %v2321 = vld [vmem:[%s13] sm:$0x3]
  %v2323 = vlaneseq
  %v2324 = vshrl.u32 %v2323, 7
  %v2325 = vsub.s32 0, %v2324
  %v2326 = vrot.slane %v2321, %v2325
  %v2327 = vlaneseq
  %v2328 = vshrl.u32 %v2327, 7
  %v2329 = vsub.s32 1, %v2328
  %v2330 = vrot.slane %v2321, %v2329
  %2333 = vmatprep.subr.mxu0 %v2290
  %2334 = vmatpush1.msra.mxu0 %v2289
  %2335 = vmatprep.subr.mxu0 %v2292
  %2336 = vmatpush1.msra.mxu0 %v2291
  %2337 = vmatprep.subr.mxu0 %v2294
  %2338 = vmatpush1.msra.mxu0 %v2293
  %2339 = vmatprep.subr.mxu0 %v2296
  %2340 = vmatpush1.msra.mxu0 %v2295
  %2341 = vmatprep.subr.mxu0 %v2298
  %2342 = vmatpush1.msra.mxu0 %v2297
  %2343 = vmatprep.subr.mxu0 %v2300
  %2344 = vmatpush1.msra.mxu0 %v2299
  %2345 = vmatprep.subr.mxu0 %v2302
  %2346 = vmatpush1.msra.mxu0 %v2301
  %2347 = vmatprep.subr.mxu0 %v2304
  %2348 = vmatpush1.msra.mxu0 %v2303
  %2349 = vmatprep.subr.mxu0 %v2306
  %2350 = vmatpush1.msra.mxu0 %v2305
  %2351 = vmatprep.subr.mxu0 %v2308
  %2352 = vmatpush1.msra.mxu0 %v2307
  %2353 = vmatprep.subr.mxu0 %v2310
  %2354 = vmatpush1.msra.mxu0 %v2309
  %2355 = vmatprep.subr.mxu0 %v2312
  %2356 = vmatpush1.msra.mxu0 %v2311
  %2357 = vmatprep.subr.mxu0 %v2314
  %2358 = vmatpush1.msra.mxu0 %v2313
  %2359 = vmatprep.subr.mxu0 %v2316
  %2360 = vmatpush1.msra.mxu0 %v2315
  %2361 = vmatprep.subr.mxu0 %v2318
  %2362 = vmatpush1.msra.mxu0 %v2317
  %2363 = vmatprep.subr.mxu0 %v2320
  %2364 = vmatpush1.msra.mxu0 %v2319
  %2365 = vmatprep.subr.mxu0 0.0
  %2366 = vmatpush1.msra.mxu0 0.0
  %2367 = vmatprep.subr.mxu0 0.0
  %2368 = vmatpush1.msra.mxu0 0.0
  %2369 = vmatprep.subr.mxu0 0.0
  %2370 = vmatpush1.msra.mxu0 0.0
  %2371 = vmatprep.subr.mxu0 0.0
  %2372 = vmatpush1.msra.mxu0 0.0
  %2373 = vmatprep.subr.mxu0 0.0
  %2374 = vmatpush1.msra.mxu0 0.0
  %2375 = vmatprep.subr.mxu0 0.0
  %2376 = vmatpush1.msra.mxu0 0.0
  %2377 = vmatprep.subr.mxu0 0.0
  %2378 = vmatpush1.msra.mxu0 0.0
  %2379 = vmatprep.subr.mxu0 0.0
  %2380 = vmatpush1.msra.mxu0 0.0
  %2381 = vmatprep.subr.mxu0 0.0
  %2382 = vmatpush1.msra.mxu0 0.0
  %2383 = vmatprep.subr.mxu0 0.0
  %2384 = vmatpush1.msra.mxu0 0.0
  %2385 = vmatprep.subr.mxu0 0.0
  %2386 = vmatpush1.msra.mxu0 0.0
  %2387 = vmatprep.subr.mxu0 0.0
  %2388 = vmatpush1.msra.mxu0 0.0
  %2389 = vmatprep.subr.mxu0 0.0
  %2390 = vmatpush1.msra.mxu0 0.0
  %2391 = vmatprep.subr.mxu0 0.0
  %2392 = vmatpush1.msra.mxu0 0.0
  %2393 = vmatprep.subr.mxu0 0.0
  %2394 = vmatpush1.msra.mxu0 0.0
  %2395 = vmatprep.subr.mxu0 0.0
  %2396 = vmatpush1.msra.mxu0 0.0
  %2397 = vmatprep.mubr.f32.mxu0 0.0
  %2398 = vmatmul.mubr.f32.gmra.mrb[0].mxu0 %v2286
  %v2399 = vpop.f32.mrb[0].mxu0
  %v2400 = vadd.f32 %v2326, %v2399
  %v2401 = vpop.f32.mrb[0].mxu0
  %v2402 = vadd.f32 %v2330, %v2401
  %2403 = vdwg.mxu0
  %v2404 = vmax.f32 %v2400, 0.0
  %v2405 = vmax.f32 %v2402, 0.0
  %v2406 = vld [vmem:[%s14] sm:$0xff]
  %v2407 = vld [vmem:[%s14 + $0x8] sm:$0xff]
  %v2408 = vld [vmem:[%s14 + $0x10] sm:$0xff]
  %v2409 = vld [vmem:[%s14 + $0x18] sm:$0xff]
  %v2410 = vld [vmem:[%s14 + $0x20] sm:$0xff]
  %v2411 = vld [vmem:[%s14 + $0x28] sm:$0xff]
  %v2412 = vld [vmem:[%s14 + $0x30] sm:$0xff]
  %v2413 = vld [vmem:[%s14 + $0x38] sm:$0xff]
  %v2414 = vld [vmem:[%s14 + $0x40] sm:$0xff]
  %v2415 = vld [vmem:[%s14 + $0x48] sm:$0xff]
  %v2416 = vld [vmem:[%s14 + $0x50] sm:$0xff]
  %v2417 = vld [vmem:[%s14 + $0x58] sm:$0xff]
  %v2418 = vld [vmem:[%s14 + $0x60] sm:$0xff]
  %v2419 = vld [vmem:[%s14 + $0x68] sm:$0xff]
  %v2420 = vld [vmem:[%s14 + $0x70] sm:$0xff]
  %v2421 = vld [vmem:[%s14 + $0x78] sm:$0xff]
  %v2422 = vld [vmem:[%s14 + $0x80] sm:$0xff]
  %v2423 = vld [vmem:[%s14 + $0x88] sm:$0xff]
  %v2424 = vld [vmem:[%s14 + $0x90] sm:$0xff]
  %v2425 = vld [vmem:[%s14 + $0x98] sm:$0xff]
  %v2426 = vld [vmem:[%s14 + $0xa0] sm:$0xff]
  %v2427 = vld [vmem:[%s14 + $0xa8] sm:$0xff]
  %v2428 = vld [vmem:[%s14 + $0xb0] sm:$0xff]
  %v2429 = vld [vmem:[%s14 + $0xb8] sm:$0xff]
  %v2430 = vld [vmem:[%s14 + $0xc0] sm:$0xff]
  %v2431 = vld [vmem:[%s14 + $0xc8] sm:$0xff]
  %v2432 = vld [vmem:[%s14 + $0xd0] sm:$0xff]
  %v2433 = vld [vmem:[%s14 + $0xd8] sm:$0xff]
  %v2434 = vld [vmem:[%s14 + $0xe0] sm:$0xff]
  %v2435 = vld [vmem:[%s14 + $0xe8] sm:$0xff]
  %v2436 = vld [vmem:[%s14 + $0xf0] sm:$0xff]
  %v2437 = vld [vmem:[%s14 + $0xf8] sm:$0xff]
  %v2438 = vld [vmem:[%s15] sm:$0x1]
  %v2440 = vlaneseq
  %v2441 = vshrl.u32 %v2440, 7
  %v2442 = vsub.s32 0, %v2441
  %v2443 = vrot.slane %v2438, %v2442
  %2445 = vmatprep.subr.mxu0 0.0
  %2446 = vmatpush1.msra.mxu0 %v2406
  %2447 = vmatprep.subr.mxu0 0.0
  %2448 = vmatpush1.msra.mxu0 %v2407
  %2449 = vmatprep.subr.mxu0 0.0
  %2450 = vmatpush1.msra.mxu0 %v2408
  %2451 = vmatprep.subr.mxu0 0.0
  %2452 = vmatpush1.msra.mxu0 %v2409
  %2453 = vmatprep.subr.mxu0 0.0
  %2454 = vmatpush1.msra.mxu0 %v2410
  %2455 = vmatprep.subr.mxu0 0.0
  %2456 = vmatpush1.msra.mxu0 %v2411
  %2457 = vmatprep.subr.mxu0 0.0
  %2458 = vmatpush1.msra.mxu0 %v2412
  %2459 = vmatprep.subr.mxu0 0.0
  %2460 = vmatpush1.msra.mxu0 %v2413
  %2461 = vmatprep.subr.mxu0 0.0
  %2462 = vmatpush1.msra.mxu0 %v2414
  %2463 = vmatprep.subr.mxu0 0.0
  %2464 = vmatpush1.msra.mxu0 %v2415
  %2465 = vmatprep.subr.mxu0 0.0
  %2466 = vmatpush1.msra.mxu0 %v2416
  %2467 = vmatprep.subr.mxu0 0.0
  %2468 = vmatpush1.msra.mxu0 %v2417
  %2469 = vmatprep.subr.mxu0 0.0
  %2470 = vmatpush1.msra.mxu0 %v2418
  %2471 = vmatprep.subr.mxu0 0.0
  %2472 = vmatpush1.msra.mxu0 %v2419
  %2473 = vmatprep.subr.mxu0 0.0
  %2474 = vmatpush1.msra.mxu0 %v2420
  %2475 = vmatprep.subr.mxu0 0.0
  %2476 = vmatpush1.msra.mxu0 %v2421
  %2477 = vmatprep.subr.mxu0 0.0
  %2478 = vmatpush1.msra.mxu0 %v2422
  %2479 = vmatprep.subr.mxu0 0.0
  %2480 = vmatpush1.msra.mxu0 %v2423
  %2481 = vmatprep.subr.mxu0 0.0
  %2482 = vmatpush1.msra.mxu0 %v2424
  %2483 = vmatprep.subr.mxu0 0.0
  %2484 = vmatpush1.msra.mxu0 %v2425
  %2485 = vmatprep.subr.mxu0 0.0
  %2486 = vmatpush1.msra.mxu0 %v2426
  %2487 = vmatprep.subr.mxu0 0.0
  %2488 = vmatpush1.msra.mxu0 %v2427
  %2489 = vmatprep.subr.mxu0 0.0
  %2490 = vmatpush1.msra.mxu0 %v2428
  %2491 = vmatprep.subr.mxu0 0.0
  %2492 = vmatpush1.msra.mxu0 %v2429
  %2493 = vmatprep.subr.mxu0 0.0
  %2494 = vmatpush1.msra.mxu0 %v2430
  %2495 = vmatprep.subr.mxu0 0.0
  %2496 = vmatpush1.msra.mxu0 %v2431
  %2497 = vmatprep.subr.mxu0 0.0
  %2498 = vmatpush1.msra.mxu0 %v2432
  %2499 = vmatprep.subr.mxu0 0.0
  %2500 = vmatpush1.msra.mxu0 %v2433
  %2501 = vmatprep.subr.mxu0 0.0
  %2502 = vmatpush1.msra.mxu0 %v2434
  %2503 = vmatprep.subr.mxu0 0.0
  %2504 = vmatpush1.msra.mxu0 %v2435
  %2505 = vmatprep.subr.mxu0 0.0
  %2506 = vmatpush1.msra.mxu0 %v2436
  %2507 = vmatprep.subr.mxu0 0.0
  %2508 = vmatpush1.msra.mxu0 %v2437
  %2509 = vmatprep.mubr.f32.mxu0 %v2405
  %2510 = vmatmul.mubr.f32.gmra.mrb[0].mxu0 %v2404
  %v2511 = vpop.f32.mrb[0].mxu0
  %v2512 = vadd.f32 %v2443, %v2511
  %v2513 = vpop.f32.mrb[0].mxu0
  %2514 = vdwg.mxu0
  %v2515 = vmax.f32 %v2512, 0.0
  %v2516 = vld [vmem:[%s16] sm:$0xff]
  %v2517 = vld [vmem:[%s16 + $0x8] sm:$0xff]
  %v2518 = vld [vmem:[%s16 + $0x10] sm:$0xff]
  %v2519 = vld [vmem:[%s16 + $0x18] sm:$0xff]
  %v2520 = vld [vmem:[%s16 + $0x20] sm:$0xff]
  %v2521 = vld [vmem:[%s16 + $0x28] sm:$0xff]
  %v2522 = vld [vmem:[%s16 + $0x30] sm:$0xff]
  %v2523 = vld [vmem:[%s16 + $0x38] sm:$0xff]
  %v2524 = vld [vmem:[%s16 + $0x40] sm:$0xff]
  %v2525 = vld [vmem:[%s16 + $0x48] sm:$0xff]
  %v2526 = vld [vmem:[%s16 + $0x50] sm:$0xff]
  %v2527 = vld [vmem:[%s16 + $0x58] sm:$0xff]
  %v2528 = vld [vmem:[%s16 + $0x60] sm:$0xff]
  %v2529 = vld [vmem:[%s16 + $0x68] sm:$0xff]
  %v2530 = vld [vmem:[%s16 + $0x70] sm:$0xff]
  %v2531 = vld [vmem:[%s16 + $0x78] sm:$0xff]
  %v2532 = vld [vmem:[#allocation2] sm:$0x1]
  %v2534 = vlaneseq
  %v2535 = vshrl.u32 %v2534, 7
  %v2536 = vsub.s32 0, %v2535
  %v2537 = vrot.slane %v2532, %v2536
  %2539 = vmatprep.subr.mxu0 0.0
  %2540 = vmatpush1.msra.mxu0 %v2516
  %2541 = vmatprep.subr.mxu0 0.0
  %2542 = vmatpush1.msra.mxu0 %v2517
  %2543 = vmatprep.subr.mxu0 0.0
  %2544 = vmatpush1.msra.mxu0 %v2518
  %2545 = vmatprep.subr.mxu0 0.0
  %2546 = vmatpush1.msra.mxu0 %v2519
  %2547 = vmatprep.subr.mxu0 0.0
  %2548 = vmatpush1.msra.mxu0 %v2520
  %2549 = vmatprep.subr.mxu0 0.0
  %2550 = vmatpush1.msra.mxu0 %v2521
  %2551 = vmatprep.subr.mxu0 0.0
  %2552 = vmatpush1.msra.mxu0 %v2522
  %2553 = vmatprep.subr.mxu0 0.0
  %2554 = vmatpush1.msra.mxu0 %v2523
  %2555 = vmatprep.subr.mxu0 0.0
  %2556 = vmatpush1.msra.mxu0 %v2524
  %2557 = vmatprep.subr.mxu0 0.0
  %2558 = vmatpush1.msra.mxu0 %v2525
  %2559 = vmatprep.subr.mxu0 0.0
  %2560 = vmatpush1.msra.mxu0 %v2526
  %2561 = vmatprep.subr.mxu0 0.0
  %2562 = vmatpush1.msra.mxu0 %v2527
  %2563 = vmatprep.subr.mxu0 0.0
  %2564 = vmatpush1.msra.mxu0 %v2528
  %2565 = vmatprep.subr.mxu0 0.0
  %2566 = vmatpush1.msra.mxu0 %v2529
  %2567 = vmatprep.subr.mxu0 0.0
  %2568 = vmatpush1.msra.mxu0 %v2530
  %2569 = vmatprep.subr.mxu0 0.0
  %2570 = vmatpush1.msra.mxu0 %v2531
  %2571 = vmatprep.subr.mxu0 0.0
  %2572 = vmatpush1.msra.mxu0 0.0
  %2573 = vmatprep.subr.mxu0 0.0
  %2574 = vmatpush1.msra.mxu0 0.0
  %2575 = vmatprep.subr.mxu0 0.0
  %2576 = vmatpush1.msra.mxu0 0.0
  %2577 = vmatprep.subr.mxu0 0.0
  %2578 = vmatpush1.msra.mxu0 0.0
  %2579 = vmatprep.subr.mxu0 0.0
  %2580 = vmatpush1.msra.mxu0 0.0
  %2581 = vmatprep.subr.mxu0 0.0
  %2582 = vmatpush1.msra.mxu0 0.0
  %2583 = vmatprep.subr.mxu0 0.0
  %2584 = vmatpush1.msra.mxu0 0.0
  %2585 = vmatprep.subr.mxu0 0.0
  %2586 = vmatpush1.msra.mxu0 0.0
  %2587 = vmatprep.subr.mxu0 0.0
  %2588 = vmatpush1.msra.mxu0 0.0
  %2589 = vmatprep.subr.mxu0 0.0
  %2590 = vmatpush1.msra.mxu0 0.0
  %2591 = vmatprep.subr.mxu0 0.0
  %2592 = vmatpush1.msra.mxu0 0.0
  %2593 = vmatprep.subr.mxu0 0.0
  %2594 = vmatpush1.msra.mxu0 0.0
  %2595 = vmatprep.subr.mxu0 0.0
  %2596 = vmatpush1.msra.mxu0 0.0
  %2597 = vmatprep.subr.mxu0 0.0
  %2598 = vmatpush1.msra.mxu0 0.0
  %2599 = vmatprep.subr.mxu0 0.0
  %2600 = vmatpush1.msra.mxu0 0.0
  %2601 = vmatprep.subr.mxu0 0.0
  %2602 = vmatpush1.msra.mxu0 0.0
  %2603 = vmatprep.mubr.f32.mxu0 0.0
  %2604 = vmatmul.mubr.f32.gmra.mrb[0].mxu0 %v2515
  %v2605 = vpop.f32.mrb[0].mxu0
  %v2606 = vadd.f32 %v2537, %v2605
  %v2607 = vpop.f32.mrb[0].mxu0
  %2608 = vdwg.mxu0
  %vm2609 = vcmask 1024
  %2610 = vst.msk [vmem:[%s18] sm:$0x3] %vm2609, %v2606
  // Predicated region
  $region74: #{net_forward.1} parent=0 // pred_check
    _
  $region75: #{net_forward.1} parent=0 // pred_check_branch
    %2612 = sbr.rel (0) target = $region77
  $region76: #{net_forward.1} parent=0 // pred_region
    _
  $region77: #{net_forward.1} parent=0 // pred_fallthru
    _
  // Predicated region
  $region78: #{net_forward.1} parent=0 // pred_check
    _
  $region79: #{net_forward.1} parent=0 // pred_check_branch
    %2614 = sbr.rel (0) target = $region81
  $region80: #{net_forward.1} parent=0 // pred_region
    _
  $region81: #{net_forward.1} parent=0 // pred_fallthru
    _

</llo_original>
